<compile_context>
chip_gen: v7x
topology: tpu7x:2x2x1
jax: 0.10.0
libtpu: 0.0.40
codegen_flags: <defaults>
</compile_context>

<pallas_src>
import numpy as np
import jax
import jax.numpy as jnp
from jax import lax
from jax.experimental import pallas as pl
from jax.experimental.pallas import tpu as pltpu

# ---------------- model sizes (small, consistent with the module) -----------
N_BATCH = 2          # batch
TOKENS = 50          # embedding_tokens
E_EMB = 16           # embedding_features (300 in paper)
L_SEQ = 8            # max question length
Q_FEAT = 32          # question_features / lstm hidden (1024 in paper)
C_VIS = 32           # vision_features (config.output_features)
HH = WW = 8          # spatial
S_SPATIAL = HH * WW
M_MID = 32           # attention mid_features (512 in paper)
GLIMPSES = 2
C_MID = 32           # classifier mid_features (1024 in paper)
N_ANS = 16           # config.max_answers
H4 = 4 * Q_FEAT      # fused LSTM gate width (= 128 lanes)


# ============================ fused Net kernel ===============================
def net_kernel(tok_ref, len_ref, emb_ref, wih_ref, whh_ref, b_ref,
               v_ref, wv_ref, wq_ref, bq_ref, wx_ref, bx_ref,
               w1_ref, b1_ref, w2_ref, b2_ref, out_ref, comb_ref):
    N, L, H, S, C, G = N_BATCH, L_SEQ, Q_FEAT, S_SPATIAL, C_VIS, GLIMPSES

    # ---------- text: embedding (one-hot matmul) + fused, unrolled LSTM ------
    tok = tok_ref[...]                                        # [L*N, 1] int32, time-major
    vocab = lax.broadcasted_iota(jnp.int32, (L * N, TOKENS), 1)
    one_hot = (vocab == tok).astype(jnp.float32)              # [L*N, TOKENS]
    x = jnp.tanh(jnp.dot(one_hot, emb_ref[...],
                         preferred_element_type=jnp.float32))  # [L*N, E]

    # hoisted input projection for all timesteps (one matmul, outside the loop)
    xproj = jnp.dot(x, wih_ref[...],
                    preferred_element_type=jnp.float32) + b_ref[...]  # [L*N, 4H]

    lens = len_ref[...]                                       # [N, 1] int32 (hoisted load)
    whh = whh_ref[...]                                        # [H, 4H]
    h = jnp.zeros((N, H), jnp.float32)
    c = jnp.zeros((N, H), jnp.float32)
    # L is a compile-time constant -> static loop == fully unrolled recurrence.
    for t in range(L):
        gates = xproj[t * N:(t + 1) * N, :] + jnp.dot(
            h, whh, preferred_element_type=jnp.float32)       # [N, 4H], order (i,f,o,g)
        ifo = jax.nn.sigmoid(gates[:, :3 * H])                # one wide sigmoid
        g_t = jnp.tanh(gates[:, 3 * H:])                      # one tanh
        i_t = ifo[:, :H]
        f_t = ifo[:, H:2 * H]
        o_t = ifo[:, 2 * H:]
        c_new = f_t * c + i_t * g_t
        h_new = o_t * jnp.tanh(c_new)
        m = t < lens                                          # packed-seq masking
        h = jnp.where(m, h_new, h)
        c = jnp.where(m, c_new, c)
    q_feat = c                                                # [N, Q] final cell state

    # ---------- vision: L2 normalize over channels + attention ---------------
    v = v_ref[...]                                            # [N*S, C] (channels-last)
    norm = jnp.sqrt(jnp.sum(v * v, axis=-1, keepdims=True))
    vn = v / (norm + 1e-8)

    vmid = jnp.dot(vn, wv_ref[...],
                   preferred_element_type=jnp.float32)        # [N*S, M] one full-tile matmul
    qmid = jnp.dot(q_feat, wq_ref[...],
                   preferred_element_type=jnp.float32) + bq_ref[...]   # [N, M]

    # per-batch softmax over spatial + weighted mean; results written straight
    # into the concatenated classifier input (single W1 matmul afterwards).
    for n in range(N):
        r0 = n * S
        x_n = jnp.maximum(vmid[r0:r0 + S, :] + qmid[n:n + 1, :], 0.0)  # [S, M]
        att_n = jnp.dot(x_n, wx_ref[...],
                        preferred_element_type=jnp.float32) + bx_ref[...]  # [S, G]
        att_n = att_n - jnp.max(att_n, axis=0, keepdims=True)
        e_n = jnp.exp(att_n)
        sm_n = e_n / jnp.sum(e_n, axis=0, keepdims=True)               # [S, G]
        vn_n = vn[r0:r0 + S, :]                                        # [S, C]
        for g in range(G):
            w_ng = jnp.sum(sm_n[:, g:g + 1] * vn_n, axis=0,
                           keepdims=True)                              # [1, C]
            comb_ref[n:n + 1, g * C:(g + 1) * C] = w_ng
    comb_ref[:, G * C:] = q_feat                                       # concat([v_w, q])

    # ---------- classifier + softmax over answers ----------------------------
    combined = comb_ref[...]                                           # [N, G*C+Q]
    hid = jnp.maximum(jnp.dot(combined, w1_ref[...],
                              preferred_element_type=jnp.float32) + b1_ref[...], 0.0)
    logits = jnp.dot(hid, w2_ref[...],
                     preferred_element_type=jnp.float32) + b2_ref[...]  # [N, A]
    logits = logits - jnp.max(logits, axis=-1, keepdims=True)
    e2 = jnp.exp(logits)
    out_ref[...] = e2 / jnp.sum(e2, axis=-1, keepdims=True)


def run_net(tok_tm, q_len_col, v_flat, p):
    return pl.pallas_call(
        net_kernel,
        out_shape=jax.ShapeDtypeStruct((N_BATCH, N_ANS), jnp.float32),
        scratch_shapes=[pltpu.VMEM((N_BATCH, GLIMPSES * C_VIS + Q_FEAT),
                                   jnp.float32)],
    )(tok_tm, q_len_col, p["emb"], p["Wih_p"], p["Whh_p"], p["b_p"],
      v_flat, p["Wv"], p["Wq"], p["bq"], p["Wx"], p["bx"],
      p["W1"], p["b1"], p["W2"], p["b2"])


# ============================ parameter init =================================
def xavier(key, shape):
    fan_in, fan_out = shape[-2], shape[-1]
    a = np.sqrt(6.0 / (fan_in + fan_out))
    return jax.random.uniform(key, shape, jnp.float32, -a, a)


def make_params(key):
    ks = jax.random.split(key, 8)
    p = {}
    p["emb"] = xavier(ks[0], (TOKENS, E_EMB))                     # embedding weight
    # per-gate LSTM weights (i, f, g, o) — used by the pure-JAX reference
    p["Wih4"] = xavier(ks[1], (4, E_EMB, Q_FEAT))
    p["Whh4"] = xavier(ks[2], (4, Q_FEAT, Q_FEAT))
    p["bih4"] = jnp.zeros((4, 1, Q_FEAT), jnp.float32)            # zeroed in __init__
    p["bhh4"] = jnp.zeros((4, 1, Q_FEAT), jnp.float32)
    # fused packing for the kernel, gate order (i, f, o, g): sigmoid covers
    # lanes [0, 3H), tanh covers [3H, 4H)
    order = (0, 1, 3, 2)
    p["Wih_p"] = jnp.concatenate([p["Wih4"][k] for k in order], axis=1)   # [E, 4H]
    p["Whh_p"] = jnp.concatenate([p["Whh4"][k] for k in order], axis=1)   # [H, 4H]
    p["b_p"] = jnp.concatenate([p["bih4"][k] + p["bhh4"][k] for k in order],
                               axis=1)                                    # [1, 4H]
    p["Wv"] = xavier(ks[3], (C_VIS, M_MID))                       # v_conv (1x1, no bias)
    p["Wq"] = xavier(ks[4], (Q_FEAT, M_MID))                      # q_lin
    p["bq"] = jnp.zeros((1, M_MID), jnp.float32)
    p["Wx"] = xavier(ks[5], (M_MID, GLIMPSES))                    # x_conv
    p["bx"] = jnp.zeros((1, GLIMPSES), jnp.float32)
    p["W1"] = xavier(ks[6], (GLIMPSES * C_VIS + Q_FEAT, C_MID))   # classifier lin1
    p["b1"] = jnp.zeros((1, C_MID), jnp.float32)
    p["W2"] = xavier(ks[7], (C_MID, N_ANS))                       # classifier lin2
    p["b2"] = jnp.zeros((1, N_ANS), jnp.float32)
    return p


# ============================ full forward ===================================
@jax.jit
def net_forward(v_nchw, q_tokens, q_len, params):
    N = v_nchw.shape[0]
    # glue (layout only): time-major token column + channels-last flat vision
    tok_tm = jnp.transpose(q_tokens).reshape(L_SEQ * N, 1).astype(jnp.int32)
    q_len_col = q_len.reshape(N, 1).astype(jnp.int32)
    v_flat = jnp.transpose(v_nchw, (0, 2, 3, 1)).reshape(N * S_SPATIAL, C_VIS)
    return run_net(tok_tm, q_len_col, v_flat, params)


# ============================ pure-JAX reference =============================
def reference_forward(v_nchw, q_tokens, q_len, p):
    N = v_nchw.shape[0]
    emb = p["emb"][q_tokens]
    x = jnp.tanh(emb)                                  # [N, L, E]
    h = jnp.zeros((N, Q_FEAT)); c = jnp.zeros((N, Q_FEAT))
    for t in range(L_SEQ):
        xt = x[:, t, :]
        g = [xt @ p["Wih4"][k] + h @ p["Whh4"][k] + p["bih4"][k] + p["bhh4"][k]
             for k in range(4)]
        i, f, gg, o = (jax.nn.sigmoid(g[0]), jax.nn.sigmoid(g[1]),
                       jnp.tanh(g[2]), jax.nn.sigmoid(g[3]))
        c_new = f * c + i * gg
        h_new = o * jnp.tanh(c_new)
        m = (t < q_len)[:, None]
        h = jnp.where(m, h_new, h); c = jnp.where(m, c_new, c)
    qf = c
    vn = v_nchw / (jnp.linalg.norm(v_nchw, axis=1, keepdims=True) + 1e-8)
    vns = jnp.transpose(vn, (0, 2, 3, 1)).reshape(N, S_SPATIAL, C_VIS)
    vmid = vns @ p["Wv"]
    qmid = qf @ p["Wq"] + p["bq"]
    xa = jnp.maximum(vmid + qmid[:, None, :], 0.0)
    att = xa @ p["Wx"] + p["bx"]
    att_sm = jax.nn.softmax(att, axis=1)
    weighted = jnp.einsum("nsg,nsc->ngc", att_sm, vns)
    combined = jnp.concatenate([weighted.reshape(N, -1), qf], axis=1)
    hid = jnp.maximum(combined @ p["W1"] + p["b1"], 0.0)
    logits = hid @ p["W2"] + p["b2"]
    return jax.nn.softmax(logits, axis=1)


# ============================ main ===========================================
if __name__ == "__main__":
    key = jax.random.PRNGKey(0)
    kp, kv, kq = jax.random.split(key, 3)
    params = make_params(kp)

    # inputs
    v = jax.random.normal(kv, (N_BATCH, C_VIS, HH, WW), jnp.float32)
    q_len = jnp.array([8, 6], dtype=jnp.int32)                  # sorted descending
    q_tokens = jax.random.randint(kq, (N_BATCH, L_SEQ), 1, TOKENS, jnp.int32)
    pos = jnp.arange(L_SEQ)[None, :]
    q_tokens = jnp.where(pos < q_len[:, None], q_tokens, 0)     # pad with idx 0

    out = net_forward(v, q_tokens, q_len, params)
    out = jax.block_until_ready(out)

    ref = reference_forward(v, q_tokens, q_len, params)
    np.testing.assert_allclose(np.asarray(out), np.asarray(ref),
                               rtol=2e-4, atol=2e-4)
    assert out.shape == (N_BATCH, N_ANS)
    assert np.allclose(np.asarray(out).sum(axis=1), 1.0, atol=1e-4)
    print("KERNEL_OK")
</pallas_src>

<mosaic_0001>
module attributes {stable_mosaic.version = 11 : i64} {
  func.func @net_kernel(%arg0: memref<16x1xi32, #tpu.memory_space<vmem>>, %arg1: memref<2x1xi32, #tpu.memory_space<vmem>>, %arg2: memref<50x16xf32, #tpu.memory_space<vmem>>, %arg3: memref<16x128xf32, #tpu.memory_space<vmem>>, %arg4: memref<32x128xf32, #tpu.memory_space<vmem>>, %arg5: memref<1x128xf32, #tpu.memory_space<vmem>>, %arg6: memref<128x32xf32, #tpu.memory_space<vmem>>, %arg7: memref<32x32xf32, #tpu.memory_space<vmem>>, %arg8: memref<32x32xf32, #tpu.memory_space<vmem>>, %arg9: memref<1x32xf32, #tpu.memory_space<vmem>>, %arg10: memref<32x2xf32, #tpu.memory_space<vmem>>, %arg11: memref<1x2xf32, #tpu.memory_space<vmem>>, %arg12: memref<96x32xf32, #tpu.memory_space<vmem>>, %arg13: memref<1x32xf32, #tpu.memory_space<vmem>>, %arg14: memref<32x16xf32, #tpu.memory_space<vmem>>, %arg15: memref<1x16xf32, #tpu.memory_space<vmem>>, %arg16: memref<2x16xf32, #tpu.memory_space<vmem>>, %arg17: memref<2x96xf32, #tpu.memory_space<vmem>>) attributes {dimension_semantics = [], scalar_prefetch = 0 : i64, scratch_operands = 1 : i64, tpu.core_type = #tpu.core_type<tc>} {
    %c0 = arith.constant 0 : index
    %c0_0 = arith.constant 0 : index
    %0 = vector.load %arg0[%c0, %c0_0] : memref<16x1xi32, #tpu.memory_space<vmem>>, vector<16x1xi32>
    %1 = tpu.iota {dimensions = array<i32: 1>} : vector<16x50xi32>
    %2 = vector.broadcast %0 : vector<16x1xi32> to vector<16x50xi32>
    %3 = arith.cmpi eq, %1, %2 : vector<16x50xi32>
    %4 = arith.extui %3 : vector<16x50xi1> to vector<16x50xi32>
    %5 = arith.sitofp %4 : vector<16x50xi32> to vector<16x50xf32>
    %c0_1 = arith.constant 0 : index
    %c0_2 = arith.constant 0 : index
    %6 = vector.load %arg2[%c0_1, %c0_2] : memref<50x16xf32, #tpu.memory_space<vmem>>, vector<50x16xf32>
    %cst = arith.constant dense<0.000000e+00> : vector<16x16xf32>
    %7 = tpu.matmul %5, %6, %cst {dimension_numbers = #tpu.dot_dimension_numbers<[1], [0], [0], [1], [0, 0, 1, 1], [], []>} : vector<16x50xf32>, vector<50x16xf32>, vector<16x16xf32> -> vector<16x16xf32>
    %8 = math.tanh %7 : vector<16x16xf32>
    %c0_3 = arith.constant 0 : index
    %c0_4 = arith.constant 0 : index
    %9 = vector.load %arg3[%c0_3, %c0_4] : memref<16x128xf32, #tpu.memory_space<vmem>>, vector<16x128xf32>
    %cst_5 = arith.constant dense<0.000000e+00> : vector<16x128xf32>
    %10 = tpu.matmul %8, %9, %cst_5 {dimension_numbers = #tpu.dot_dimension_numbers<[1], [0], [0], [1], [0, 0, 1, 1], [], []>} : vector<16x16xf32>, vector<16x128xf32>, vector<16x128xf32> -> vector<16x128xf32>
    %c0_6 = arith.constant 0 : index
    %c0_7 = arith.constant 0 : index
    %11 = vector.load %arg5[%c0_6, %c0_7] : memref<1x128xf32, #tpu.memory_space<vmem>>, vector<1x128xf32>
    %12 = vector.broadcast %11 : vector<1x128xf32> to vector<16x128xf32>
    %13 = arith.addf %10, %12 : vector<16x128xf32>
    %c0_8 = arith.constant 0 : index
    %c0_9 = arith.constant 0 : index
    %14 = vector.load %arg1[%c0_8, %c0_9] : memref<2x1xi32, #tpu.memory_space<vmem>>, vector<2x1xi32>
    %c0_10 = arith.constant 0 : index
    %c0_11 = arith.constant 0 : index
    %15 = vector.load %arg4[%c0_10, %c0_11] : memref<32x128xf32, #tpu.memory_space<vmem>>, vector<32x128xf32>
    %cst_12 = arith.constant 0.000000e+00 : f32
    %16 = vector.broadcast %cst_12 : f32 to vector<2x32xf32>
    %cst_13 = arith.constant 0.000000e+00 : f32
    %17 = vector.broadcast %cst_13 : f32 to vector<2x32xf32>
    %18 = vector.extract_strided_slice %13 {offsets = [0, 0], sizes = [2, 128], strides = [1, 1]} : vector<16x128xf32> to vector<2x128xf32>
    %cst_14 = arith.constant dense<0.000000e+00> : vector<2x128xf32>
    %19 = tpu.matmul %16, %15, %cst_14 {dimension_numbers = #tpu.dot_dimension_numbers<[1], [0], [0], [1], [0, 0, 1, 1], [], []>} : vector<2x32xf32>, vector<32x128xf32>, vector<2x128xf32> -> vector<2x128xf32>
    %20 = arith.addf %18, %19 : vector<2x128xf32>
    %21 = vector.extract_strided_slice %20 {offsets = [0, 0], sizes = [2, 96], strides = [1, 1]} : vector<2x128xf32> to vector<2x96xf32>
    %22 = arith.negf %21 : vector<2x96xf32>
    %23 = math.exp %22 : vector<2x96xf32>
    %cst_15 = arith.constant 1.000000e+00 : f32
    %24 = vector.broadcast %cst_15 : f32 to vector<2x96xf32>
    %25 = arith.addf %24, %23 : vector<2x96xf32>
    %26 = arith.divf %24, %25 : vector<2x96xf32>
    %27 = vector.extract_strided_slice %20 {offsets = [0, 96], sizes = [2, 32], strides = [1, 1]} : vector<2x128xf32> to vector<2x32xf32>
    %28 = math.tanh %27 : vector<2x32xf32>
    %29 = vector.extract_strided_slice %26 {offsets = [0, 0], sizes = [2, 32], strides = [1, 1]} : vector<2x96xf32> to vector<2x32xf32>
    %30 = vector.extract_strided_slice %26 {offsets = [0, 32], sizes = [2, 32], strides = [1, 1]} : vector<2x96xf32> to vector<2x32xf32>
    %31 = vector.extract_strided_slice %26 {offsets = [0, 64], sizes = [2, 32], strides = [1, 1]} : vector<2x96xf32> to vector<2x32xf32>
    %32 = arith.mulf %30, %17 : vector<2x32xf32>
    %33 = arith.mulf %29, %28 : vector<2x32xf32>
    %34 = arith.addf %32, %33 : vector<2x32xf32>
    %35 = math.tanh %34 : vector<2x32xf32>
    %36 = arith.mulf %31, %35 : vector<2x32xf32>
    %c0_i32 = arith.constant 0 : i32
    %37 = vector.broadcast %c0_i32 : i32 to vector<2x1xi32>
    %38 = arith.cmpi sgt, %14, %37 : vector<2x1xi32>
    %39 = vector.shape_cast %38 : vector<2x1xi1> to vector<2x1xi1>
    %40 = vector.broadcast %39 : vector<2x1xi1> to vector<2x32xi1>
    %41 = arith.select %40, %36, %16 : vector<2x32xi1>, vector<2x32xf32>
    %42 = vector.shape_cast %38 : vector<2x1xi1> to vector<2x1xi1>
    %43 = vector.broadcast %42 : vector<2x1xi1> to vector<2x32xi1>
    %44 = arith.select %43, %34, %17 : vector<2x32xi1>, vector<2x32xf32>
    %45 = vector.extract_strided_slice %13 {offsets = [2, 0], sizes = [2, 128], strides = [1, 1]} : vector<16x128xf32> to vector<2x128xf32>
    %cst_16 = arith.constant dense<0.000000e+00> : vector<2x128xf32>
    %46 = tpu.matmul %41, %15, %cst_16 {dimension_numbers = #tpu.dot_dimension_numbers<[1], [0], [0], [1], [0, 0, 1, 1], [], []>} : vector<2x32xf32>, vector<32x128xf32>, vector<2x128xf32> -> vector<2x128xf32>
    %47 = arith.addf %45, %46 : vector<2x128xf32>
    %48 = vector.extract_strided_slice %47 {offsets = [0, 0], sizes = [2, 96], strides = [1, 1]} : vector<2x128xf32> to vector<2x96xf32>
    %49 = arith.negf %48 : vector<2x96xf32>
    %50 = math.exp %49 : vector<2x96xf32>
    %cst_17 = arith.constant 1.000000e+00 : f32
    %51 = vector.broadcast %cst_17 : f32 to vector<2x96xf32>
    %52 = arith.addf %51, %50 : vector<2x96xf32>
    %53 = arith.divf %51, %52 : vector<2x96xf32>
    %54 = vector.extract_strided_slice %47 {offsets = [0, 96], sizes = [2, 32], strides = [1, 1]} : vector<2x128xf32> to vector<2x32xf32>
    %55 = math.tanh %54 : vector<2x32xf32>
    %56 = vector.extract_strided_slice %53 {offsets = [0, 0], sizes = [2, 32], strides = [1, 1]} : vector<2x96xf32> to vector<2x32xf32>
    %57 = vector.extract_strided_slice %53 {offsets = [0, 32], sizes = [2, 32], strides = [1, 1]} : vector<2x96xf32> to vector<2x32xf32>
    %58 = vector.extract_strided_slice %53 {offsets = [0, 64], sizes = [2, 32], strides = [1, 1]} : vector<2x96xf32> to vector<2x32xf32>
    %59 = arith.mulf %57, %44 : vector<2x32xf32>
    %60 = arith.mulf %56, %55 : vector<2x32xf32>
    %61 = arith.addf %59, %60 : vector<2x32xf32>
    %62 = math.tanh %61 : vector<2x32xf32>
    %63 = arith.mulf %58, %62 : vector<2x32xf32>
    %c1_i32 = arith.constant 1 : i32
    %64 = vector.broadcast %c1_i32 : i32 to vector<2x1xi32>
    %65 = arith.cmpi sgt, %14, %64 : vector<2x1xi32>
    %66 = vector.shape_cast %65 : vector<2x1xi1> to vector<2x1xi1>
    %67 = vector.broadcast %66 : vector<2x1xi1> to vector<2x32xi1>
    %68 = arith.select %67, %63, %41 : vector<2x32xi1>, vector<2x32xf32>
    %69 = vector.shape_cast %65 : vector<2x1xi1> to vector<2x1xi1>
    %70 = vector.broadcast %69 : vector<2x1xi1> to vector<2x32xi1>
    %71 = arith.select %70, %61, %44 : vector<2x32xi1>, vector<2x32xf32>
    %72 = vector.extract_strided_slice %13 {offsets = [4, 0], sizes = [2, 128], strides = [1, 1]} : vector<16x128xf32> to vector<2x128xf32>
    %cst_18 = arith.constant dense<0.000000e+00> : vector<2x128xf32>
    %73 = tpu.matmul %68, %15, %cst_18 {dimension_numbers = #tpu.dot_dimension_numbers<[1], [0], [0], [1], [0, 0, 1, 1], [], []>} : vector<2x32xf32>, vector<32x128xf32>, vector<2x128xf32> -> vector<2x128xf32>
    %74 = arith.addf %72, %73 : vector<2x128xf32>
    %75 = vector.extract_strided_slice %74 {offsets = [0, 0], sizes = [2, 96], strides = [1, 1]} : vector<2x128xf32> to vector<2x96xf32>
    %76 = arith.negf %75 : vector<2x96xf32>
    %77 = math.exp %76 : vector<2x96xf32>
    %cst_19 = arith.constant 1.000000e+00 : f32
    %78 = vector.broadcast %cst_19 : f32 to vector<2x96xf32>
    %79 = arith.addf %78, %77 : vector<2x96xf32>
    %80 = arith.divf %78, %79 : vector<2x96xf32>
    %81 = vector.extract_strided_slice %74 {offsets = [0, 96], sizes = [2, 32], strides = [1, 1]} : vector<2x128xf32> to vector<2x32xf32>
    %82 = math.tanh %81 : vector<2x32xf32>
    %83 = vector.extract_strided_slice %80 {offsets = [0, 0], sizes = [2, 32], strides = [1, 1]} : vector<2x96xf32> to vector<2x32xf32>
    %84 = vector.extract_strided_slice %80 {offsets = [0, 32], sizes = [2, 32], strides = [1, 1]} : vector<2x96xf32> to vector<2x32xf32>
    %85 = vector.extract_strided_slice %80 {offsets = [0, 64], sizes = [2, 32], strides = [1, 1]} : vector<2x96xf32> to vector<2x32xf32>
    %86 = arith.mulf %84, %71 : vector<2x32xf32>
    %87 = arith.mulf %83, %82 : vector<2x32xf32>
    %88 = arith.addf %86, %87 : vector<2x32xf32>
    %89 = math.tanh %88 : vector<2x32xf32>
    %90 = arith.mulf %85, %89 : vector<2x32xf32>
    %c2_i32 = arith.constant 2 : i32
    %91 = vector.broadcast %c2_i32 : i32 to vector<2x1xi32>
    %92 = arith.cmpi sgt, %14, %91 : vector<2x1xi32>
    %93 = vector.shape_cast %92 : vector<2x1xi1> to vector<2x1xi1>
    %94 = vector.broadcast %93 : vector<2x1xi1> to vector<2x32xi1>
    %95 = arith.select %94, %90, %68 : vector<2x32xi1>, vector<2x32xf32>
    %96 = vector.shape_cast %92 : vector<2x1xi1> to vector<2x1xi1>
    %97 = vector.broadcast %96 : vector<2x1xi1> to vector<2x32xi1>
    %98 = arith.select %97, %88, %71 : vector<2x32xi1>, vector<2x32xf32>
    %99 = vector.extract_strided_slice %13 {offsets = [6, 0], sizes = [2, 128], strides = [1, 1]} : vector<16x128xf32> to vector<2x128xf32>
    %cst_20 = arith.constant dense<0.000000e+00> : vector<2x128xf32>
    %100 = tpu.matmul %95, %15, %cst_20 {dimension_numbers = #tpu.dot_dimension_numbers<[1], [0], [0], [1], [0, 0, 1, 1], [], []>} : vector<2x32xf32>, vector<32x128xf32>, vector<2x128xf32> -> vector<2x128xf32>
    %101 = arith.addf %99, %100 : vector<2x128xf32>
    %102 = vector.extract_strided_slice %101 {offsets = [0, 0], sizes = [2, 96], strides = [1, 1]} : vector<2x128xf32> to vector<2x96xf32>
    %103 = arith.negf %102 : vector<2x96xf32>
    %104 = math.exp %103 : vector<2x96xf32>
    %cst_21 = arith.constant 1.000000e+00 : f32
    %105 = vector.broadcast %cst_21 : f32 to vector<2x96xf32>
    %106 = arith.addf %105, %104 : vector<2x96xf32>
    %107 = arith.divf %105, %106 : vector<2x96xf32>
    %108 = vector.extract_strided_slice %101 {offsets = [0, 96], sizes = [2, 32], strides = [1, 1]} : vector<2x128xf32> to vector<2x32xf32>
    %109 = math.tanh %108 : vector<2x32xf32>
    %110 = vector.extract_strided_slice %107 {offsets = [0, 0], sizes = [2, 32], strides = [1, 1]} : vector<2x96xf32> to vector<2x32xf32>
    %111 = vector.extract_strided_slice %107 {offsets = [0, 32], sizes = [2, 32], strides = [1, 1]} : vector<2x96xf32> to vector<2x32xf32>
    %112 = vector.extract_strided_slice %107 {offsets = [0, 64], sizes = [2, 32], strides = [1, 1]} : vector<2x96xf32> to vector<2x32xf32>
    %113 = arith.mulf %111, %98 : vector<2x32xf32>
    %114 = arith.mulf %110, %109 : vector<2x32xf32>
    %115 = arith.addf %113, %114 : vector<2x32xf32>
    %116 = math.tanh %115 : vector<2x32xf32>
    %117 = arith.mulf %112, %116 : vector<2x32xf32>
    %c3_i32 = arith.constant 3 : i32
    %118 = vector.broadcast %c3_i32 : i32 to vector<2x1xi32>
    %119 = arith.cmpi sgt, %14, %118 : vector<2x1xi32>
    %120 = vector.shape_cast %119 : vector<2x1xi1> to vector<2x1xi1>
    %121 = vector.broadcast %120 : vector<2x1xi1> to vector<2x32xi1>
    %122 = arith.select %121, %117, %95 : vector<2x32xi1>, vector<2x32xf32>
    %123 = vector.shape_cast %119 : vector<2x1xi1> to vector<2x1xi1>
    %124 = vector.broadcast %123 : vector<2x1xi1> to vector<2x32xi1>
    %125 = arith.select %124, %115, %98 : vector<2x32xi1>, vector<2x32xf32>
    %126 = vector.extract_strided_slice %13 {offsets = [8, 0], sizes = [2, 128], strides = [1, 1]} : vector<16x128xf32> to vector<2x128xf32>
    %cst_22 = arith.constant dense<0.000000e+00> : vector<2x128xf32>
    %127 = tpu.matmul %122, %15, %cst_22 {dimension_numbers = #tpu.dot_dimension_numbers<[1], [0], [0], [1], [0, 0, 1, 1], [], []>} : vector<2x32xf32>, vector<32x128xf32>, vector<2x128xf32> -> vector<2x128xf32>
    %128 = arith.addf %126, %127 : vector<2x128xf32>
    %129 = vector.extract_strided_slice %128 {offsets = [0, 0], sizes = [2, 96], strides = [1, 1]} : vector<2x128xf32> to vector<2x96xf32>
    %130 = arith.negf %129 : vector<2x96xf32>
    %131 = math.exp %130 : vector<2x96xf32>
    %cst_23 = arith.constant 1.000000e+00 : f32
    %132 = vector.broadcast %cst_23 : f32 to vector<2x96xf32>
    %133 = arith.addf %132, %131 : vector<2x96xf32>
    %134 = arith.divf %132, %133 : vector<2x96xf32>
    %135 = vector.extract_strided_slice %128 {offsets = [0, 96], sizes = [2, 32], strides = [1, 1]} : vector<2x128xf32> to vector<2x32xf32>
    %136 = math.tanh %135 : vector<2x32xf32>
    %137 = vector.extract_strided_slice %134 {offsets = [0, 0], sizes = [2, 32], strides = [1, 1]} : vector<2x96xf32> to vector<2x32xf32>
    %138 = vector.extract_strided_slice %134 {offsets = [0, 32], sizes = [2, 32], strides = [1, 1]} : vector<2x96xf32> to vector<2x32xf32>
    %139 = vector.extract_strided_slice %134 {offsets = [0, 64], sizes = [2, 32], strides = [1, 1]} : vector<2x96xf32> to vector<2x32xf32>
    %140 = arith.mulf %138, %125 : vector<2x32xf32>
    %141 = arith.mulf %137, %136 : vector<2x32xf32>
    %142 = arith.addf %140, %141 : vector<2x32xf32>
    %143 = math.tanh %142 : vector<2x32xf32>
    %144 = arith.mulf %139, %143 : vector<2x32xf32>
    %c4_i32 = arith.constant 4 : i32
    %145 = vector.broadcast %c4_i32 : i32 to vector<2x1xi32>
    %146 = arith.cmpi sgt, %14, %145 : vector<2x1xi32>
    %147 = vector.shape_cast %146 : vector<2x1xi1> to vector<2x1xi1>
    %148 = vector.broadcast %147 : vector<2x1xi1> to vector<2x32xi1>
    %149 = arith.select %148, %144, %122 : vector<2x32xi1>, vector<2x32xf32>
    %150 = vector.shape_cast %146 : vector<2x1xi1> to vector<2x1xi1>
    %151 = vector.broadcast %150 : vector<2x1xi1> to vector<2x32xi1>
    %152 = arith.select %151, %142, %125 : vector<2x32xi1>, vector<2x32xf32>
    %153 = vector.extract_strided_slice %13 {offsets = [10, 0], sizes = [2, 128], strides = [1, 1]} : vector<16x128xf32> to vector<2x128xf32>
    %cst_24 = arith.constant dense<0.000000e+00> : vector<2x128xf32>
    %154 = tpu.matmul %149, %15, %cst_24 {dimension_numbers = #tpu.dot_dimension_numbers<[1], [0], [0], [1], [0, 0, 1, 1], [], []>} : vector<2x32xf32>, vector<32x128xf32>, vector<2x128xf32> -> vector<2x128xf32>
    %155 = arith.addf %153, %154 : vector<2x128xf32>
    %156 = vector.extract_strided_slice %155 {offsets = [0, 0], sizes = [2, 96], strides = [1, 1]} : vector<2x128xf32> to vector<2x96xf32>
    %157 = arith.negf %156 : vector<2x96xf32>
    %158 = math.exp %157 : vector<2x96xf32>
    %cst_25 = arith.constant 1.000000e+00 : f32
    %159 = vector.broadcast %cst_25 : f32 to vector<2x96xf32>
    %160 = arith.addf %159, %158 : vector<2x96xf32>
    %161 = arith.divf %159, %160 : vector<2x96xf32>
    %162 = vector.extract_strided_slice %155 {offsets = [0, 96], sizes = [2, 32], strides = [1, 1]} : vector<2x128xf32> to vector<2x32xf32>
    %163 = math.tanh %162 : vector<2x32xf32>
    %164 = vector.extract_strided_slice %161 {offsets = [0, 0], sizes = [2, 32], strides = [1, 1]} : vector<2x96xf32> to vector<2x32xf32>
    %165 = vector.extract_strided_slice %161 {offsets = [0, 32], sizes = [2, 32], strides = [1, 1]} : vector<2x96xf32> to vector<2x32xf32>
    %166 = vector.extract_strided_slice %161 {offsets = [0, 64], sizes = [2, 32], strides = [1, 1]} : vector<2x96xf32> to vector<2x32xf32>
    %167 = arith.mulf %165, %152 : vector<2x32xf32>
    %168 = arith.mulf %164, %163 : vector<2x32xf32>
    %169 = arith.addf %167, %168 : vector<2x32xf32>
    %170 = math.tanh %169 : vector<2x32xf32>
    %171 = arith.mulf %166, %170 : vector<2x32xf32>
    %c5_i32 = arith.constant 5 : i32
    %172 = vector.broadcast %c5_i32 : i32 to vector<2x1xi32>
    %173 = arith.cmpi sgt, %14, %172 : vector<2x1xi32>
    %174 = vector.shape_cast %173 : vector<2x1xi1> to vector<2x1xi1>
    %175 = vector.broadcast %174 : vector<2x1xi1> to vector<2x32xi1>
    %176 = arith.select %175, %171, %149 : vector<2x32xi1>, vector<2x32xf32>
    %177 = vector.shape_cast %173 : vector<2x1xi1> to vector<2x1xi1>
    %178 = vector.broadcast %177 : vector<2x1xi1> to vector<2x32xi1>
    %179 = arith.select %178, %169, %152 : vector<2x32xi1>, vector<2x32xf32>
    %180 = vector.extract_strided_slice %13 {offsets = [12, 0], sizes = [2, 128], strides = [1, 1]} : vector<16x128xf32> to vector<2x128xf32>
    %cst_26 = arith.constant dense<0.000000e+00> : vector<2x128xf32>
    %181 = tpu.matmul %176, %15, %cst_26 {dimension_numbers = #tpu.dot_dimension_numbers<[1], [0], [0], [1], [0, 0, 1, 1], [], []>} : vector<2x32xf32>, vector<32x128xf32>, vector<2x128xf32> -> vector<2x128xf32>
    %182 = arith.addf %180, %181 : vector<2x128xf32>
    %183 = vector.extract_strided_slice %182 {offsets = [0, 0], sizes = [2, 96], strides = [1, 1]} : vector<2x128xf32> to vector<2x96xf32>
    %184 = arith.negf %183 : vector<2x96xf32>
    %185 = math.exp %184 : vector<2x96xf32>
    %cst_27 = arith.constant 1.000000e+00 : f32
    %186 = vector.broadcast %cst_27 : f32 to vector<2x96xf32>
    %187 = arith.addf %186, %185 : vector<2x96xf32>
    %188 = arith.divf %186, %187 : vector<2x96xf32>
    %189 = vector.extract_strided_slice %182 {offsets = [0, 96], sizes = [2, 32], strides = [1, 1]} : vector<2x128xf32> to vector<2x32xf32>
    %190 = math.tanh %189 : vector<2x32xf32>
    %191 = vector.extract_strided_slice %188 {offsets = [0, 0], sizes = [2, 32], strides = [1, 1]} : vector<2x96xf32> to vector<2x32xf32>
    %192 = vector.extract_strided_slice %188 {offsets = [0, 32], sizes = [2, 32], strides = [1, 1]} : vector<2x96xf32> to vector<2x32xf32>
    %193 = vector.extract_strided_slice %188 {offsets = [0, 64], sizes = [2, 32], strides = [1, 1]} : vector<2x96xf32> to vector<2x32xf32>
    %194 = arith.mulf %192, %179 : vector<2x32xf32>
    %195 = arith.mulf %191, %190 : vector<2x32xf32>
    %196 = arith.addf %194, %195 : vector<2x32xf32>
    %197 = math.tanh %196 : vector<2x32xf32>
    %198 = arith.mulf %193, %197 : vector<2x32xf32>
    %c6_i32 = arith.constant 6 : i32
    %199 = vector.broadcast %c6_i32 : i32 to vector<2x1xi32>
    %200 = arith.cmpi sgt, %14, %199 : vector<2x1xi32>
    %201 = vector.shape_cast %200 : vector<2x1xi1> to vector<2x1xi1>
    %202 = vector.broadcast %201 : vector<2x1xi1> to vector<2x32xi1>
    %203 = arith.select %202, %198, %176 : vector<2x32xi1>, vector<2x32xf32>
    %204 = vector.shape_cast %200 : vector<2x1xi1> to vector<2x1xi1>
    %205 = vector.broadcast %204 : vector<2x1xi1> to vector<2x32xi1>
    %206 = arith.select %205, %196, %179 : vector<2x32xi1>, vector<2x32xf32>
    %207 = vector.extract_strided_slice %13 {offsets = [14, 0], sizes = [2, 128], strides = [1, 1]} : vector<16x128xf32> to vector<2x128xf32>
    %cst_28 = arith.constant dense<0.000000e+00> : vector<2x128xf32>
    %208 = tpu.matmul %203, %15, %cst_28 {dimension_numbers = #tpu.dot_dimension_numbers<[1], [0], [0], [1], [0, 0, 1, 1], [], []>} : vector<2x32xf32>, vector<32x128xf32>, vector<2x128xf32> -> vector<2x128xf32>
    %209 = arith.addf %207, %208 : vector<2x128xf32>
    %210 = vector.extract_strided_slice %209 {offsets = [0, 0], sizes = [2, 96], strides = [1, 1]} : vector<2x128xf32> to vector<2x96xf32>
    %211 = arith.negf %210 : vector<2x96xf32>
    %212 = math.exp %211 : vector<2x96xf32>
    %cst_29 = arith.constant 1.000000e+00 : f32
    %213 = vector.broadcast %cst_29 : f32 to vector<2x96xf32>
    %214 = arith.addf %213, %212 : vector<2x96xf32>
    %215 = arith.divf %213, %214 : vector<2x96xf32>
    %216 = vector.extract_strided_slice %209 {offsets = [0, 96], sizes = [2, 32], strides = [1, 1]} : vector<2x128xf32> to vector<2x32xf32>
    %217 = math.tanh %216 : vector<2x32xf32>
    %218 = vector.extract_strided_slice %215 {offsets = [0, 0], sizes = [2, 32], strides = [1, 1]} : vector<2x96xf32> to vector<2x32xf32>
    %219 = vector.extract_strided_slice %215 {offsets = [0, 32], sizes = [2, 32], strides = [1, 1]} : vector<2x96xf32> to vector<2x32xf32>
    %220 = arith.mulf %219, %206 : vector<2x32xf32>
    %221 = arith.mulf %218, %217 : vector<2x32xf32>
    %222 = arith.addf %220, %221 : vector<2x32xf32>
    %c7_i32 = arith.constant 7 : i32
    %223 = vector.broadcast %c7_i32 : i32 to vector<2x1xi32>
    %224 = arith.cmpi sgt, %14, %223 : vector<2x1xi32>
    %225 = vector.shape_cast %224 : vector<2x1xi1> to vector<2x1xi1>
    %226 = vector.broadcast %225 : vector<2x1xi1> to vector<2x32xi1>
    %227 = arith.select %226, %222, %206 : vector<2x32xi1>, vector<2x32xf32>
    %c0_30 = arith.constant 0 : index
    %c0_31 = arith.constant 0 : index
    %228 = vector.load %arg6[%c0_30, %c0_31] : memref<128x32xf32, #tpu.memory_space<vmem>>, vector<128x32xf32>
    %229 = arith.mulf %228, %228 : vector<128x32xf32>
    %cst_32 = arith.constant dense<0.000000e+00> : vector<128xf32>
    %230 = vector.multi_reduction <add>, %229, %cst_32 [1] : vector<128x32xf32> to vector<128xf32>
    %231 = vector.shape_cast %230 : vector<128xf32> to vector<128x1xf32>
    %232 = math.sqrt %231 : vector<128x1xf32>
    %cst_33 = arith.constant 9.99999993E-9 : f32
    %233 = vector.broadcast %cst_33 : f32 to vector<128x1xf32>
    %234 = arith.addf %232, %233 : vector<128x1xf32>
    %235 = vector.broadcast %234 : vector<128x1xf32> to vector<128x32xf32>
    %236 = arith.divf %228, %235 : vector<128x32xf32>
    %c0_34 = arith.constant 0 : index
    %c0_35 = arith.constant 0 : index
    %237 = vector.load %arg7[%c0_34, %c0_35] : memref<32x32xf32, #tpu.memory_space<vmem>>, vector<32x32xf32>
    %cst_36 = arith.constant dense<0.000000e+00> : vector<128x32xf32>
    %238 = tpu.matmul %236, %237, %cst_36 {dimension_numbers = #tpu.dot_dimension_numbers<[1], [0], [0], [1], [0, 0, 1, 1], [], []>} : vector<128x32xf32>, vector<32x32xf32>, vector<128x32xf32> -> vector<128x32xf32>
    %c0_37 = arith.constant 0 : index
    %c0_38 = arith.constant 0 : index
    %239 = vector.load %arg8[%c0_37, %c0_38] : memref<32x32xf32, #tpu.memory_space<vmem>>, vector<32x32xf32>
    %cst_39 = arith.constant dense<0.000000e+00> : vector<2x32xf32>
    %240 = tpu.matmul %227, %239, %cst_39 {dimension_numbers = #tpu.dot_dimension_numbers<[1], [0], [0], [1], [0, 0, 1, 1], [], []>} : vector<2x32xf32>, vector<32x32xf32>, vector<2x32xf32> -> vector<2x32xf32>
    %c0_40 = arith.constant 0 : index
    %c0_41 = arith.constant 0 : index
    %241 = vector.load %arg9[%c0_40, %c0_41] : memref<1x32xf32, #tpu.memory_space<vmem>>, vector<1x32xf32>
    %242 = vector.broadcast %241 : vector<1x32xf32> to vector<2x32xf32>
    %243 = arith.addf %240, %242 : vector<2x32xf32>
    %244 = vector.extract_strided_slice %238 {offsets = [0, 0], sizes = [64, 32], strides = [1, 1]} : vector<128x32xf32> to vector<64x32xf32>
    %245 = vector.extract_strided_slice %243 {offsets = [0, 0], sizes = [1, 32], strides = [1, 1]} : vector<2x32xf32> to vector<1x32xf32>
    %246 = vector.broadcast %245 : vector<1x32xf32> to vector<64x32xf32>
    %247 = arith.addf %244, %246 : vector<64x32xf32>
    %cst_42 = arith.constant 0.000000e+00 : f32
    %248 = vector.broadcast %cst_42 : f32 to vector<64x32xf32>
    %249 = arith.maximumf %247, %248 : vector<64x32xf32>
    %c0_43 = arith.constant 0 : index
    %c0_44 = arith.constant 0 : index
    %250 = vector.load %arg10[%c0_43, %c0_44] : memref<32x2xf32, #tpu.memory_space<vmem>>, vector<32x2xf32>
    %cst_45 = arith.constant dense<0.000000e+00> : vector<64x2xf32>
    %251 = tpu.matmul %249, %250, %cst_45 {dimension_numbers = #tpu.dot_dimension_numbers<[1], [0], [0], [1], [0, 0, 1, 1], [], []>} : vector<64x32xf32>, vector<32x2xf32>, vector<64x2xf32> -> vector<64x2xf32>
    %c0_46 = arith.constant 0 : index
    %c0_47 = arith.constant 0 : index
    %252 = vector.load %arg11[%c0_46, %c0_47] : memref<1x2xf32, #tpu.memory_space<vmem>>, vector<1x2xf32>
    %253 = vector.broadcast %252 : vector<1x2xf32> to vector<64x2xf32>
    %254 = arith.addf %251, %253 : vector<64x2xf32>
    %cst_48 = arith.constant dense<0xFF800000> : vector<2xf32>
    %255 = vector.multi_reduction <maximumf>, %254, %cst_48 [0] : vector<64x2xf32> to vector<2xf32>
    %256 = vector.shape_cast %255 : vector<2xf32> to vector<1x2xf32>
    %257 = vector.broadcast %256 : vector<1x2xf32> to vector<64x2xf32>
    %258 = arith.subf %254, %257 : vector<64x2xf32>
    %259 = math.exp %258 : vector<64x2xf32>
    %cst_49 = arith.constant dense<0.000000e+00> : vector<2xf32>
    %260 = vector.multi_reduction <add>, %259, %cst_49 [0] : vector<64x2xf32> to vector<2xf32>
    %261 = vector.shape_cast %260 : vector<2xf32> to vector<1x2xf32>
    %262 = vector.broadcast %261 : vector<1x2xf32> to vector<64x2xf32>
    %263 = arith.divf %259, %262 : vector<64x2xf32>
    %264 = vector.extract_strided_slice %236 {offsets = [0, 0], sizes = [64, 32], strides = [1, 1]} : vector<128x32xf32> to vector<64x32xf32>
    %265 = vector.extract_strided_slice %263 {offsets = [0, 0], sizes = [64, 1], strides = [1, 1]} : vector<64x2xf32> to vector<64x1xf32>
    %266 = vector.broadcast %265 : vector<64x1xf32> to vector<64x32xf32>
    %267 = arith.mulf %266, %264 : vector<64x32xf32>
    %cst_50 = arith.constant dense<0.000000e+00> : vector<32xf32>
    %268 = vector.multi_reduction <add>, %267, %cst_50 [0] : vector<64x32xf32> to vector<32xf32>
    %269 = vector.shape_cast %268 : vector<32xf32> to vector<1x32xf32>
    %c0_51 = arith.constant 0 : index
    %c0_52 = arith.constant 0 : index
    %270 = vector.load %arg17[%c0_51, %c0_52] : memref<2x96xf32, #tpu.memory_space<vmem>>, vector<1x32xf32>
    tpu.vector_store %arg17[%c0_51, %c0_52], %269 {strides = array<i32>} : memref<2x96xf32, #tpu.memory_space<vmem>>, vector<1x32xf32>,
    %271 = vector.extract_strided_slice %263 {offsets = [0, 1], sizes = [64, 1], strides = [1, 1]} : vector<64x2xf32> to vector<64x1xf32>
    %272 = vector.broadcast %271 : vector<64x1xf32> to vector<64x32xf32>
    %273 = arith.mulf %272, %264 : vector<64x32xf32>
    %cst_53 = arith.constant dense<0.000000e+00> : vector<32xf32>
    %274 = vector.multi_reduction <add>, %273, %cst_53 [0] : vector<64x32xf32> to vector<32xf32>
    %275 = vector.shape_cast %274 : vector<32xf32> to vector<1x32xf32>
    %c0_54 = arith.constant 0 : index
    %c32 = arith.constant 32 : index
    %276 = vector.load %arg17[%c0_54, %c32] : memref<2x96xf32, #tpu.memory_space<vmem>>, vector<1x32xf32>
    tpu.vector_store %arg17[%c0_54, %c32], %275 {strides = array<i32>} : memref<2x96xf32, #tpu.memory_space<vmem>>, vector<1x32xf32>,
    %277 = vector.extract_strided_slice %238 {offsets = [64, 0], sizes = [64, 32], strides = [1, 1]} : vector<128x32xf32> to vector<64x32xf32>
    %278 = vector.extract_strided_slice %243 {offsets = [1, 0], sizes = [1, 32], strides = [1, 1]} : vector<2x32xf32> to vector<1x32xf32>
    %279 = vector.broadcast %278 : vector<1x32xf32> to vector<64x32xf32>
    %280 = arith.addf %277, %279 : vector<64x32xf32>
    %cst_55 = arith.constant 0.000000e+00 : f32
    %281 = vector.broadcast %cst_55 : f32 to vector<64x32xf32>
    %282 = arith.maximumf %280, %281 : vector<64x32xf32>
    %c0_56 = arith.constant 0 : index
    %c0_57 = arith.constant 0 : index
    %283 = vector.load %arg10[%c0_56, %c0_57] : memref<32x2xf32, #tpu.memory_space<vmem>>, vector<32x2xf32>
    %cst_58 = arith.constant dense<0.000000e+00> : vector<64x2xf32>
    %284 = tpu.matmul %282, %283, %cst_58 {dimension_numbers = #tpu.dot_dimension_numbers<[1], [0], [0], [1], [0, 0, 1, 1], [], []>} : vector<64x32xf32>, vector<32x2xf32>, vector<64x2xf32> -> vector<64x2xf32>
    %c0_59 = arith.constant 0 : index
    %c0_60 = arith.constant 0 : index
    %285 = vector.load %arg11[%c0_59, %c0_60] : memref<1x2xf32, #tpu.memory_space<vmem>>, vector<1x2xf32>
    %286 = vector.broadcast %285 : vector<1x2xf32> to vector<64x2xf32>
    %287 = arith.addf %284, %286 : vector<64x2xf32>
    %cst_61 = arith.constant dense<0xFF800000> : vector<2xf32>
    %288 = vector.multi_reduction <maximumf>, %287, %cst_61 [0] : vector<64x2xf32> to vector<2xf32>
    %289 = vector.shape_cast %288 : vector<2xf32> to vector<1x2xf32>
    %290 = vector.broadcast %289 : vector<1x2xf32> to vector<64x2xf32>
    %291 = arith.subf %287, %290 : vector<64x2xf32>
    %292 = math.exp %291 : vector<64x2xf32>
    %cst_62 = arith.constant dense<0.000000e+00> : vector<2xf32>
    %293 = vector.multi_reduction <add>, %292, %cst_62 [0] : vector<64x2xf32> to vector<2xf32>
    %294 = vector.shape_cast %293 : vector<2xf32> to vector<1x2xf32>
    %295 = vector.broadcast %294 : vector<1x2xf32> to vector<64x2xf32>
    %296 = arith.divf %292, %295 : vector<64x2xf32>
    %297 = vector.extract_strided_slice %236 {offsets = [64, 0], sizes = [64, 32], strides = [1, 1]} : vector<128x32xf32> to vector<64x32xf32>
    %298 = vector.extract_strided_slice %296 {offsets = [0, 0], sizes = [64, 1], strides = [1, 1]} : vector<64x2xf32> to vector<64x1xf32>
    %299 = vector.broadcast %298 : vector<64x1xf32> to vector<64x32xf32>
    %300 = arith.mulf %299, %297 : vector<64x32xf32>
    %cst_63 = arith.constant dense<0.000000e+00> : vector<32xf32>
    %301 = vector.multi_reduction <add>, %300, %cst_63 [0] : vector<64x32xf32> to vector<32xf32>
    %302 = vector.shape_cast %301 : vector<32xf32> to vector<1x32xf32>
    %c1 = arith.constant 1 : index
    %c0_64 = arith.constant 0 : index
    %303 = vector.load %arg17[%c1, %c0_64] : memref<2x96xf32, #tpu.memory_space<vmem>>, vector<1x32xf32>
    tpu.vector_store %arg17[%c1, %c0_64], %302 {strides = array<i32>} : memref<2x96xf32, #tpu.memory_space<vmem>>, vector<1x32xf32>,
    %304 = vector.extract_strided_slice %296 {offsets = [0, 1], sizes = [64, 1], strides = [1, 1]} : vector<64x2xf32> to vector<64x1xf32>
    %305 = vector.broadcast %304 : vector<64x1xf32> to vector<64x32xf32>
    %306 = arith.mulf %305, %297 : vector<64x32xf32>
    %cst_65 = arith.constant dense<0.000000e+00> : vector<32xf32>
    %307 = vector.multi_reduction <add>, %306, %cst_65 [0] : vector<64x32xf32> to vector<32xf32>
    %308 = vector.shape_cast %307 : vector<32xf32> to vector<1x32xf32>
    %c1_66 = arith.constant 1 : index
    %c32_67 = arith.constant 32 : index
    %309 = vector.load %arg17[%c1_66, %c32_67] : memref<2x96xf32, #tpu.memory_space<vmem>>, vector<1x32xf32>
    tpu.vector_store %arg17[%c1_66, %c32_67], %308 {strides = array<i32>} : memref<2x96xf32, #tpu.memory_space<vmem>>, vector<1x32xf32>,
    %c0_68 = arith.constant 0 : index
    %c64 = arith.constant 64 : index
    %310 = vector.load %arg17[%c0_68, %c64] : memref<2x96xf32, #tpu.memory_space<vmem>>, vector<2x32xf32>
    tpu.vector_store %arg17[%c0_68, %c64], %227 {strides = array<i32>} : memref<2x96xf32, #tpu.memory_space<vmem>>, vector<2x32xf32>,
    %c0_69 = arith.constant 0 : index
    %c0_70 = arith.constant 0 : index
    %311 = vector.load %arg17[%c0_69, %c0_70] : memref<2x96xf32, #tpu.memory_space<vmem>>, vector<2x96xf32>
    %c0_71 = arith.constant 0 : index
    %c0_72 = arith.constant 0 : index
    %312 = vector.load %arg12[%c0_71, %c0_72] : memref<96x32xf32, #tpu.memory_space<vmem>>, vector<96x32xf32>
    %cst_73 = arith.constant dense<0.000000e+00> : vector<2x32xf32>
    %313 = tpu.matmul %311, %312, %cst_73 {dimension_numbers = #tpu.dot_dimension_numbers<[1], [0], [0], [1], [0, 0, 1, 1], [], []>} : vector<2x96xf32>, vector<96x32xf32>, vector<2x32xf32> -> vector<2x32xf32>
    %c0_74 = arith.constant 0 : index
    %c0_75 = arith.constant 0 : index
    %314 = vector.load %arg13[%c0_74, %c0_75] : memref<1x32xf32, #tpu.memory_space<vmem>>, vector<1x32xf32>
    %315 = vector.broadcast %314 : vector<1x32xf32> to vector<2x32xf32>
    %316 = arith.addf %313, %315 : vector<2x32xf32>
    %cst_76 = arith.constant 0.000000e+00 : f32
    %317 = vector.broadcast %cst_76 : f32 to vector<2x32xf32>
    %318 = arith.maximumf %316, %317 : vector<2x32xf32>
    %c0_77 = arith.constant 0 : index
    %c0_78 = arith.constant 0 : index
    %319 = vector.load %arg14[%c0_77, %c0_78] : memref<32x16xf32, #tpu.memory_space<vmem>>, vector<32x16xf32>
    %cst_79 = arith.constant dense<0.000000e+00> : vector<2x16xf32>
    %320 = tpu.matmul %318, %319, %cst_79 {dimension_numbers = #tpu.dot_dimension_numbers<[1], [0], [0], [1], [0, 0, 1, 1], [], []>} : vector<2x32xf32>, vector<32x16xf32>, vector<2x16xf32> -> vector<2x16xf32>
    %c0_80 = arith.constant 0 : index
    %c0_81 = arith.constant 0 : index
    %321 = vector.load %arg15[%c0_80, %c0_81] : memref<1x16xf32, #tpu.memory_space<vmem>>, vector<1x16xf32>
    %322 = vector.broadcast %321 : vector<1x16xf32> to vector<2x16xf32>
    %323 = arith.addf %320, %322 : vector<2x16xf32>
    %cst_82 = arith.constant dense<0xFF800000> : vector<2xf32>
    %324 = vector.multi_reduction <maximumf>, %323, %cst_82 [1] : vector<2x16xf32> to vector<2xf32>
    %325 = vector.shape_cast %324 : vector<2xf32> to vector<2x1xf32>
    %326 = vector.broadcast %325 : vector<2x1xf32> to vector<2x16xf32>
    %327 = arith.subf %323, %326 : vector<2x16xf32>
    %328 = math.exp %327 : vector<2x16xf32>
    %cst_83 = arith.constant dense<0.000000e+00> : vector<2xf32>
    %329 = vector.multi_reduction <add>, %328, %cst_83 [1] : vector<2x16xf32> to vector<2xf32>
    %330 = vector.shape_cast %329 : vector<2xf32> to vector<2x1xf32>
    %331 = vector.broadcast %330 : vector<2x1xf32> to vector<2x16xf32>
    %332 = arith.divf %328, %331 : vector<2x16xf32>
    %c0_84 = arith.constant 0 : index
    %c0_85 = arith.constant 0 : index
    %333 = vector.load %arg16[%c0_84, %c0_85] : memref<2x16xf32, #tpu.memory_space<vmem>>, vector<2x16xf32>
    tpu.vector_store %arg16[%c0_84, %c0_85], %332 {strides = array<i32>} : memref<2x16xf32, #tpu.memory_space<vmem>>, vector<2x16xf32>,
    return
  }
}

</mosaic_0001>

<llo_original>
// kernel: net_forward.1
$region0: #{net_forward.1}
  #allocation0 [shape = 'u32[]', space=smem, size = 0x4, offset = 0x4, fixed_abs, tag = 'smem constant byte address 0x4 - core index']
  #allocation1 [shape = 'u32[144,128]{1,0:T(1,128)}', space=vmem, size = 0x12000, scoped, tag = 'internal scratch']
  #allocation2 [shape = 'f32[2,96]{1,0:T(2,128)}', space=vmem, size = 0x400, scoped, tag = 'scratch operand']
  %s0 = inlined_call_operand.vmem [shape: s32[16,1], index: 0, kind: input, shape index: {}]
  %s1 = inlined_call_operand.vmem [shape: s32[2,1], index: 1, kind: input, shape index: {}]
  %s2 = inlined_call_operand.vmem [shape: f32[50,16], index: 2, kind: input, shape index: {}]
  %s3 = inlined_call_operand.vmem [shape: f32[16,128], index: 3, kind: input, shape index: {}]
  %s4 = inlined_call_operand.vmem [shape: f32[32,128], index: 4, kind: input, shape index: {}]
  %s5 = inlined_call_operand.vmem [shape: f32[1,128], index: 5, kind: input, shape index: {}]
  %s6 = inlined_call_operand.vmem [shape: f32[128,32], index: 6, kind: input, shape index: {}]
  %s7 = inlined_call_operand.vmem [shape: f32[32,32], index: 7, kind: input, shape index: {}]
  %s8 = inlined_call_operand.vmem [shape: f32[32,32], index: 8, kind: input, shape index: {}]
  %s9 = inlined_call_operand.vmem [shape: f32[1,32], index: 9, kind: input, shape index: {}]
  %s10 = inlined_call_operand.vmem [shape: f32[32,2], index: 10, kind: input, shape index: {}]
  %s11 = inlined_call_operand.vmem [shape: f32[1,2], index: 11, kind: input, shape index: {}]
  %s12 = inlined_call_operand.vmem [shape: f32[96,32], index: 12, kind: input, shape index: {}]
  %s13 = inlined_call_operand.vmem [shape: f32[1,32], index: 13, kind: input, shape index: {}]
  %s14 = inlined_call_operand.vmem [shape: f32[32,16], index: 14, kind: input, shape index: {}]
  %s15 = inlined_call_operand.vmem [shape: f32[1,16], index: 15, kind: input, shape index: {}]
  %s16 = inlined_call_operand.hbm [shape: f32[2,16], index: 16, kind: output, shape index: {}]
  %s17 = sld [smem:[#allocation0]]
  $region74: #{net_forward.1} parent=0
    _
  %s19 = ssub.s32 1, %s17
  %s20 = scalar_select 0, %s19, %s17
  $region1: #{net_forward.1} parent=0
    #allocation3 [shape = 'u8[1024]{0}', space=vmem, size = 0x400, scoped, tag = 'output window, operand 0, single buffered']
    #allocation4 [shape = 's32[1]{0}', space=sflag, size = 0x4, scoped, tag = 'scoped memory for net_forward.1']
    %21 = vsyncpa [#allocation4], 0
    // Predicated region
    $region2: #{net_forward.1} parent=1 // pred_check
      _
    $region3: #{net_forward.1} parent=1 // pred_check_branch
      %23 = sbr.rel (0) target = $region5
    $region4: #{net_forward.1} parent=1 // pred_region
      _
    $region5: #{net_forward.1} parent=1 // pred_fallthru
      _
    // Predicated region
    $region6: #{net_forward.1} parent=1 // pred_check
      _
    $region7: #{net_forward.1} parent=1 // pred_check_branch
      %25 = sbr.rel (0) target = $region9
    $region8: #{net_forward.1} parent=1 // pred_region
      _
    $region9: #{net_forward.1} parent=1 // pred_fallthru
      _
    // Predicated region
    $region10: #{net_forward.1} parent=1 // pred_check
      _
    $region11: #{net_forward.1} parent=1 // pred_check_branch
      %27 = sbr.rel (0) target = $region13
    $region12: #{net_forward.1} parent=1 // pred_region
      _
    $region13: #{net_forward.1} parent=1 // pred_fallthru
      _
    // Predicated region
    $region14: #{net_forward.1} parent=1 // pred_check
      _
    $region15: #{net_forward.1} parent=1 // pred_check_branch
      %29 = sbr.rel (0) target = $region17
    $region16: #{net_forward.1} parent=1 // pred_region
      _
    $region17: #{net_forward.1} parent=1 // pred_fallthru
      _
    // Predicated region
    $region18: #{net_forward.1} parent=1 // pred_check
      _
    $region19: #{net_forward.1} parent=1 // pred_check_branch
      %31 = sbr.rel (0) target = $region21
    $region20: #{net_forward.1} parent=1 // pred_region
      _
    $region21: #{net_forward.1} parent=1 // pred_fallthru
      _
    // Predicated region
    $region22: #{net_forward.1} parent=1 // pred_check
      _
    $region23: #{net_forward.1} parent=1 // pred_check_branch
      %33 = sbr.rel (0) target = $region25
    $region24: #{net_forward.1} parent=1 // pred_region
      _
    $region25: #{net_forward.1} parent=1 // pred_fallthru
      _
    // Predicated region
    $region26: #{net_forward.1} parent=1 // pred_check
      _
    $region27: #{net_forward.1} parent=1 // pred_check_branch
      %35 = sbr.rel (0) target = $region29
    $region28: #{net_forward.1} parent=1 // pred_region
      _
    $region29: #{net_forward.1} parent=1 // pred_fallthru
      _
    // Predicated region
    $region30: #{net_forward.1} parent=1 // pred_check
      _
    $region31: #{net_forward.1} parent=1 // pred_check_branch
      %37 = sbr.rel (0) target = $region33
    $region32: #{net_forward.1} parent=1 // pred_region
      _
    $region33: #{net_forward.1} parent=1 // pred_fallthru
      _
    // Predicated region
    $region34: #{net_forward.1} parent=1 // pred_check
      _
    $region35: #{net_forward.1} parent=1 // pred_check_branch
      %39 = sbr.rel (0) target = $region37
    $region36: #{net_forward.1} parent=1 // pred_region
      _
    $region37: #{net_forward.1} parent=1 // pred_fallthru
      _
    // Predicated region
    $region38: #{net_forward.1} parent=1 // pred_check
      _
    $region39: #{net_forward.1} parent=1 // pred_check_branch
      %41 = sbr.rel (0) target = $region41
    $region40: #{net_forward.1} parent=1 // pred_region
      _
    $region41: #{net_forward.1} parent=1 // pred_fallthru
      _
    // Predicated region
    $region42: #{net_forward.1} parent=1 // pred_check
      _
    $region43: #{net_forward.1} parent=1 // pred_check_branch
      %43 = sbr.rel (0) target = $region45
    $region44: #{net_forward.1} parent=1 // pred_region
      _
    $region45: #{net_forward.1} parent=1 // pred_fallthru
      _
    // Predicated region
    $region46: #{net_forward.1} parent=1 // pred_check
      _
    $region47: #{net_forward.1} parent=1 // pred_check_branch
      %45 = sbr.rel (0) target = $region49
    $region48: #{net_forward.1} parent=1 // pred_region
      _
    $region49: #{net_forward.1} parent=1 // pred_fallthru
      _
    // Predicated region
    $region50: #{net_forward.1} parent=1 // pred_check
      _
    $region51: #{net_forward.1} parent=1 // pred_check_branch
      %47 = sbr.rel (0) target = $region53
    $region52: #{net_forward.1} parent=1 // pred_region
      _
    $region53: #{net_forward.1} parent=1 // pred_fallthru
      _
    // Predicated region
    $region54: #{net_forward.1} parent=1 // pred_check
      _
    $region55: #{net_forward.1} parent=1 // pred_check_branch
      %49 = sbr.rel (0) target = $region57
    $region56: #{net_forward.1} parent=1 // pred_region
      _
    $region57: #{net_forward.1} parent=1 // pred_fallthru
      _
    // Predicated region
    $region58: #{net_forward.1} parent=1 // pred_check
      _
    $region59: #{net_forward.1} parent=1 // pred_check_branch
      %51 = sbr.rel (0) target = $region61
    $region60: #{net_forward.1} parent=1 // pred_region
      _
    $region61: #{net_forward.1} parent=1 // pred_fallthru
      _
    // Predicated region
    $region62: #{net_forward.1} parent=1 // pred_check
      _
    $region63: #{net_forward.1} parent=1 // pred_check_branch
      %53 = sbr.rel (0) target = $region65
    $region64: #{net_forward.1} parent=1 // pred_region
      _
    $region65: #{net_forward.1} parent=1 // pred_fallthru
      _
    %v54 = vld [vmem:[%s0] sm:$0xff]
    %v55 = vld [vmem:[%s0 + $0x8] sm:$0xff]
    %v56 = vlaneseq
    %v57 = vand.u32 %v56, 127
    %58 = vset.pattern.permute.xlu0 0
    %59 = vperm.xlu0 %58, %v54
    %v60 = vpop.permute.xlu0 %59
    %61 = vset.pattern.permute.xlu0 0
    %62 = vperm.xlu0 %61, %v55
    %v63 = vpop.permute.xlu0 %62
    %vm64 = vcmp.eq.s32.totalorder %v57, %v60
    %vm65 = vcmp.eq.s32.totalorder %v57, %v63
    %v66 = vsel %vm64, 1, 0
    %v67 = vsel %vm65, 1, 0
    %v68 = vcvt.s32.f32 %v66
    %v69 = vcvt.s32.f32 %v67
    %v70 = vld [vmem:[%s2] sm:$0xff]
    %v71 = vld [vmem:[%s2 + $0x8] sm:$0xff]
    %v72 = vld [vmem:[%s2 + $0x10] sm:$0xff]
    %v73 = vld [vmem:[%s2 + $0x18] sm:$0xff]
    %v74 = vld [vmem:[%s2 + $0x20] sm:$0xff]
    %v75 = vld [vmem:[%s2 + $0x28] sm:$0xff]
    %v76 = vld [vmem:[%s2 + $0x30] sm:$0x3]
    %vm77 = vcmask 408576
    %v79 = vsel %vm77, %v68, 0
    %v82 = vsel %vm77, %v69, 0
    %vm84 = vcmask 1041408
    %v86 = vsel %vm84, %v76, 0
    %88 = vmatprep.subr.mxu0 0.0
    %89 = vmatpush1.msra.mxu0 %v70
    %90 = vmatprep.subr.mxu0 0.0
    %91 = vmatpush1.msra.mxu0 %v71
    %92 = vmatprep.subr.mxu0 0.0
    %93 = vmatpush1.msra.mxu0 %v72
    %94 = vmatprep.subr.mxu0 0.0
    %95 = vmatpush1.msra.mxu0 %v73
    %96 = vmatprep.subr.mxu0 0.0
    %97 = vmatpush1.msra.mxu0 %v74
    %98 = vmatprep.subr.mxu0 0.0
    %99 = vmatpush1.msra.mxu0 %v75
    %100 = vmatprep.subr.mxu0 0.0
    %101 = vmatpush1.msra.mxu0 %v86
    %102 = vmatprep.subr.mxu0 0.0
    %103 = vmatpush1.msra.mxu0 0.0
    %104 = vmatprep.subr.mxu0 0.0
    %105 = vmatpush1.msra.mxu0 0.0
    %106 = vmatprep.subr.mxu0 0.0
    %107 = vmatpush1.msra.mxu0 0.0
    %108 = vmatprep.subr.mxu0 0.0
    %109 = vmatpush1.msra.mxu0 0.0
    %110 = vmatprep.subr.mxu0 0.0
    %111 = vmatpush1.msra.mxu0 0.0
    %112 = vmatprep.subr.mxu0 0.0
    %113 = vmatpush1.msra.mxu0 0.0
    %114 = vmatprep.subr.mxu0 0.0
    %115 = vmatpush1.msra.mxu0 0.0
    %116 = vmatprep.subr.mxu0 0.0
    %117 = vmatpush1.msra.mxu0 0.0
    %118 = vmatprep.subr.mxu0 0.0
    %119 = vmatpush1.msra.mxu0 0.0
    %120 = vmatprep.subr.mxu0 0.0
    %121 = vmatpush1.msra.mxu0 0.0
    %122 = vmatprep.subr.mxu0 0.0
    %123 = vmatpush1.msra.mxu0 0.0
    %124 = vmatprep.subr.mxu0 0.0
    %125 = vmatpush1.msra.mxu0 0.0
    %126 = vmatprep.subr.mxu0 0.0
    %127 = vmatpush1.msra.mxu0 0.0
    %128 = vmatprep.subr.mxu0 0.0
    %129 = vmatpush1.msra.mxu0 0.0
    %130 = vmatprep.subr.mxu0 0.0
    %131 = vmatpush1.msra.mxu0 0.0
    %132 = vmatprep.subr.mxu0 0.0
    %133 = vmatpush1.msra.mxu0 0.0
    %134 = vmatprep.subr.mxu0 0.0
    %135 = vmatpush1.msra.mxu0 0.0
    %136 = vmatprep.subr.mxu0 0.0
    %137 = vmatpush1.msra.mxu0 0.0
    %138 = vmatprep.subr.mxu0 0.0
    %139 = vmatpush1.msra.mxu0 0.0
    %140 = vmatprep.subr.mxu0 0.0
    %141 = vmatpush1.msra.mxu0 0.0
    %142 = vmatprep.subr.mxu0 0.0
    %143 = vmatpush1.msra.mxu0 0.0
    %144 = vmatprep.subr.mxu0 0.0
    %145 = vmatpush1.msra.mxu0 0.0
    %146 = vmatprep.subr.mxu0 0.0
    %147 = vmatpush1.msra.mxu0 0.0
    %148 = vmatprep.subr.mxu0 0.0
    %149 = vmatpush1.msra.mxu0 0.0
    %150 = vmatprep.subr.mxu0 0.0
    %151 = vmatpush1.msra.mxu0 0.0
    %152 = vmatprep.mubr.f32.mxu0 0.0
    %153 = vmatmul.mubr.f32.gmra.mrb[0].mxu0 %v79
    %v154 = vpop.f32.mrb[0].mxu0
    %v155 = vadd.f32 0.0, %v154
    %v156 = vpop.f32.mrb[0].mxu0
    %157 = vmatprep.mubr.f32.mxu0 0.0
    %158 = vmatmul.mubr.f32.gmra.mrb[0].mxu0 %v82
    %v159 = vpop.f32.mrb[0].mxu0
    %v160 = vadd.f32 0.0, %v159
    %v161 = vpop.f32.mrb[0].mxu0
    %162 = vdwg.mxu0
    %v163 = vtanh.pop %v155
    %v164 = vtanh.pop %v160
    %v165 = vld [vmem:[%s3] sm:$0xff]
    %v166 = vld [vmem:[%s3 + $0x8] sm:$0xff]
    %v167 = vld [vmem:[%s5] sm:$0x1]
    %v169 = vlaneseq
    %v170 = vshrl.u32 %v169, 7
    %v171 = vsub.s32 0, %v170
    %v172 = vrot.slane %v167, %v171
    %vm174 = vcmask 130048
    %v176 = vsel %vm174, %v163, 0
    %v179 = vsel %vm174, %v164, 0
    %181 = vmatprep.subr.mxu0 0.0
    %182 = vmatpush1.msra.mxu0 %v165
    %183 = vmatprep.subr.mxu0 0.0
    %184 = vmatpush1.msra.mxu0 %v166
    %185 = vmatprep.subr.mxu0 0.0
    %186 = vmatpush1.msra.mxu0 0.0
    %187 = vmatprep.subr.mxu0 0.0
    %188 = vmatpush1.msra.mxu0 0.0
    %189 = vmatprep.subr.mxu0 0.0
    %190 = vmatpush1.msra.mxu0 0.0
    %191 = vmatprep.subr.mxu0 0.0
    %192 = vmatpush1.msra.mxu0 0.0
    %193 = vmatprep.subr.mxu0 0.0
    %194 = vmatpush1.msra.mxu0 0.0
    %195 = vmatprep.subr.mxu0 0.0
    %196 = vmatpush1.msra.mxu0 0.0
    %197 = vmatprep.subr.mxu0 0.0
    %198 = vmatpush1.msra.mxu0 0.0
    %199 = vmatprep.subr.mxu0 0.0
    %200 = vmatpush1.msra.mxu0 0.0
    %201 = vmatprep.subr.mxu0 0.0
    %202 = vmatpush1.msra.mxu0 0.0
    %203 = vmatprep.subr.mxu0 0.0
    %204 = vmatpush1.msra.mxu0 0.0
    %205 = vmatprep.subr.mxu0 0.0
    %206 = vmatpush1.msra.mxu0 0.0
    %207 = vmatprep.subr.mxu0 0.0
    %208 = vmatpush1.msra.mxu0 0.0
    %209 = vmatprep.subr.mxu0 0.0
    %210 = vmatpush1.msra.mxu0 0.0
    %211 = vmatprep.subr.mxu0 0.0
    %212 = vmatpush1.msra.mxu0 0.0
    %213 = vmatprep.subr.mxu0 0.0
    %214 = vmatpush1.msra.mxu0 0.0
    %215 = vmatprep.subr.mxu0 0.0
    %216 = vmatpush1.msra.mxu0 0.0
    %217 = vmatprep.subr.mxu0 0.0
    %218 = vmatpush1.msra.mxu0 0.0
    %219 = vmatprep.subr.mxu0 0.0
    %220 = vmatpush1.msra.mxu0 0.0
    %221 = vmatprep.subr.mxu0 0.0
    %222 = vmatpush1.msra.mxu0 0.0
    %223 = vmatprep.subr.mxu0 0.0
    %224 = vmatpush1.msra.mxu0 0.0
    %225 = vmatprep.subr.mxu0 0.0
    %226 = vmatpush1.msra.mxu0 0.0
    %227 = vmatprep.subr.mxu0 0.0
    %228 = vmatpush1.msra.mxu0 0.0
    %229 = vmatprep.subr.mxu0 0.0
    %230 = vmatpush1.msra.mxu0 0.0
    %231 = vmatprep.subr.mxu0 0.0
    %232 = vmatpush1.msra.mxu0 0.0
    %233 = vmatprep.subr.mxu0 0.0
    %234 = vmatpush1.msra.mxu0 0.0
    %235 = vmatprep.subr.mxu0 0.0
    %236 = vmatpush1.msra.mxu0 0.0
    %237 = vmatprep.subr.mxu0 0.0
    %238 = vmatpush1.msra.mxu0 0.0
    %239 = vmatprep.subr.mxu0 0.0
    %240 = vmatpush1.msra.mxu0 0.0
    %241 = vmatprep.subr.mxu0 0.0
    %242 = vmatpush1.msra.mxu0 0.0
    %243 = vmatprep.subr.mxu0 0.0
    %244 = vmatpush1.msra.mxu0 0.0
    %245 = vmatprep.mubr.f32.mxu0 0.0
    %246 = vmatmul.mubr.f32.gmra.mrb[0].mxu0 %v176
    %v247 = vpop.f32.mrb[0].mxu0
    %v248 = vadd.f32 %v172, %v247
    %v249 = vpop.f32.mrb[0].mxu0
    %250 = vmatprep.mubr.f32.mxu0 0.0
    %251 = vmatmul.mubr.f32.gmra.mrb[0].mxu0 %v179
    %v252 = vpop.f32.mrb[0].mxu0
    %v253 = vadd.f32 %v172, %v252
    %v254 = vpop.f32.mrb[0].mxu0
    %255 = vdwg.mxu0
    %v256 = vld [vmem:[%s1] sm:$0x3]
    %v257 = vld [vmem:[%s4] sm:$0xff]
    %v258 = vld [vmem:[%s4 + $0x8] sm:$0xff]
    %v259 = vld [vmem:[%s4 + $0x10] sm:$0xff]
    %v260 = vld [vmem:[%s4 + $0x18] sm:$0xff]
    %vm261 = vcmask 261120
    %v263 = vsel %vm261, 0.0, 0
    %265 = vmatprep.subr.mxu0 0.0
    %266 = vmatpush1.msra.mxu0 %v257
    %267 = vmatprep.subr.mxu0 0.0
    %268 = vmatpush1.msra.mxu0 %v258
    %269 = vmatprep.subr.mxu0 0.0
    %270 = vmatpush1.msra.mxu0 %v259
    %271 = vmatprep.subr.mxu0 0.0
    %272 = vmatpush1.msra.mxu0 %v260
    %273 = vmatprep.subr.mxu0 0.0
    %274 = vmatpush1.msra.mxu0 0.0
    %275 = vmatprep.subr.mxu0 0.0
    %276 = vmatpush1.msra.mxu0 0.0
    %277 = vmatprep.subr.mxu0 0.0
    %278 = vmatpush1.msra.mxu0 0.0
    %279 = vmatprep.subr.mxu0 0.0
    %280 = vmatpush1.msra.mxu0 0.0
    %281 = vmatprep.subr.mxu0 0.0
    %282 = vmatpush1.msra.mxu0 0.0
    %283 = vmatprep.subr.mxu0 0.0
    %284 = vmatpush1.msra.mxu0 0.0
    %285 = vmatprep.subr.mxu0 0.0
    %286 = vmatpush1.msra.mxu0 0.0
    %287 = vmatprep.subr.mxu0 0.0
    %288 = vmatpush1.msra.mxu0 0.0
    %289 = vmatprep.subr.mxu0 0.0
    %290 = vmatpush1.msra.mxu0 0.0
    %291 = vmatprep.subr.mxu0 0.0
    %292 = vmatpush1.msra.mxu0 0.0
    %293 = vmatprep.subr.mxu0 0.0
    %294 = vmatpush1.msra.mxu0 0.0
    %295 = vmatprep.subr.mxu0 0.0
    %296 = vmatpush1.msra.mxu0 0.0
    %297 = vmatprep.subr.mxu0 0.0
    %298 = vmatpush1.msra.mxu0 0.0
    %299 = vmatprep.subr.mxu0 0.0
    %300 = vmatpush1.msra.mxu0 0.0
    %301 = vmatprep.subr.mxu0 0.0
    %302 = vmatpush1.msra.mxu0 0.0
    %303 = vmatprep.subr.mxu0 0.0
    %304 = vmatpush1.msra.mxu0 0.0
    %305 = vmatprep.subr.mxu0 0.0
    %306 = vmatpush1.msra.mxu0 0.0
    %307 = vmatprep.subr.mxu0 0.0
    %308 = vmatpush1.msra.mxu0 0.0
    %309 = vmatprep.subr.mxu0 0.0
    %310 = vmatpush1.msra.mxu0 0.0
    %311 = vmatprep.subr.mxu0 0.0
    %312 = vmatpush1.msra.mxu0 0.0
    %313 = vmatprep.subr.mxu0 0.0
    %314 = vmatpush1.msra.mxu0 0.0
    %315 = vmatprep.subr.mxu0 0.0
    %316 = vmatpush1.msra.mxu0 0.0
    %317 = vmatprep.subr.mxu0 0.0
    %318 = vmatpush1.msra.mxu0 0.0
    %319 = vmatprep.subr.mxu0 0.0
    %320 = vmatpush1.msra.mxu0 0.0
    %321 = vmatprep.subr.mxu0 0.0
    %322 = vmatpush1.msra.mxu0 0.0
    %323 = vmatprep.subr.mxu0 0.0
    %324 = vmatpush1.msra.mxu0 0.0
    %325 = vmatprep.subr.mxu0 0.0
    %326 = vmatpush1.msra.mxu0 0.0
    %327 = vmatprep.subr.mxu0 0.0
    %328 = vmatpush1.msra.mxu0 0.0
    %329 = vmatprep.mubr.f32.mxu0 0.0
    %330 = vmatmul.mubr.f32.gmra.mrb[0].mxu0 %v263
    %v331 = vpop.f32.mrb[0].mxu0
    %v332 = vadd.f32 0.0, %v331
    %v333 = vpop.f32.mrb[0].mxu0
    %334 = vdwg.mxu0
    %v335 = vadd.f32 %v248, %v332
    %v336 = vxor.u32 %v335, 2147483648
    %v337 = vmul.f32 %v336, 1.442695
    %v338 = vpow.pop %v337
    %v339 = vadd.f32 %v338, 1.0
    %v340 = vrcp.pop %v339
    %v341 = vmul.f32 1.0, %v340
    %v342 = vtanh.pop %v335
    %v343 = vmul.f32 %v341, 0.0
    %345 = vrot.lane.b32.xlu0 %v342, 32
    %v346 = vpop.permute.xlu0 %345
    %v348 = vmul.f32 %v341, %v346
    %350 = vrot.lane.b32.xlu0 %v348, 32
    %v351 = vpop.permute.xlu0 %350
    %v353 = vadd.f32 %v343, %v351
    %v354 = vtanh.pop %v353
    %356 = vrot.lane.b32.xlu0 %v354, 32
    %v357 = vpop.permute.xlu0 %356
    %v359 = vmul.f32 %v341, %v357
    %vm360 = vcmp.gt.s32.totalorder %v256, 0
    %v361 = vsel %vm360, 1, 0
    %362 = vset.pattern.permute.xlu0 0
    %363 = vperm.xlu0 %362, %v361
    %v364 = vpop.permute.xlu0 %363
    %vm365 = vcmp.eq.s32.totalorder %v364, 1
    %v366 = vsel %vm365, %v359, 0.0
    %v367 = vsel %vm365, %v353, 0.0
    %369 = vrot.lane.b32.xlu0 %v366, 64
    %v370 = vpop.permute.xlu0 %369
    %v371 = vsel %vm261, %v370, 0
    %373 = vmatprep.subr.mxu0 0.0
    %374 = vmatpush1.msra.mxu0 %v257
    %375 = vmatprep.subr.mxu0 0.0
    %376 = vmatpush1.msra.mxu0 %v258
    %377 = vmatprep.subr.mxu0 0.0
    %378 = vmatpush1.msra.mxu0 %v259
    %379 = vmatprep.subr.mxu0 0.0
    %380 = vmatpush1.msra.mxu0 %v260
    %381 = vmatprep.subr.mxu0 0.0
    %382 = vmatpush1.msra.mxu0 0.0
    %383 = vmatprep.subr.mxu0 0.0
    %384 = vmatpush1.msra.mxu0 0.0
    %385 = vmatprep.subr.mxu0 0.0
    %386 = vmatpush1.msra.mxu0 0.0
    %387 = vmatprep.subr.mxu0 0.0
    %388 = vmatpush1.msra.mxu0 0.0
    %389 = vmatprep.subr.mxu0 0.0
    %390 = vmatpush1.msra.mxu0 0.0
    %391 = vmatprep.subr.mxu0 0.0
    %392 = vmatpush1.msra.mxu0 0.0
    %393 = vmatprep.subr.mxu0 0.0
    %394 = vmatpush1.msra.mxu0 0.0
    %395 = vmatprep.subr.mxu0 0.0
    %396 = vmatpush1.msra.mxu0 0.0
    %397 = vmatprep.subr.mxu0 0.0
    %398 = vmatpush1.msra.mxu0 0.0
    %399 = vmatprep.subr.mxu0 0.0
    %400 = vmatpush1.msra.mxu0 0.0
    %401 = vmatprep.subr.mxu0 0.0
    %402 = vmatpush1.msra.mxu0 0.0
    %403 = vmatprep.subr.mxu0 0.0
    %404 = vmatpush1.msra.mxu0 0.0
    %405 = vmatprep.subr.mxu0 0.0
    %406 = vmatpush1.msra.mxu0 0.0
    %407 = vmatprep.subr.mxu0 0.0
    %408 = vmatpush1.msra.mxu0 0.0
    %409 = vmatprep.subr.mxu0 0.0
    %410 = vmatpush1.msra.mxu0 0.0
    %411 = vmatprep.subr.mxu0 0.0
    %412 = vmatpush1.msra.mxu0 0.0
    %413 = vmatprep.subr.mxu0 0.0
    %414 = vmatpush1.msra.mxu0 0.0
    %415 = vmatprep.subr.mxu0 0.0
    %416 = vmatpush1.msra.mxu0 0.0
    %417 = vmatprep.subr.mxu0 0.0
    %418 = vmatpush1.msra.mxu0 0.0
    %419 = vmatprep.subr.mxu0 0.0
    %420 = vmatpush1.msra.mxu0 0.0
    %421 = vmatprep.subr.mxu0 0.0
    %422 = vmatpush1.msra.mxu0 0.0
    %423 = vmatprep.subr.mxu0 0.0
    %424 = vmatpush1.msra.mxu0 0.0
    %425 = vmatprep.subr.mxu0 0.0
    %426 = vmatpush1.msra.mxu0 0.0
    %427 = vmatprep.subr.mxu0 0.0
    %428 = vmatpush1.msra.mxu0 0.0
    %429 = vmatprep.subr.mxu0 0.0
    %430 = vmatpush1.msra.mxu0 0.0
    %431 = vmatprep.subr.mxu0 0.0
    %432 = vmatpush1.msra.mxu0 0.0
    %433 = vmatprep.subr.mxu0 0.0
    %434 = vmatpush1.msra.mxu0 0.0
    %435 = vmatprep.subr.mxu0 0.0
    %436 = vmatpush1.msra.mxu0 0.0
    %437 = vmatprep.mubr.f32.mxu0 0.0
    %438 = vmatmul.mubr.f32.gmra.mrb[0].mxu0 %v371
    %v439 = vpop.f32.mrb[0].mxu0
    %v440 = vadd.f32 0.0, %v439
    %v441 = vpop.f32.mrb[0].mxu0
    %442 = vdwg.mxu0
    %v444 = vrot.slane %v440, 6
    %v446 = vadd.f32 %v248, %v444
    %v447 = vxor.u32 %v446, 2147483648
    %v448 = vmul.f32 %v447, 1.442695
    %v449 = vpow.pop %v448
    %v450 = vadd.f32 %v449, 1.0
    %v451 = vrcp.pop %v450
    %v452 = vmul.f32 1.0, %v451
    %v453 = vtanh.pop %v446
    %v455 = vrot.slane %v367, 6
    %v457 = vmul.f32 %v452, %v455
    %459 = vrot.lane.b32.xlu0 %v453, 32
    %v460 = vpop.permute.xlu0 %459
    %v462 = vmul.f32 %v452, %v460
    %464 = vrot.lane.b32.xlu0 %v462, 32
    %v465 = vpop.permute.xlu0 %464
    %v467 = vadd.f32 %v457, %v465
    %v468 = vtanh.pop %v467
    %470 = vrot.lane.b32.xlu0 %v468, 32
    %v471 = vpop.permute.xlu0 %470
    %v473 = vmul.f32 %v452, %v471
    %vm474 = vcmp.gt.s32.totalorder %v256, 1
    %v475 = vsel %vm474, 1, 0
    %476 = vset.pattern.permute.xlu0 0
    %477 = vperm.xlu0 %476, %v475
    %v478 = vpop.permute.xlu0 %477
    %vm479 = vcmp.eq.s32.totalorder %v478, 1
    %v481 = vrot.slane %v473, 2
    %482 = vrot.lane.b32.xlu0 %v481, 64
    %v483 = vpop.permute.xlu0 %482
    %v486 = vsel %vm479, %v483, %v370
    %v488 = vrot.slane %v467, 2
    %489 = vrot.lane.b32.xlu0 %v488, 96
    %v490 = vpop.permute.xlu0 %489
    %492 = vrot.lane.b32.xlu0 %v367, 96
    %v493 = vpop.permute.xlu0 %492
    %v495 = vsel %vm479, %v490, %v493
    %v497 = vsel %vm261, %v486, 0
    %499 = vmatprep.subr.mxu0 0.0
    %500 = vmatpush1.msra.mxu0 %v257
    %501 = vmatprep.subr.mxu0 0.0
    %502 = vmatpush1.msra.mxu0 %v258
    %503 = vmatprep.subr.mxu0 0.0
    %504 = vmatpush1.msra.mxu0 %v259
    %505 = vmatprep.subr.mxu0 0.0
    %506 = vmatpush1.msra.mxu0 %v260
    %507 = vmatprep.subr.mxu0 0.0
    %508 = vmatpush1.msra.mxu0 0.0
    %509 = vmatprep.subr.mxu0 0.0
    %510 = vmatpush1.msra.mxu0 0.0
    %511 = vmatprep.subr.mxu0 0.0
    %512 = vmatpush1.msra.mxu0 0.0
    %513 = vmatprep.subr.mxu0 0.0
    %514 = vmatpush1.msra.mxu0 0.0
    %515 = vmatprep.subr.mxu0 0.0
    %516 = vmatpush1.msra.mxu0 0.0
    %517 = vmatprep.subr.mxu0 0.0
    %518 = vmatpush1.msra.mxu0 0.0
    %519 = vmatprep.subr.mxu0 0.0
    %520 = vmatpush1.msra.mxu0 0.0
    %521 = vmatprep.subr.mxu0 0.0
    %522 = vmatpush1.msra.mxu0 0.0
    %523 = vmatprep.subr.mxu0 0.0
    %524 = vmatpush1.msra.mxu0 0.0
    %525 = vmatprep.subr.mxu0 0.0
    %526 = vmatpush1.msra.mxu0 0.0
    %527 = vmatprep.subr.mxu0 0.0
    %528 = vmatpush1.msra.mxu0 0.0
    %529 = vmatprep.subr.mxu0 0.0
    %530 = vmatpush1.msra.mxu0 0.0
    %531 = vmatprep.subr.mxu0 0.0
    %532 = vmatpush1.msra.mxu0 0.0
    %533 = vmatprep.subr.mxu0 0.0
    %534 = vmatpush1.msra.mxu0 0.0
    %535 = vmatprep.subr.mxu0 0.0
    %536 = vmatpush1.msra.mxu0 0.0
    %537 = vmatprep.subr.mxu0 0.0
    %538 = vmatpush1.msra.mxu0 0.0
    %539 = vmatprep.subr.mxu0 0.0
    %540 = vmatpush1.msra.mxu0 0.0
    %541 = vmatprep.subr.mxu0 0.0
    %542 = vmatpush1.msra.mxu0 0.0
    %543 = vmatprep.subr.mxu0 0.0
    %544 = vmatpush1.msra.mxu0 0.0
    %545 = vmatprep.subr.mxu0 0.0
    %546 = vmatpush1.msra.mxu0 0.0
    %547 = vmatprep.subr.mxu0 0.0
    %548 = vmatpush1.msra.mxu0 0.0
    %549 = vmatprep.subr.mxu0 0.0
    %550 = vmatpush1.msra.mxu0 0.0
    %551 = vmatprep.subr.mxu0 0.0
    %552 = vmatpush1.msra.mxu0 0.0
    %553 = vmatprep.subr.mxu0 0.0
    %554 = vmatpush1.msra.mxu0 0.0
    %555 = vmatprep.subr.mxu0 0.0
    %556 = vmatpush1.msra.mxu0 0.0
    %557 = vmatprep.subr.mxu0 0.0
    %558 = vmatpush1.msra.mxu0 0.0
    %559 = vmatprep.subr.mxu0 0.0
    %560 = vmatpush1.msra.mxu0 0.0
    %561 = vmatprep.subr.mxu0 0.0
    %562 = vmatpush1.msra.mxu0 0.0
    %563 = vmatprep.mubr.f32.mxu0 0.0
    %564 = vmatmul.mubr.f32.gmra.mrb[0].mxu0 %v497
    %v565 = vpop.f32.mrb[0].mxu0
    %v566 = vadd.f32 0.0, %v565
    %v567 = vpop.f32.mrb[0].mxu0
    %568 = vdwg.mxu0
    %v570 = vrot.slane %v566, 4
    %v572 = vadd.f32 %v248, %v570
    %v573 = vxor.u32 %v572, 2147483648
    %v574 = vmul.f32 %v573, 1.442695
    %v575 = vpow.pop %v574
    %v576 = vadd.f32 %v575, 1.0
    %v577 = vrcp.pop %v576
    %v578 = vmul.f32 1.0, %v577
    %v579 = vtanh.pop %v572
    %v581 = vrot.slane %v495, 4
    %582 = vrot.lane.b32.xlu0 %v581, 32
    %v583 = vpop.permute.xlu0 %582
    %v585 = vmul.f32 %v578, %v583
    %587 = vrot.lane.b32.xlu0 %v579, 32
    %v588 = vpop.permute.xlu0 %587
    %v590 = vmul.f32 %v578, %v588
    %592 = vrot.lane.b32.xlu0 %v590, 32
    %v593 = vpop.permute.xlu0 %592
    %v595 = vadd.f32 %v585, %v593
    %v596 = vtanh.pop %v595
    %598 = vrot.lane.b32.xlu0 %v596, 32
    %v599 = vpop.permute.xlu0 %598
    %v601 = vmul.f32 %v578, %v599
    %vm602 = vcmp.gt.s32.totalorder %v256, 2
    %v603 = vsel %vm602, 1, 0
    %604 = vset.pattern.permute.xlu0 0
    %605 = vperm.xlu0 %604, %v603
    %v606 = vpop.permute.xlu0 %605
    %vm607 = vcmp.eq.s32.totalorder %v606, 1
    %v609 = vrot.slane %v601, 4
    %610 = vrot.lane.b32.xlu0 %v609, 64
    %v611 = vpop.permute.xlu0 %610
    %v613 = vsel %vm607, %v611, %v486
    %v615 = vrot.slane %v595, 4
    %616 = vrot.lane.b32.xlu0 %v615, 96
    %v617 = vpop.permute.xlu0 %616
    %v619 = vsel %vm607, %v617, %v495
    %v621 = vsel %vm261, %v613, 0
    %623 = vmatprep.subr.mxu0 0.0
    %624 = vmatpush1.msra.mxu0 %v257
    %625 = vmatprep.subr.mxu0 0.0
    %626 = vmatpush1.msra.mxu0 %v258
    %627 = vmatprep.subr.mxu0 0.0
    %628 = vmatpush1.msra.mxu0 %v259
    %629 = vmatprep.subr.mxu0 0.0
    %630 = vmatpush1.msra.mxu0 %v260
    %631 = vmatprep.subr.mxu0 0.0
    %632 = vmatpush1.msra.mxu0 0.0
    %633 = vmatprep.subr.mxu0 0.0
    %634 = vmatpush1.msra.mxu0 0.0
    %635 = vmatprep.subr.mxu0 0.0
    %636 = vmatpush1.msra.mxu0 0.0
    %637 = vmatprep.subr.mxu0 0.0
    %638 = vmatpush1.msra.mxu0 0.0
    %639 = vmatprep.subr.mxu0 0.0
    %640 = vmatpush1.msra.mxu0 0.0
    %641 = vmatprep.subr.mxu0 0.0
    %642 = vmatpush1.msra.mxu0 0.0
    %643 = vmatprep.subr.mxu0 0.0
    %644 = vmatpush1.msra.mxu0 0.0
    %645 = vmatprep.subr.mxu0 0.0
    %646 = vmatpush1.msra.mxu0 0.0
    %647 = vmatprep.subr.mxu0 0.0
    %648 = vmatpush1.msra.mxu0 0.0
    %649 = vmatprep.subr.mxu0 0.0
    %650 = vmatpush1.msra.mxu0 0.0
    %651 = vmatprep.subr.mxu0 0.0
    %652 = vmatpush1.msra.mxu0 0.0
    %653 = vmatprep.subr.mxu0 0.0
    %654 = vmatpush1.msra.mxu0 0.0
    %655 = vmatprep.subr.mxu0 0.0
    %656 = vmatpush1.msra.mxu0 0.0
    %657 = vmatprep.subr.mxu0 0.0
    %658 = vmatpush1.msra.mxu0 0.0
    %659 = vmatprep.subr.mxu0 0.0
    %660 = vmatpush1.msra.mxu0 0.0
    %661 = vmatprep.subr.mxu0 0.0
    %662 = vmatpush1.msra.mxu0 0.0
    %663 = vmatprep.subr.mxu0 0.0
    %664 = vmatpush1.msra.mxu0 0.0
    %665 = vmatprep.subr.mxu0 0.0
    %666 = vmatpush1.msra.mxu0 0.0
    %667 = vmatprep.subr.mxu0 0.0
    %668 = vmatpush1.msra.mxu0 0.0
    %669 = vmatprep.subr.mxu0 0.0
    %670 = vmatpush1.msra.mxu0 0.0
    %671 = vmatprep.subr.mxu0 0.0
    %672 = vmatpush1.msra.mxu0 0.0
    %673 = vmatprep.subr.mxu0 0.0
    %674 = vmatpush1.msra.mxu0 0.0
    %675 = vmatprep.subr.mxu0 0.0
    %676 = vmatpush1.msra.mxu0 0.0
    %677 = vmatprep.subr.mxu0 0.0
    %678 = vmatpush1.msra.mxu0 0.0
    %679 = vmatprep.subr.mxu0 0.0
    %680 = vmatpush1.msra.mxu0 0.0
    %681 = vmatprep.subr.mxu0 0.0
    %682 = vmatpush1.msra.mxu0 0.0
    %683 = vmatprep.subr.mxu0 0.0
    %684 = vmatpush1.msra.mxu0 0.0
    %685 = vmatprep.subr.mxu0 0.0
    %686 = vmatpush1.msra.mxu0 0.0
    %687 = vmatprep.mubr.f32.mxu0 0.0
    %688 = vmatmul.mubr.f32.gmra.mrb[0].mxu0 %v621
    %v689 = vpop.f32.mrb[0].mxu0
    %v690 = vadd.f32 0.0, %v689
    %v691 = vpop.f32.mrb[0].mxu0
    %692 = vdwg.mxu0
    %v694 = vrot.slane %v690, 2
    %v696 = vadd.f32 %v248, %v694
    %v697 = vxor.u32 %v696, 2147483648
    %v698 = vmul.f32 %v697, 1.442695
    %v699 = vpow.pop %v698
    %v700 = vadd.f32 %v699, 1.0
    %v701 = vrcp.pop %v700
    %v702 = vmul.f32 1.0, %v701
    %v703 = vtanh.pop %v696
    %v705 = vrot.slane %v619, 2
    %706 = vrot.lane.b32.xlu0 %v705, 32
    %v707 = vpop.permute.xlu0 %706
    %v709 = vmul.f32 %v702, %v707
    %711 = vrot.lane.b32.xlu0 %v703, 32
    %v712 = vpop.permute.xlu0 %711
    %v714 = vmul.f32 %v702, %v712
    %716 = vrot.lane.b32.xlu0 %v714, 32
    %v717 = vpop.permute.xlu0 %716
    %v719 = vadd.f32 %v709, %v717
    %v720 = vtanh.pop %v719
    %722 = vrot.lane.b32.xlu0 %v720, 32
    %v723 = vpop.permute.xlu0 %722
    %v725 = vmul.f32 %v702, %v723
    %vm726 = vcmp.gt.s32.totalorder %v256, 3
    %v727 = vsel %vm726, 1, 0
    %728 = vset.pattern.permute.xlu0 0
    %729 = vperm.xlu0 %728, %v727
    %v730 = vpop.permute.xlu0 %729
    %vm731 = vcmp.eq.s32.totalorder %v730, 1
    %v733 = vrot.slane %v725, 6
    %734 = vrot.lane.b32.xlu0 %v733, 64
    %v735 = vpop.permute.xlu0 %734
    %v737 = vsel %vm731, %v735, %v613
    %v739 = vrot.slane %v719, 6
    %740 = vrot.lane.b32.xlu0 %v739, 96
    %v741 = vpop.permute.xlu0 %740
    %v743 = vsel %vm731, %v741, %v619
    %v745 = vsel %vm261, %v737, 0
    %747 = vmatprep.subr.mxu0 0.0
    %748 = vmatpush1.msra.mxu0 %v257
    %749 = vmatprep.subr.mxu0 0.0
    %750 = vmatpush1.msra.mxu0 %v258
    %751 = vmatprep.subr.mxu0 0.0
    %752 = vmatpush1.msra.mxu0 %v259
    %753 = vmatprep.subr.mxu0 0.0
    %754 = vmatpush1.msra.mxu0 %v260
    %755 = vmatprep.subr.mxu0 0.0
    %756 = vmatpush1.msra.mxu0 0.0
    %757 = vmatprep.subr.mxu0 0.0
    %758 = vmatpush1.msra.mxu0 0.0
    %759 = vmatprep.subr.mxu0 0.0
    %760 = vmatpush1.msra.mxu0 0.0
    %761 = vmatprep.subr.mxu0 0.0
    %762 = vmatpush1.msra.mxu0 0.0
    %763 = vmatprep.subr.mxu0 0.0
    %764 = vmatpush1.msra.mxu0 0.0
    %765 = vmatprep.subr.mxu0 0.0
    %766 = vmatpush1.msra.mxu0 0.0
    %767 = vmatprep.subr.mxu0 0.0
    %768 = vmatpush1.msra.mxu0 0.0
    %769 = vmatprep.subr.mxu0 0.0
    %770 = vmatpush1.msra.mxu0 0.0
    %771 = vmatprep.subr.mxu0 0.0
    %772 = vmatpush1.msra.mxu0 0.0
    %773 = vmatprep.subr.mxu0 0.0
    %774 = vmatpush1.msra.mxu0 0.0
    %775 = vmatprep.subr.mxu0 0.0
    %776 = vmatpush1.msra.mxu0 0.0
    %777 = vmatprep.subr.mxu0 0.0
    %778 = vmatpush1.msra.mxu0 0.0
    %779 = vmatprep.subr.mxu0 0.0
    %780 = vmatpush1.msra.mxu0 0.0
    %781 = vmatprep.subr.mxu0 0.0
    %782 = vmatpush1.msra.mxu0 0.0
    %783 = vmatprep.subr.mxu0 0.0
    %784 = vmatpush1.msra.mxu0 0.0
    %785 = vmatprep.subr.mxu0 0.0
    %786 = vmatpush1.msra.mxu0 0.0
    %787 = vmatprep.subr.mxu0 0.0
    %788 = vmatpush1.msra.mxu0 0.0
    %789 = vmatprep.subr.mxu0 0.0
    %790 = vmatpush1.msra.mxu0 0.0
    %791 = vmatprep.subr.mxu0 0.0
    %792 = vmatpush1.msra.mxu0 0.0
    %793 = vmatprep.subr.mxu0 0.0
    %794 = vmatpush1.msra.mxu0 0.0
    %795 = vmatprep.subr.mxu0 0.0
    %796 = vmatpush1.msra.mxu0 0.0
    %797 = vmatprep.subr.mxu0 0.0
    %798 = vmatpush1.msra.mxu0 0.0
    %799 = vmatprep.subr.mxu0 0.0
    %800 = vmatpush1.msra.mxu0 0.0
    %801 = vmatprep.subr.mxu0 0.0
    %802 = vmatpush1.msra.mxu0 0.0
    %803 = vmatprep.subr.mxu0 0.0
    %804 = vmatpush1.msra.mxu0 0.0
    %805 = vmatprep.subr.mxu0 0.0
    %806 = vmatpush1.msra.mxu0 0.0
    %807 = vmatprep.subr.mxu0 0.0
    %808 = vmatpush1.msra.mxu0 0.0
    %809 = vmatprep.subr.mxu0 0.0
    %810 = vmatpush1.msra.mxu0 0.0
    %811 = vmatprep.mubr.f32.mxu0 0.0
    %812 = vmatmul.mubr.f32.gmra.mrb[0].mxu0 %v745
    %v813 = vpop.f32.mrb[0].mxu0
    %v814 = vadd.f32 0.0, %v813
    %v815 = vpop.f32.mrb[0].mxu0
    %816 = vdwg.mxu0
    %v817 = vadd.f32 %v253, %v814
    %v818 = vxor.u32 %v817, 2147483648
    %v819 = vmul.f32 %v818, 1.442695
    %v820 = vpow.pop %v819
    %v821 = vadd.f32 %v820, 1.0
    %v822 = vrcp.pop %v821
    %v823 = vmul.f32 1.0, %v822
    %v824 = vtanh.pop %v817
    %826 = vrot.lane.b32.xlu0 %v743, 32
    %v827 = vpop.permute.xlu0 %826
    %v829 = vmul.f32 %v823, %v827
    %831 = vrot.lane.b32.xlu0 %v824, 32
    %v832 = vpop.permute.xlu0 %831
    %v834 = vmul.f32 %v823, %v832
    %836 = vrot.lane.b32.xlu0 %v834, 32
    %v837 = vpop.permute.xlu0 %836
    %v839 = vadd.f32 %v829, %v837
    %v840 = vtanh.pop %v839
    %842 = vrot.lane.b32.xlu0 %v840, 32
    %v843 = vpop.permute.xlu0 %842
    %v845 = vmul.f32 %v823, %v843
    %vm846 = vcmp.gt.s32.totalorder %v256, 4
    %v847 = vsel %vm846, 1, 0
    %848 = vset.pattern.permute.xlu0 0
    %849 = vperm.xlu0 %848, %v847
    %v850 = vpop.permute.xlu0 %849
    %vm851 = vcmp.eq.s32.totalorder %v850, 1
    %852 = vrot.lane.b32.xlu0 %v737, 64
    %v853 = vpop.permute.xlu0 %852
    %v855 = vsel %vm851, %v845, %v853
    %v856 = vsel %vm851, %v839, %v827
    %858 = vrot.lane.b32.xlu0 %v855, 64
    %v859 = vpop.permute.xlu0 %858
    %v860 = vsel %vm261, %v859, 0
    %862 = vmatprep.subr.mxu0 0.0
    %863 = vmatpush1.msra.mxu0 %v257
    %864 = vmatprep.subr.mxu0 0.0
    %865 = vmatpush1.msra.mxu0 %v258
    %866 = vmatprep.subr.mxu0 0.0
    %867 = vmatpush1.msra.mxu0 %v259
    %868 = vmatprep.subr.mxu0 0.0
    %869 = vmatpush1.msra.mxu0 %v260
    %870 = vmatprep.subr.mxu0 0.0
    %871 = vmatpush1.msra.mxu0 0.0
    %872 = vmatprep.subr.mxu0 0.0
    %873 = vmatpush1.msra.mxu0 0.0
    %874 = vmatprep.subr.mxu0 0.0
    %875 = vmatpush1.msra.mxu0 0.0
    %876 = vmatprep.subr.mxu0 0.0
    %877 = vmatpush1.msra.mxu0 0.0
    %878 = vmatprep.subr.mxu0 0.0
    %879 = vmatpush1.msra.mxu0 0.0
    %880 = vmatprep.subr.mxu0 0.0
    %881 = vmatpush1.msra.mxu0 0.0
    %882 = vmatprep.subr.mxu0 0.0
    %883 = vmatpush1.msra.mxu0 0.0
    %884 = vmatprep.subr.mxu0 0.0
    %885 = vmatpush1.msra.mxu0 0.0
    %886 = vmatprep.subr.mxu0 0.0
    %887 = vmatpush1.msra.mxu0 0.0
    %888 = vmatprep.subr.mxu0 0.0
    %889 = vmatpush1.msra.mxu0 0.0
    %890 = vmatprep.subr.mxu0 0.0
    %891 = vmatpush1.msra.mxu0 0.0
    %892 = vmatprep.subr.mxu0 0.0
    %893 = vmatpush1.msra.mxu0 0.0
    %894 = vmatprep.subr.mxu0 0.0
    %895 = vmatpush1.msra.mxu0 0.0
    %896 = vmatprep.subr.mxu0 0.0
    %897 = vmatpush1.msra.mxu0 0.0
    %898 = vmatprep.subr.mxu0 0.0
    %899 = vmatpush1.msra.mxu0 0.0
    %900 = vmatprep.subr.mxu0 0.0
    %901 = vmatpush1.msra.mxu0 0.0
    %902 = vmatprep.subr.mxu0 0.0
    %903 = vmatpush1.msra.mxu0 0.0
    %904 = vmatprep.subr.mxu0 0.0
    %905 = vmatpush1.msra.mxu0 0.0
    %906 = vmatprep.subr.mxu0 0.0
    %907 = vmatpush1.msra.mxu0 0.0
    %908 = vmatprep.subr.mxu0 0.0
    %909 = vmatpush1.msra.mxu0 0.0
    %910 = vmatprep.subr.mxu0 0.0
    %911 = vmatpush1.msra.mxu0 0.0
    %912 = vmatprep.subr.mxu0 0.0
    %913 = vmatpush1.msra.mxu0 0.0
    %914 = vmatprep.subr.mxu0 0.0
    %915 = vmatpush1.msra.mxu0 0.0
    %916 = vmatprep.subr.mxu0 0.0
    %917 = vmatpush1.msra.mxu0 0.0
    %918 = vmatprep.subr.mxu0 0.0
    %919 = vmatpush1.msra.mxu0 0.0
    %920 = vmatprep.subr.mxu0 0.0
    %921 = vmatpush1.msra.mxu0 0.0
    %922 = vmatprep.subr.mxu0 0.0
    %923 = vmatpush1.msra.mxu0 0.0
    %924 = vmatprep.subr.mxu0 0.0
    %925 = vmatpush1.msra.mxu0 0.0
    %926 = vmatprep.mubr.f32.mxu0 0.0
    %927 = vmatmul.mubr.f32.gmra.mrb[0].mxu0 %v860
    %v928 = vpop.f32.mrb[0].mxu0
    %v929 = vadd.f32 0.0, %v928
    %v930 = vpop.f32.mrb[0].mxu0
    %931 = vdwg.mxu0
    %v933 = vrot.slane %v929, 6
    %v935 = vadd.f32 %v253, %v933
    %v936 = vxor.u32 %v935, 2147483648
    %v937 = vmul.f32 %v936, 1.442695
    %v938 = vpow.pop %v937
    %v939 = vadd.f32 %v938, 1.0
    %v940 = vrcp.pop %v939
    %v941 = vmul.f32 1.0, %v940
    %v942 = vtanh.pop %v935
    %v944 = vrot.slane %v856, 6
    %v946 = vmul.f32 %v941, %v944
    %948 = vrot.lane.b32.xlu0 %v942, 32
    %v949 = vpop.permute.xlu0 %948
    %v951 = vmul.f32 %v941, %v949
    %953 = vrot.lane.b32.xlu0 %v951, 32
    %v954 = vpop.permute.xlu0 %953
    %v956 = vadd.f32 %v946, %v954
    %v957 = vtanh.pop %v956
    %959 = vrot.lane.b32.xlu0 %v957, 32
    %v960 = vpop.permute.xlu0 %959
    %v962 = vmul.f32 %v941, %v960
    %vm963 = vcmp.gt.s32.totalorder %v256, 5
    %v964 = vsel %vm963, 1, 0
    %965 = vset.pattern.permute.xlu0 0
    %966 = vperm.xlu0 %965, %v964
    %v967 = vpop.permute.xlu0 %966
    %vm968 = vcmp.eq.s32.totalorder %v967, 1
    %v970 = vrot.slane %v962, 2
    %971 = vrot.lane.b32.xlu0 %v970, 64
    %v972 = vpop.permute.xlu0 %971
    %v975 = vsel %vm968, %v972, %v859
    %v977 = vrot.slane %v956, 2
    %978 = vrot.lane.b32.xlu0 %v977, 96
    %v979 = vpop.permute.xlu0 %978
    %981 = vrot.lane.b32.xlu0 %v856, 96
    %v982 = vpop.permute.xlu0 %981
    %v984 = vsel %vm968, %v979, %v982
    %v986 = vsel %vm261, %v975, 0
    %988 = vmatprep.subr.mxu0 0.0
    %989 = vmatpush1.msra.mxu0 %v257
    %990 = vmatprep.subr.mxu0 0.0
    %991 = vmatpush1.msra.mxu0 %v258
    %992 = vmatprep.subr.mxu0 0.0
    %993 = vmatpush1.msra.mxu0 %v259
    %994 = vmatprep.subr.mxu0 0.0
    %995 = vmatpush1.msra.mxu0 %v260
    %996 = vmatprep.subr.mxu0 0.0
    %997 = vmatpush1.msra.mxu0 0.0
    %998 = vmatprep.subr.mxu0 0.0
    %999 = vmatpush1.msra.mxu0 0.0
    %1000 = vmatprep.subr.mxu0 0.0
    %1001 = vmatpush1.msra.mxu0 0.0
    %1002 = vmatprep.subr.mxu0 0.0
    %1003 = vmatpush1.msra.mxu0 0.0
    %1004 = vmatprep.subr.mxu0 0.0
    %1005 = vmatpush1.msra.mxu0 0.0
    %1006 = vmatprep.subr.mxu0 0.0
    %1007 = vmatpush1.msra.mxu0 0.0
    %1008 = vmatprep.subr.mxu0 0.0
    %1009 = vmatpush1.msra.mxu0 0.0
    %1010 = vmatprep.subr.mxu0 0.0
    %1011 = vmatpush1.msra.mxu0 0.0
    %1012 = vmatprep.subr.mxu0 0.0
    %1013 = vmatpush1.msra.mxu0 0.0
    %1014 = vmatprep.subr.mxu0 0.0
    %1015 = vmatpush1.msra.mxu0 0.0
    %1016 = vmatprep.subr.mxu0 0.0
    %1017 = vmatpush1.msra.mxu0 0.0
    %1018 = vmatprep.subr.mxu0 0.0
    %1019 = vmatpush1.msra.mxu0 0.0
    %1020 = vmatprep.subr.mxu0 0.0
    %1021 = vmatpush1.msra.mxu0 0.0
    %1022 = vmatprep.subr.mxu0 0.0
    %1023 = vmatpush1.msra.mxu0 0.0
    %1024 = vmatprep.subr.mxu0 0.0
    %1025 = vmatpush1.msra.mxu0 0.0
    %1026 = vmatprep.subr.mxu0 0.0
    %1027 = vmatpush1.msra.mxu0 0.0
    %1028 = vmatprep.subr.mxu0 0.0
    %1029 = vmatpush1.msra.mxu0 0.0
    %1030 = vmatprep.subr.mxu0 0.0
    %1031 = vmatpush1.msra.mxu0 0.0
    %1032 = vmatprep.subr.mxu0 0.0
    %1033 = vmatpush1.msra.mxu0 0.0
    %1034 = vmatprep.subr.mxu0 0.0
    %1035 = vmatpush1.msra.mxu0 0.0
    %1036 = vmatprep.subr.mxu0 0.0
    %1037 = vmatpush1.msra.mxu0 0.0
    %1038 = vmatprep.subr.mxu0 0.0
    %1039 = vmatpush1.msra.mxu0 0.0
    %1040 = vmatprep.subr.mxu0 0.0
    %1041 = vmatpush1.msra.mxu0 0.0
    %1042 = vmatprep.subr.mxu0 0.0
    %1043 = vmatpush1.msra.mxu0 0.0
    %1044 = vmatprep.subr.mxu0 0.0
    %1045 = vmatpush1.msra.mxu0 0.0
    %1046 = vmatprep.subr.mxu0 0.0
    %1047 = vmatpush1.msra.mxu0 0.0
    %1048 = vmatprep.subr.mxu0 0.0
    %1049 = vmatpush1.msra.mxu0 0.0
    %1050 = vmatprep.subr.mxu0 0.0
    %1051 = vmatpush1.msra.mxu0 0.0
    %1052 = vmatprep.mubr.f32.mxu0 0.0
    %1053 = vmatmul.mubr.f32.gmra.mrb[0].mxu0 %v986
    %v1054 = vpop.f32.mrb[0].mxu0
    %v1055 = vadd.f32 0.0, %v1054
    %v1056 = vpop.f32.mrb[0].mxu0
    %1057 = vdwg.mxu0
    %v1059 = vrot.slane %v1055, 4
    %v1061 = vadd.f32 %v253, %v1059
    %v1062 = vxor.u32 %v1061, 2147483648
    %v1063 = vmul.f32 %v1062, 1.442695
    %v1064 = vpow.pop %v1063
    %v1065 = vadd.f32 %v1064, 1.0
    %v1066 = vrcp.pop %v1065
    %v1067 = vmul.f32 1.0, %v1066
    %v1068 = vtanh.pop %v1061
    %v1070 = vrot.slane %v984, 4
    %1071 = vrot.lane.b32.xlu0 %v1070, 32
    %v1072 = vpop.permute.xlu0 %1071
    %v1074 = vmul.f32 %v1067, %v1072
    %1076 = vrot.lane.b32.xlu0 %v1068, 32
    %v1077 = vpop.permute.xlu0 %1076
    %v1079 = vmul.f32 %v1067, %v1077
    %1081 = vrot.lane.b32.xlu0 %v1079, 32
    %v1082 = vpop.permute.xlu0 %1081
    %v1084 = vadd.f32 %v1074, %v1082
    %v1085 = vtanh.pop %v1084
    %1087 = vrot.lane.b32.xlu0 %v1085, 32
    %v1088 = vpop.permute.xlu0 %1087
    %v1090 = vmul.f32 %v1067, %v1088
    %vm1091 = vcmp.gt.s32.totalorder %v256, 6
    %v1092 = vsel %vm1091, 1, 0
    %1093 = vset.pattern.permute.xlu0 0
    %1094 = vperm.xlu0 %1093, %v1092
    %v1095 = vpop.permute.xlu0 %1094
    %vm1096 = vcmp.eq.s32.totalorder %v1095, 1
    %v1098 = vrot.slane %v1090, 4
    %1099 = vrot.lane.b32.xlu0 %v1098, 64
    %v1100 = vpop.permute.xlu0 %1099
    %v1102 = vsel %vm1096, %v1100, %v975
    %v1104 = vrot.slane %v1084, 4
    %1105 = vrot.lane.b32.xlu0 %v1104, 96
    %v1106 = vpop.permute.xlu0 %1105
    %v1108 = vsel %vm1096, %v1106, %v984
    %v1110 = vsel %vm261, %v1102, 0
    %1112 = vmatprep.subr.mxu0 0.0
    %1113 = vmatpush1.msra.mxu0 %v257
    %1114 = vmatprep.subr.mxu0 0.0
    %1115 = vmatpush1.msra.mxu0 %v258
    %1116 = vmatprep.subr.mxu0 0.0
    %1117 = vmatpush1.msra.mxu0 %v259
    %1118 = vmatprep.subr.mxu0 0.0
    %1119 = vmatpush1.msra.mxu0 %v260
    %1120 = vmatprep.subr.mxu0 0.0
    %1121 = vmatpush1.msra.mxu0 0.0
    %1122 = vmatprep.subr.mxu0 0.0
    %1123 = vmatpush1.msra.mxu0 0.0
    %1124 = vmatprep.subr.mxu0 0.0
    %1125 = vmatpush1.msra.mxu0 0.0
    %1126 = vmatprep.subr.mxu0 0.0
    %1127 = vmatpush1.msra.mxu0 0.0
    %1128 = vmatprep.subr.mxu0 0.0
    %1129 = vmatpush1.msra.mxu0 0.0
    %1130 = vmatprep.subr.mxu0 0.0
    %1131 = vmatpush1.msra.mxu0 0.0
    %1132 = vmatprep.subr.mxu0 0.0
    %1133 = vmatpush1.msra.mxu0 0.0
    %1134 = vmatprep.subr.mxu0 0.0
    %1135 = vmatpush1.msra.mxu0 0.0
    %1136 = vmatprep.subr.mxu0 0.0
    %1137 = vmatpush1.msra.mxu0 0.0
    %1138 = vmatprep.subr.mxu0 0.0
    %1139 = vmatpush1.msra.mxu0 0.0
    %1140 = vmatprep.subr.mxu0 0.0
    %1141 = vmatpush1.msra.mxu0 0.0
    %1142 = vmatprep.subr.mxu0 0.0
    %1143 = vmatpush1.msra.mxu0 0.0
    %1144 = vmatprep.subr.mxu0 0.0
    %1145 = vmatpush1.msra.mxu0 0.0
    %1146 = vmatprep.subr.mxu0 0.0
    %1147 = vmatpush1.msra.mxu0 0.0
    %1148 = vmatprep.subr.mxu0 0.0
    %1149 = vmatpush1.msra.mxu0 0.0
    %1150 = vmatprep.subr.mxu0 0.0
    %1151 = vmatpush1.msra.mxu0 0.0
    %1152 = vmatprep.subr.mxu0 0.0
    %1153 = vmatpush1.msra.mxu0 0.0
    %1154 = vmatprep.subr.mxu0 0.0
    %1155 = vmatpush1.msra.mxu0 0.0
    %1156 = vmatprep.subr.mxu0 0.0
    %1157 = vmatpush1.msra.mxu0 0.0
    %1158 = vmatprep.subr.mxu0 0.0
    %1159 = vmatpush1.msra.mxu0 0.0
    %1160 = vmatprep.subr.mxu0 0.0
    %1161 = vmatpush1.msra.mxu0 0.0
    %1162 = vmatprep.subr.mxu0 0.0
    %1163 = vmatpush1.msra.mxu0 0.0
    %1164 = vmatprep.subr.mxu0 0.0
    %1165 = vmatpush1.msra.mxu0 0.0
    %1166 = vmatprep.subr.mxu0 0.0
    %1167 = vmatpush1.msra.mxu0 0.0
    %1168 = vmatprep.subr.mxu0 0.0
    %1169 = vmatpush1.msra.mxu0 0.0
    %1170 = vmatprep.subr.mxu0 0.0
    %1171 = vmatpush1.msra.mxu0 0.0
    %1172 = vmatprep.subr.mxu0 0.0
    %1173 = vmatpush1.msra.mxu0 0.0
    %1174 = vmatprep.subr.mxu0 0.0
    %1175 = vmatpush1.msra.mxu0 0.0
    %1176 = vmatprep.mubr.f32.mxu0 0.0
    %1177 = vmatmul.mubr.f32.gmra.mrb[0].mxu0 %v1110
    %v1178 = vpop.f32.mrb[0].mxu0
    %v1179 = vadd.f32 0.0, %v1178
    %v1180 = vpop.f32.mrb[0].mxu0
    %1181 = vdwg.mxu0
    %v1183 = vrot.slane %v1179, 2
    %v1185 = vadd.f32 %v253, %v1183
    %v1186 = vxor.u32 %v1185, 2147483648
    %v1187 = vmul.f32 %v1186, 1.442695
    %v1188 = vpow.pop %v1187
    %v1189 = vadd.f32 %v1188, 1.0
    %v1190 = vrcp.pop %v1189
    %v1191 = vmul.f32 1.0, %v1190
    %v1192 = vtanh.pop %v1185
    %v1194 = vrot.slane %v1108, 2
    %1195 = vrot.lane.b32.xlu0 %v1194, 32
    %v1196 = vpop.permute.xlu0 %1195
    %v1198 = vmul.f32 %v1191, %v1196
    %1200 = vrot.lane.b32.xlu0 %v1192, 32
    %v1201 = vpop.permute.xlu0 %1200
    %v1203 = vmul.f32 %v1191, %v1201
    %1205 = vrot.lane.b32.xlu0 %v1203, 32
    %v1206 = vpop.permute.xlu0 %1205
    %v1208 = vadd.f32 %v1198, %v1206
    %vm1209 = vcmp.gt.s32.totalorder %v256, 7
    %v1210 = vsel %vm1209, 1, 0
    %1211 = vset.pattern.permute.xlu0 0
    %1212 = vperm.xlu0 %1211, %v1210
    %v1213 = vpop.permute.xlu0 %1212
    %vm1214 = vcmp.eq.s32.totalorder %v1213, 1
    %v1216 = vrot.slane %v1208, 6
    %1217 = vrot.lane.b32.xlu0 %v1216, 96
    %v1218 = vpop.permute.xlu0 %1217
    %v1220 = vsel %vm1214, %v1218, %v1108
    %v1221 = vld [vmem:[%s6] sm:$0xff]
    %v1222 = vld [vmem:[%s6 + $0x8] sm:$0xff]
    %v1223 = vld [vmem:[%s6 + $0x10] sm:$0xff]
    %v1224 = vld [vmem:[%s6 + $0x18] sm:$0xff]
    %v1225 = vld [vmem:[%s6 + $0x20] sm:$0xff]
    %v1226 = vld [vmem:[%s6 + $0x28] sm:$0xff]
    %v1227 = vld [vmem:[%s6 + $0x30] sm:$0xff]
    %v1228 = vld [vmem:[%s6 + $0x38] sm:$0xff]
    %v1229 = vld [vmem:[%s6 + $0x40] sm:$0xff]
    %v1230 = vld [vmem:[%s6 + $0x48] sm:$0xff]
    %v1231 = vld [vmem:[%s6 + $0x50] sm:$0xff]
    %v1232 = vld [vmem:[%s6 + $0x58] sm:$0xff]
    %v1233 = vld [vmem:[%s6 + $0x60] sm:$0xff]
    %v1234 = vld [vmem:[%s6 + $0x68] sm:$0xff]
    %v1235 = vld [vmem:[%s6 + $0x70] sm:$0xff]
    %v1236 = vld [vmem:[%s6 + $0x78] sm:$0xff]
    %v1237 = vmul.f32 %v1221, %v1221
    %v1238 = vmul.f32 %v1222, %v1222
    %v1239 = vmul.f32 %v1223, %v1223
    %v1240 = vmul.f32 %v1224, %v1224
    %v1241 = vmul.f32 %v1225, %v1225
    %v1242 = vmul.f32 %v1226, %v1226
    %v1243 = vmul.f32 %v1227, %v1227
    %v1244 = vmul.f32 %v1228, %v1228
    %v1245 = vmul.f32 %v1229, %v1229
    %v1246 = vmul.f32 %v1230, %v1230
    %v1247 = vmul.f32 %v1231, %v1231
    %v1248 = vmul.f32 %v1232, %v1232
    %v1249 = vmul.f32 %v1233, %v1233
    %v1250 = vmul.f32 %v1234, %v1234
    %v1251 = vmul.f32 %v1235, %v1235
    %v1252 = vmul.f32 %v1236, %v1236
    %v1253 = vsel %vm261, %v1237, 0.0
    %1254 = vadd.xlane.f32.xlu0 %v1253
    %v1255 = vpop.xlane.xlu0 %1254
    %v1256 = vsel %vm261, %v1238, 0.0
    %1257 = vadd.xlane.f32.xlu0 %v1256
    %v1258 = vpop.xlane.xlu0 %1257
    %v1259 = vsel %vm261, %v1239, 0.0
    %1260 = vadd.xlane.f32.xlu0 %v1259
    %v1261 = vpop.xlane.xlu0 %1260
    %v1262 = vsel %vm261, %v1240, 0.0
    %1263 = vadd.xlane.f32.xlu0 %v1262
    %v1264 = vpop.xlane.xlu0 %1263
    %v1265 = vsel %vm261, %v1241, 0.0
    %1266 = vadd.xlane.f32.xlu0 %v1265
    %v1267 = vpop.xlane.xlu0 %1266
    %v1268 = vsel %vm261, %v1242, 0.0
    %1269 = vadd.xlane.f32.xlu0 %v1268
    %v1270 = vpop.xlane.xlu0 %1269
    %v1271 = vsel %vm261, %v1243, 0.0
    %1272 = vadd.xlane.f32.xlu0 %v1271
    %v1273 = vpop.xlane.xlu0 %1272
    %v1274 = vsel %vm261, %v1244, 0.0
    %1275 = vadd.xlane.f32.xlu0 %v1274
    %v1276 = vpop.xlane.xlu0 %1275
    %v1277 = vsel %vm261, %v1245, 0.0
    %1278 = vadd.xlane.f32.xlu0 %v1277
    %v1279 = vpop.xlane.xlu0 %1278
    %v1280 = vsel %vm261, %v1246, 0.0
    %1281 = vadd.xlane.f32.xlu0 %v1280
    %v1282 = vpop.xlane.xlu0 %1281
    %v1283 = vsel %vm261, %v1247, 0.0
    %1284 = vadd.xlane.f32.xlu0 %v1283
    %v1285 = vpop.xlane.xlu0 %1284
    %v1286 = vsel %vm261, %v1248, 0.0
    %1287 = vadd.xlane.f32.xlu0 %v1286
    %v1288 = vpop.xlane.xlu0 %1287
    %v1289 = vsel %vm261, %v1249, 0.0
    %1290 = vadd.xlane.f32.xlu0 %v1289
    %v1291 = vpop.xlane.xlu0 %1290
    %v1292 = vsel %vm261, %v1250, 0.0
    %1293 = vadd.xlane.f32.xlu0 %v1292
    %v1294 = vpop.xlane.xlu0 %1293
    %v1295 = vsel %vm261, %v1251, 0.0
    %1296 = vadd.xlane.f32.xlu0 %v1295
    %v1297 = vpop.xlane.xlu0 %1296
    %v1298 = vsel %vm261, %v1252, 0.0
    %1299 = vadd.xlane.f32.xlu0 %v1298
    %v1300 = vpop.xlane.xlu0 %1299
    %v1301 = vrsqrt.pop %v1255
    %v1302 = vmul.f32 %v1255, %v1301
    %vm1303 = vcmp.eq.f32.partialorder %v1255, inf
    %v1304 = vsel %vm1303, %v1255, %v1302
    %vm1305 = vcmp.eq.f32.partialorder %v1255, 0.0
    %v1306 = vand.u32 %v1255, 2147483648
    %v1307 = vsel %vm1305, %v1306, %v1304
    %v1308 = vrsqrt.pop %v1258
    %v1309 = vmul.f32 %v1258, %v1308
    %vm1310 = vcmp.eq.f32.partialorder %v1258, inf
    %v1311 = vsel %vm1310, %v1258, %v1309
    %vm1312 = vcmp.eq.f32.partialorder %v1258, 0.0
    %v1313 = vand.u32 %v1258, 2147483648
    %v1314 = vsel %vm1312, %v1313, %v1311
    %v1315 = vrsqrt.pop %v1261
    %v1316 = vmul.f32 %v1261, %v1315
    %vm1317 = vcmp.eq.f32.partialorder %v1261, inf
    %v1318 = vsel %vm1317, %v1261, %v1316
    %vm1319 = vcmp.eq.f32.partialorder %v1261, 0.0
    %v1320 = vand.u32 %v1261, 2147483648
    %v1321 = vsel %vm1319, %v1320, %v1318
    %v1322 = vrsqrt.pop %v1264
    %v1323 = vmul.f32 %v1264, %v1322
    %vm1324 = vcmp.eq.f32.partialorder %v1264, inf
    %v1325 = vsel %vm1324, %v1264, %v1323
    %vm1326 = vcmp.eq.f32.partialorder %v1264, 0.0
    %v1327 = vand.u32 %v1264, 2147483648
    %v1328 = vsel %vm1326, %v1327, %v1325
    %v1329 = vrsqrt.pop %v1267
    %v1330 = vmul.f32 %v1267, %v1329
    %vm1331 = vcmp.eq.f32.partialorder %v1267, inf
    %v1332 = vsel %vm1331, %v1267, %v1330
    %vm1333 = vcmp.eq.f32.partialorder %v1267, 0.0
    %v1334 = vand.u32 %v1267, 2147483648
    %v1335 = vsel %vm1333, %v1334, %v1332
    %v1336 = vrsqrt.pop %v1270
    %v1337 = vmul.f32 %v1270, %v1336
    %vm1338 = vcmp.eq.f32.partialorder %v1270, inf
    %v1339 = vsel %vm1338, %v1270, %v1337
    %vm1340 = vcmp.eq.f32.partialorder %v1270, 0.0
    %v1341 = vand.u32 %v1270, 2147483648
    %v1342 = vsel %vm1340, %v1341, %v1339
    %v1343 = vrsqrt.pop %v1273
    %v1344 = vmul.f32 %v1273, %v1343
    %vm1345 = vcmp.eq.f32.partialorder %v1273, inf
    %v1346 = vsel %vm1345, %v1273, %v1344
    %vm1347 = vcmp.eq.f32.partialorder %v1273, 0.0
    %v1348 = vand.u32 %v1273, 2147483648
    %v1349 = vsel %vm1347, %v1348, %v1346
    %v1350 = vrsqrt.pop %v1276
    %v1351 = vmul.f32 %v1276, %v1350
    %vm1352 = vcmp.eq.f32.partialorder %v1276, inf
    %v1353 = vsel %vm1352, %v1276, %v1351
    %vm1354 = vcmp.eq.f32.partialorder %v1276, 0.0
    %v1355 = vand.u32 %v1276, 2147483648
    %v1356 = vsel %vm1354, %v1355, %v1353
    %v1357 = vrsqrt.pop %v1279
    %v1358 = vmul.f32 %v1279, %v1357
    %vm1359 = vcmp.eq.f32.partialorder %v1279, inf
    %v1360 = vsel %vm1359, %v1279, %v1358
    %vm1361 = vcmp.eq.f32.partialorder %v1279, 0.0
    %v1362 = vand.u32 %v1279, 2147483648
    %v1363 = vsel %vm1361, %v1362, %v1360
    %v1364 = vrsqrt.pop %v1282
    %v1365 = vmul.f32 %v1282, %v1364
    %vm1366 = vcmp.eq.f32.partialorder %v1282, inf
    %v1367 = vsel %vm1366, %v1282, %v1365
    %vm1368 = vcmp.eq.f32.partialorder %v1282, 0.0
    %v1369 = vand.u32 %v1282, 2147483648
    %v1370 = vsel %vm1368, %v1369, %v1367
    %v1371 = vrsqrt.pop %v1285
    %v1372 = vmul.f32 %v1285, %v1371
    %vm1373 = vcmp.eq.f32.partialorder %v1285, inf
    %v1374 = vsel %vm1373, %v1285, %v1372
    %vm1375 = vcmp.eq.f32.partialorder %v1285, 0.0
    %v1376 = vand.u32 %v1285, 2147483648
    %v1377 = vsel %vm1375, %v1376, %v1374
    %v1378 = vrsqrt.pop %v1288
    %v1379 = vmul.f32 %v1288, %v1378
    %vm1380 = vcmp.eq.f32.partialorder %v1288, inf
    %v1381 = vsel %vm1380, %v1288, %v1379
    %vm1382 = vcmp.eq.f32.partialorder %v1288, 0.0
    %v1383 = vand.u32 %v1288, 2147483648
    %v1384 = vsel %vm1382, %v1383, %v1381
    %v1385 = vrsqrt.pop %v1291
    %v1386 = vmul.f32 %v1291, %v1385
    %vm1387 = vcmp.eq.f32.partialorder %v1291, inf
    %v1388 = vsel %vm1387, %v1291, %v1386
    %vm1389 = vcmp.eq.f32.partialorder %v1291, 0.0
    %v1390 = vand.u32 %v1291, 2147483648
    %v1391 = vsel %vm1389, %v1390, %v1388
    %v1392 = vrsqrt.pop %v1294
    %v1393 = vmul.f32 %v1294, %v1392
    %vm1394 = vcmp.eq.f32.partialorder %v1294, inf
    %v1395 = vsel %vm1394, %v1294, %v1393
    %vm1396 = vcmp.eq.f32.partialorder %v1294, 0.0
    %v1397 = vand.u32 %v1294, 2147483648
    %v1398 = vsel %vm1396, %v1397, %v1395
    %v1399 = vrsqrt.pop %v1297
    %v1400 = vmul.f32 %v1297, %v1399
    %vm1401 = vcmp.eq.f32.partialorder %v1297, inf
    %v1402 = vsel %vm1401, %v1297, %v1400
    %vm1403 = vcmp.eq.f32.partialorder %v1297, 0.0
    %v1404 = vand.u32 %v1297, 2147483648
    %v1405 = vsel %vm1403, %v1404, %v1402
    %v1406 = vrsqrt.pop %v1300
    %v1407 = vmul.f32 %v1300, %v1406
    %vm1408 = vcmp.eq.f32.partialorder %v1300, inf
    %v1409 = vsel %vm1408, %v1300, %v1407
    %vm1410 = vcmp.eq.f32.partialorder %v1300, 0.0
    %v1411 = vand.u32 %v1300, 2147483648
    %v1412 = vsel %vm1410, %v1411, %v1409
    %v1413 = vadd.f32 %v1307, 1e-08
    %v1414 = vadd.f32 %v1314, 1e-08
    %v1415 = vadd.f32 %v1321, 1e-08
    %v1416 = vadd.f32 %v1328, 1e-08
    %v1417 = vadd.f32 %v1335, 1e-08
    %v1418 = vadd.f32 %v1342, 1e-08
    %v1419 = vadd.f32 %v1349, 1e-08
    %v1420 = vadd.f32 %v1356, 1e-08
    %v1421 = vadd.f32 %v1363, 1e-08
    %v1422 = vadd.f32 %v1370, 1e-08
    %v1423 = vadd.f32 %v1377, 1e-08
    %v1424 = vadd.f32 %v1384, 1e-08
    %v1425 = vadd.f32 %v1391, 1e-08
    %v1426 = vadd.f32 %v1398, 1e-08
    %v1427 = vadd.f32 %v1405, 1e-08
    %v1428 = vadd.f32 %v1412, 1e-08
    %v1429 = vrcp.pop %v1413
    %v1430 = vmul.f32 %v1221, %v1429
    %v1431 = vrcp.pop %v1414
    %v1432 = vmul.f32 %v1222, %v1431
    %v1433 = vrcp.pop %v1415
    %v1434 = vmul.f32 %v1223, %v1433
    %v1435 = vrcp.pop %v1416
    %v1436 = vmul.f32 %v1224, %v1435
    %v1437 = vrcp.pop %v1417
    %v1438 = vmul.f32 %v1225, %v1437
    %v1439 = vrcp.pop %v1418
    %v1440 = vmul.f32 %v1226, %v1439
    %v1441 = vrcp.pop %v1419
    %v1442 = vmul.f32 %v1227, %v1441
    %v1443 = vrcp.pop %v1420
    %v1444 = vmul.f32 %v1228, %v1443
    %v1445 = vrcp.pop %v1421
    %v1446 = vmul.f32 %v1229, %v1445
    %v1447 = vrcp.pop %v1422
    %v1448 = vmul.f32 %v1230, %v1447
    %v1449 = vrcp.pop %v1423
    %v1450 = vmul.f32 %v1231, %v1449
    %v1451 = vrcp.pop %v1424
    %v1452 = vmul.f32 %v1232, %v1451
    %v1453 = vrcp.pop %v1425
    %v1454 = vmul.f32 %v1233, %v1453
    %v1455 = vrcp.pop %v1426
    %v1456 = vmul.f32 %v1234, %v1455
    %v1457 = vrcp.pop %v1427
    %v1458 = vmul.f32 %v1235, %v1457
    %v1459 = vrcp.pop %v1428
    %v1460 = vmul.f32 %v1236, %v1459
    %v1461 = vld [vmem:[%s7] sm:$0xff]
    %v1462 = vld [vmem:[%s7 + $0x8] sm:$0xff]
    %v1463 = vld [vmem:[%s7 + $0x10] sm:$0xff]
    %v1464 = vld [vmem:[%s7 + $0x18] sm:$0xff]
    %v1466 = vsel %vm261, %v1430, 0
    %v1469 = vsel %vm261, %v1432, 0
    %v1472 = vsel %vm261, %v1434, 0
    %v1475 = vsel %vm261, %v1436, 0
    %v1478 = vsel %vm261, %v1438, 0
    %v1481 = vsel %vm261, %v1440, 0
    %v1484 = vsel %vm261, %v1442, 0
    %v1487 = vsel %vm261, %v1444, 0
    %v1490 = vsel %vm261, %v1446, 0
    %v1493 = vsel %vm261, %v1448, 0
    %v1496 = vsel %vm261, %v1450, 0
    %v1499 = vsel %vm261, %v1452, 0
    %v1502 = vsel %vm261, %v1454, 0
    %v1505 = vsel %vm261, %v1456, 0
    %v1508 = vsel %vm261, %v1458, 0
    %v1511 = vsel %vm261, %v1460, 0
    %1513 = vmatprep.subr.mxu0 0.0
    %1514 = vmatpush1.msra.mxu0 %v1461
    %1515 = vmatprep.subr.mxu0 0.0
    %1516 = vmatpush1.msra.mxu0 %v1462
    %1517 = vmatprep.subr.mxu0 0.0
    %1518 = vmatpush1.msra.mxu0 %v1463
    %1519 = vmatprep.subr.mxu0 0.0
    %1520 = vmatpush1.msra.mxu0 %v1464
    %1521 = vmatprep.subr.mxu0 0.0
    %1522 = vmatpush1.msra.mxu0 0.0
    %1523 = vmatprep.subr.mxu0 0.0
    %1524 = vmatpush1.msra.mxu0 0.0
    %1525 = vmatprep.subr.mxu0 0.0
    %1526 = vmatpush1.msra.mxu0 0.0
    %1527 = vmatprep.subr.mxu0 0.0
    %1528 = vmatpush1.msra.mxu0 0.0
    %1529 = vmatprep.subr.mxu0 0.0
    %1530 = vmatpush1.msra.mxu0 0.0
    %1531 = vmatprep.subr.mxu0 0.0
    %1532 = vmatpush1.msra.mxu0 0.0
    %1533 = vmatprep.subr.mxu0 0.0
    %1534 = vmatpush1.msra.mxu0 0.0
    %1535 = vmatprep.subr.mxu0 0.0
    %1536 = vmatpush1.msra.mxu0 0.0
    %1537 = vmatprep.subr.mxu0 0.0
    %1538 = vmatpush1.msra.mxu0 0.0
    %1539 = vmatprep.subr.mxu0 0.0
    %1540 = vmatpush1.msra.mxu0 0.0
    %1541 = vmatprep.subr.mxu0 0.0
    %1542 = vmatpush1.msra.mxu0 0.0
    %1543 = vmatprep.subr.mxu0 0.0
    %1544 = vmatpush1.msra.mxu0 0.0
    %1545 = vmatprep.subr.mxu0 0.0
    %1546 = vmatpush1.msra.mxu0 0.0
    %1547 = vmatprep.subr.mxu0 0.0
    %1548 = vmatpush1.msra.mxu0 0.0
    %1549 = vmatprep.subr.mxu0 0.0
    %1550 = vmatpush1.msra.mxu0 0.0
    %1551 = vmatprep.subr.mxu0 0.0
    %1552 = vmatpush1.msra.mxu0 0.0
    %1553 = vmatprep.subr.mxu0 0.0
    %1554 = vmatpush1.msra.mxu0 0.0
    %1555 = vmatprep.subr.mxu0 0.0
    %1556 = vmatpush1.msra.mxu0 0.0
    %1557 = vmatprep.subr.mxu0 0.0
    %1558 = vmatpush1.msra.mxu0 0.0
    %1559 = vmatprep.subr.mxu0 0.0
    %1560 = vmatpush1.msra.mxu0 0.0
    %1561 = vmatprep.subr.mxu0 0.0
    %1562 = vmatpush1.msra.mxu0 0.0
    %1563 = vmatprep.subr.mxu0 0.0
    %1564 = vmatpush1.msra.mxu0 0.0
    %1565 = vmatprep.subr.mxu0 0.0
    %1566 = vmatpush1.msra.mxu0 0.0
    %1567 = vmatprep.subr.mxu0 0.0
    %1568 = vmatpush1.msra.mxu0 0.0
    %1569 = vmatprep.subr.mxu0 0.0
    %1570 = vmatpush1.msra.mxu0 0.0
    %1571 = vmatprep.subr.mxu0 0.0
    %1572 = vmatpush1.msra.mxu0 0.0
    %1573 = vmatprep.subr.mxu0 0.0
    %1574 = vmatpush1.msra.mxu0 0.0
    %1575 = vmatprep.subr.mxu0 0.0
    %1576 = vmatpush1.msra.mxu0 0.0
    %1577 = vmatprep.mubr.f32.mxu0 0.0
    %1578 = vmatmul.mubr.f32.gmra.mrb[0].mxu0 %v1466
    %v1579 = vpop.f32.mrb[0].mxu0
    %v1580 = vadd.f32 0.0, %v1579
    %v1581 = vpop.f32.mrb[0].mxu0
    %1582 = vmatprep.mubr.f32.mxu0 0.0
    %1583 = vmatmul.mubr.f32.gmra.mrb[0].mxu0 %v1469
    %v1584 = vpop.f32.mrb[0].mxu0
    %v1585 = vadd.f32 0.0, %v1584
    %v1586 = vpop.f32.mrb[0].mxu0
    %1587 = vmatprep.mubr.f32.mxu0 0.0
    %1588 = vmatmul.mubr.f32.gmra.mrb[0].mxu0 %v1472
    %v1589 = vpop.f32.mrb[0].mxu0
    %v1590 = vadd.f32 0.0, %v1589
    %v1591 = vpop.f32.mrb[0].mxu0
    %1592 = vmatprep.mubr.f32.mxu0 0.0
    %1593 = vmatmul.mubr.f32.gmra.mrb[0].mxu0 %v1475
    %v1594 = vpop.f32.mrb[0].mxu0
    %v1595 = vadd.f32 0.0, %v1594
    %v1596 = vpop.f32.mrb[0].mxu0
    %1597 = vmatprep.mubr.f32.mxu0 0.0
    %1598 = vmatmul.mubr.f32.gmra.mrb[0].mxu0 %v1478
    %v1599 = vpop.f32.mrb[0].mxu0
    %v1600 = vadd.f32 0.0, %v1599
    %v1601 = vpop.f32.mrb[0].mxu0
    %1602 = vmatprep.mubr.f32.mxu0 0.0
    %1603 = vmatmul.mubr.f32.gmra.mrb[0].mxu0 %v1481
    %v1604 = vpop.f32.mrb[0].mxu0
    %v1605 = vadd.f32 0.0, %v1604
    %v1606 = vpop.f32.mrb[0].mxu0
    %1607 = vmatprep.mubr.f32.mxu0 0.0
    %1608 = vmatmul.mubr.f32.gmra.mrb[0].mxu0 %v1484
    %v1609 = vpop.f32.mrb[0].mxu0
    %v1610 = vadd.f32 0.0, %v1609
    %v1611 = vpop.f32.mrb[0].mxu0
    %1612 = vmatprep.mubr.f32.mxu0 0.0
    %1613 = vmatmul.mubr.f32.gmra.mrb[0].mxu0 %v1487
    %v1614 = vpop.f32.mrb[0].mxu0
    %v1615 = vadd.f32 0.0, %v1614
    %v1616 = vpop.f32.mrb[0].mxu0
    %1617 = vmatprep.mubr.f32.mxu0 0.0
    %1618 = vmatmul.mubr.f32.gmra.mrb[0].mxu0 %v1490
    %v1619 = vpop.f32.mrb[0].mxu0
    %v1620 = vadd.f32 0.0, %v1619
    %v1621 = vpop.f32.mrb[0].mxu0
    %1622 = vmatprep.mubr.f32.mxu0 0.0
    %1623 = vmatmul.mubr.f32.gmra.mrb[0].mxu0 %v1493
    %v1624 = vpop.f32.mrb[0].mxu0
    %v1625 = vadd.f32 0.0, %v1624
    %v1626 = vpop.f32.mrb[0].mxu0
    %1627 = vmatprep.mubr.f32.mxu0 0.0
    %1628 = vmatmul.mubr.f32.gmra.mrb[0].mxu0 %v1496
    %v1629 = vpop.f32.mrb[0].mxu0
    %v1630 = vadd.f32 0.0, %v1629
    %v1631 = vpop.f32.mrb[0].mxu0
    %1632 = vmatprep.mubr.f32.mxu0 0.0
    %1633 = vmatmul.mubr.f32.gmra.mrb[0].mxu0 %v1499
    %v1634 = vpop.f32.mrb[0].mxu0
    %v1635 = vadd.f32 0.0, %v1634
    %v1636 = vpop.f32.mrb[0].mxu0
    %1637 = vmatprep.mubr.f32.mxu0 0.0
    %1638 = vmatmul.mubr.f32.gmra.mrb[0].mxu0 %v1502
    %v1639 = vpop.f32.mrb[0].mxu0
    %v1640 = vadd.f32 0.0, %v1639
    %v1641 = vpop.f32.mrb[0].mxu0
    %1642 = vmatprep.mubr.f32.mxu0 0.0
    %1643 = vmatmul.mubr.f32.gmra.mrb[0].mxu0 %v1505
    %v1644 = vpop.f32.mrb[0].mxu0
    %v1645 = vadd.f32 0.0, %v1644
    %v1646 = vpop.f32.mrb[0].mxu0
    %1647 = vmatprep.mubr.f32.mxu0 0.0
    %1648 = vmatmul.mubr.f32.gmra.mrb[0].mxu0 %v1508
    %v1649 = vpop.f32.mrb[0].mxu0
    %v1650 = vadd.f32 0.0, %v1649
    %v1651 = vpop.f32.mrb[0].mxu0
    %1652 = vmatprep.mubr.f32.mxu0 0.0
    %1653 = vmatmul.mubr.f32.gmra.mrb[0].mxu0 %v1511
    %v1654 = vpop.f32.mrb[0].mxu0
    %v1655 = vadd.f32 0.0, %v1654
    %v1656 = vpop.f32.mrb[0].mxu0
    %1657 = vdwg.mxu0
    %v1658 = vld [vmem:[%s8] sm:$0xff]
    %v1659 = vld [vmem:[%s8 + $0x8] sm:$0xff]
    %v1660 = vld [vmem:[%s8 + $0x10] sm:$0xff]
    %v1661 = vld [vmem:[%s8 + $0x18] sm:$0xff]
    %v1662 = vld [vmem:[%s9] sm:$0x1]
    %v1664 = vlaneseq
    %v1665 = vshrl.u32 %v1664, 7
    %v1666 = vsub.s32 0, %v1665
    %v1667 = vrot.slane %v1662, %v1666
    %v1670 = vsel %vm261, %v1220, 0
    %1672 = vmatprep.subr.mxu0 0.0
    %1673 = vmatpush1.msra.mxu0 %v1658
    %1674 = vmatprep.subr.mxu0 0.0
    %1675 = vmatpush1.msra.mxu0 %v1659
    %1676 = vmatprep.subr.mxu0 0.0
    %1677 = vmatpush1.msra.mxu0 %v1660
    %1678 = vmatprep.subr.mxu0 0.0
    %1679 = vmatpush1.msra.mxu0 %v1661
    %1680 = vmatprep.subr.mxu0 0.0
    %1681 = vmatpush1.msra.mxu0 0.0
    %1682 = vmatprep.subr.mxu0 0.0
    %1683 = vmatpush1.msra.mxu0 0.0
    %1684 = vmatprep.subr.mxu0 0.0
    %1685 = vmatpush1.msra.mxu0 0.0
    %1686 = vmatprep.subr.mxu0 0.0
    %1687 = vmatpush1.msra.mxu0 0.0
    %1688 = vmatprep.subr.mxu0 0.0
    %1689 = vmatpush1.msra.mxu0 0.0
    %1690 = vmatprep.subr.mxu0 0.0
    %1691 = vmatpush1.msra.mxu0 0.0
    %1692 = vmatprep.subr.mxu0 0.0
    %1693 = vmatpush1.msra.mxu0 0.0
    %1694 = vmatprep.subr.mxu0 0.0
    %1695 = vmatpush1.msra.mxu0 0.0
    %1696 = vmatprep.subr.mxu0 0.0
    %1697 = vmatpush1.msra.mxu0 0.0
    %1698 = vmatprep.subr.mxu0 0.0
    %1699 = vmatpush1.msra.mxu0 0.0
    %1700 = vmatprep.subr.mxu0 0.0
    %1701 = vmatpush1.msra.mxu0 0.0
    %1702 = vmatprep.subr.mxu0 0.0
    %1703 = vmatpush1.msra.mxu0 0.0
    %1704 = vmatprep.subr.mxu0 0.0
    %1705 = vmatpush1.msra.mxu0 0.0
    %1706 = vmatprep.subr.mxu0 0.0
    %1707 = vmatpush1.msra.mxu0 0.0
    %1708 = vmatprep.subr.mxu0 0.0
    %1709 = vmatpush1.msra.mxu0 0.0
    %1710 = vmatprep.subr.mxu0 0.0
    %1711 = vmatpush1.msra.mxu0 0.0
    %1712 = vmatprep.subr.mxu0 0.0
    %1713 = vmatpush1.msra.mxu0 0.0
    %1714 = vmatprep.subr.mxu0 0.0
    %1715 = vmatpush1.msra.mxu0 0.0
    %1716 = vmatprep.subr.mxu0 0.0
    %1717 = vmatpush1.msra.mxu0 0.0
    %1718 = vmatprep.subr.mxu0 0.0
    %1719 = vmatpush1.msra.mxu0 0.0
    %1720 = vmatprep.subr.mxu0 0.0
    %1721 = vmatpush1.msra.mxu0 0.0
    %1722 = vmatprep.subr.mxu0 0.0
    %1723 = vmatpush1.msra.mxu0 0.0
    %1724 = vmatprep.subr.mxu0 0.0
    %1725 = vmatpush1.msra.mxu0 0.0
    %1726 = vmatprep.subr.mxu0 0.0
    %1727 = vmatpush1.msra.mxu0 0.0
    %1728 = vmatprep.subr.mxu0 0.0
    %1729 = vmatpush1.msra.mxu0 0.0
    %1730 = vmatprep.subr.mxu0 0.0
    %1731 = vmatpush1.msra.mxu0 0.0
    %1732 = vmatprep.subr.mxu0 0.0
    %1733 = vmatpush1.msra.mxu0 0.0
    %1734 = vmatprep.subr.mxu0 0.0
    %1735 = vmatpush1.msra.mxu0 0.0
    %1736 = vmatprep.mubr.f32.mxu0 0.0
    %1737 = vmatmul.mubr.f32.gmra.mrb[0].mxu0 %v1670
    %v1738 = vpop.f32.mrb[0].mxu0
    %v1739 = vadd.f32 %v1667, %v1738
    %v1740 = vpop.f32.mrb[0].mxu0
    %1741 = vdwg.mxu0
    %v1742 = vlaneseq
    %v1743 = vshrl.u32 %v1742, 7
    %v1744 = vsub.s32 0, %v1743
    %v1745 = vrot.slane %v1739, %v1744
    %v1746 = vadd.f32 %v1580, %v1745
    %v1747 = vadd.f32 %v1585, %v1745
    %v1748 = vadd.f32 %v1590, %v1745
    %v1749 = vadd.f32 %v1595, %v1745
    %v1750 = vadd.f32 %v1600, %v1745
    %v1751 = vadd.f32 %v1605, %v1745
    %v1752 = vadd.f32 %v1610, %v1745
    %v1753 = vadd.f32 %v1615, %v1745
    %v1754 = vmax.f32 %v1746, 0.0
    %v1755 = vmax.f32 %v1747, 0.0
    %v1756 = vmax.f32 %v1748, 0.0
    %v1757 = vmax.f32 %v1749, 0.0
    %v1758 = vmax.f32 %v1750, 0.0
    %v1759 = vmax.f32 %v1751, 0.0
    %v1760 = vmax.f32 %v1752, 0.0
    %v1761 = vmax.f32 %v1753, 0.0
    %v1762 = vld [vmem:[%s10] sm:$0xff]
    %v1763 = vld [vmem:[%s10 + $0x8] sm:$0xff]
    %v1764 = vld [vmem:[%s10 + $0x10] sm:$0xff]
    %v1765 = vld [vmem:[%s10 + $0x18] sm:$0xff]
    %v1766 = vld [vmem:[%s11] sm:$0x1]
    %v1768 = vlaneseq
    %v1769 = vshrl.u32 %v1768, 7
    %v1770 = vsub.s32 0, %v1769
    %v1771 = vrot.slane %v1766, %v1770
    %v1774 = vsel %vm261, %v1754, 0
    %v1777 = vsel %vm261, %v1755, 0
    %v1780 = vsel %vm261, %v1756, 0
    %v1783 = vsel %vm261, %v1757, 0
    %v1786 = vsel %vm261, %v1758, 0
    %v1789 = vsel %vm261, %v1759, 0
    %v1792 = vsel %vm261, %v1760, 0
    %v1795 = vsel %vm261, %v1761, 0
    %1797 = vmatprep.subr.mxu0 0.0
    %1798 = vmatpush1.msra.mxu0 %v1762
    %1799 = vmatprep.subr.mxu0 0.0
    %1800 = vmatpush1.msra.mxu0 %v1763
    %1801 = vmatprep.subr.mxu0 0.0
    %1802 = vmatpush1.msra.mxu0 %v1764
    %1803 = vmatprep.subr.mxu0 0.0
    %1804 = vmatpush1.msra.mxu0 %v1765
    %1805 = vmatprep.subr.mxu0 0.0
    %1806 = vmatpush1.msra.mxu0 0.0
    %1807 = vmatprep.subr.mxu0 0.0
    %1808 = vmatpush1.msra.mxu0 0.0
    %1809 = vmatprep.subr.mxu0 0.0
    %1810 = vmatpush1.msra.mxu0 0.0
    %1811 = vmatprep.subr.mxu0 0.0
    %1812 = vmatpush1.msra.mxu0 0.0
    %1813 = vmatprep.subr.mxu0 0.0
    %1814 = vmatpush1.msra.mxu0 0.0
    %1815 = vmatprep.subr.mxu0 0.0
    %1816 = vmatpush1.msra.mxu0 0.0
    %1817 = vmatprep.subr.mxu0 0.0
    %1818 = vmatpush1.msra.mxu0 0.0
    %1819 = vmatprep.subr.mxu0 0.0
    %1820 = vmatpush1.msra.mxu0 0.0
    %1821 = vmatprep.subr.mxu0 0.0
    %1822 = vmatpush1.msra.mxu0 0.0
    %1823 = vmatprep.subr.mxu0 0.0
    %1824 = vmatpush1.msra.mxu0 0.0
    %1825 = vmatprep.subr.mxu0 0.0
    %1826 = vmatpush1.msra.mxu0 0.0
    %1827 = vmatprep.subr.mxu0 0.0
    %1828 = vmatpush1.msra.mxu0 0.0
    %1829 = vmatprep.subr.mxu0 0.0
    %1830 = vmatpush1.msra.mxu0 0.0
    %1831 = vmatprep.subr.mxu0 0.0
    %1832 = vmatpush1.msra.mxu0 0.0
    %1833 = vmatprep.subr.mxu0 0.0
    %1834 = vmatpush1.msra.mxu0 0.0
    %1835 = vmatprep.subr.mxu0 0.0
    %1836 = vmatpush1.msra.mxu0 0.0
    %1837 = vmatprep.subr.mxu0 0.0
    %1838 = vmatpush1.msra.mxu0 0.0
    %1839 = vmatprep.subr.mxu0 0.0
    %1840 = vmatpush1.msra.mxu0 0.0
    %1841 = vmatprep.subr.mxu0 0.0
    %1842 = vmatpush1.msra.mxu0 0.0
    %1843 = vmatprep.subr.mxu0 0.0
    %1844 = vmatpush1.msra.mxu0 0.0
    %1845 = vmatprep.subr.mxu0 0.0
    %1846 = vmatpush1.msra.mxu0 0.0
    %1847 = vmatprep.subr.mxu0 0.0
    %1848 = vmatpush1.msra.mxu0 0.0
    %1849 = vmatprep.subr.mxu0 0.0
    %1850 = vmatpush1.msra.mxu0 0.0
    %1851 = vmatprep.subr.mxu0 0.0
    %1852 = vmatpush1.msra.mxu0 0.0
    %1853 = vmatprep.subr.mxu0 0.0
    %1854 = vmatpush1.msra.mxu0 0.0
    %1855 = vmatprep.subr.mxu0 0.0
    %1856 = vmatpush1.msra.mxu0 0.0
    %1857 = vmatprep.subr.mxu0 0.0
    %1858 = vmatpush1.msra.mxu0 0.0
    %1859 = vmatprep.subr.mxu0 0.0
    %1860 = vmatpush1.msra.mxu0 0.0
    %1861 = vmatprep.mubr.f32.mxu0 0.0
    %1862 = vmatmul.mubr.f32.gmra.mrb[0].mxu0 %v1774
    %v1863 = vpop.f32.mrb[0].mxu0
    %v1864 = vadd.f32 %v1771, %v1863
    %v1865 = vpop.f32.mrb[0].mxu0
    %1866 = vmatprep.mubr.f32.mxu0 0.0
    %1867 = vmatmul.mubr.f32.gmra.mrb[0].mxu0 %v1777
    %v1868 = vpop.f32.mrb[0].mxu0
    %v1869 = vadd.f32 %v1771, %v1868
    %v1870 = vpop.f32.mrb[0].mxu0
    %1871 = vmatprep.mubr.f32.mxu0 0.0
    %1872 = vmatmul.mubr.f32.gmra.mrb[0].mxu0 %v1780
    %v1873 = vpop.f32.mrb[0].mxu0
    %v1874 = vadd.f32 %v1771, %v1873
    %v1875 = vpop.f32.mrb[0].mxu0
    %1876 = vmatprep.mubr.f32.mxu0 0.0
    %1877 = vmatmul.mubr.f32.gmra.mrb[0].mxu0 %v1783
    %v1878 = vpop.f32.mrb[0].mxu0
    %v1879 = vadd.f32 %v1771, %v1878
    %v1880 = vpop.f32.mrb[0].mxu0
    %1881 = vmatprep.mubr.f32.mxu0 0.0
    %1882 = vmatmul.mubr.f32.gmra.mrb[0].mxu0 %v1786
    %v1883 = vpop.f32.mrb[0].mxu0
    %v1884 = vadd.f32 %v1771, %v1883
    %v1885 = vpop.f32.mrb[0].mxu0
    %1886 = vmatprep.mubr.f32.mxu0 0.0
    %1887 = vmatmul.mubr.f32.gmra.mrb[0].mxu0 %v1789
    %v1888 = vpop.f32.mrb[0].mxu0
    %v1889 = vadd.f32 %v1771, %v1888
    %v1890 = vpop.f32.mrb[0].mxu0
    %1891 = vmatprep.mubr.f32.mxu0 0.0
    %1892 = vmatmul.mubr.f32.gmra.mrb[0].mxu0 %v1792
    %v1893 = vpop.f32.mrb[0].mxu0
    %v1894 = vadd.f32 %v1771, %v1893
    %v1895 = vpop.f32.mrb[0].mxu0
    %1896 = vmatprep.mubr.f32.mxu0 0.0
    %1897 = vmatmul.mubr.f32.gmra.mrb[0].mxu0 %v1795
    %v1898 = vpop.f32.mrb[0].mxu0
    %v1899 = vadd.f32 %v1771, %v1898
    %v1900 = vpop.f32.mrb[0].mxu0
    %1901 = vdwg.mxu0
    %vm1902 = vcmask 15360
    %v1903 = vsel %vm1902, %v1864, -inf
    %v1904 = vsel %vm1902, %v1869, -inf
    %v1905 = vsel %vm1902, %v1874, -inf
    %v1906 = vsel %vm1902, %v1879, -inf
    %v1907 = vsel %vm1902, %v1884, -inf
    %v1908 = vmax.f32 %v1903, %v1907
    %v1909 = vsel %vm1902, %v1889, -inf
    %v1910 = vmax.f32 %v1904, %v1909
    %v1911 = vsel %vm1902, %v1894, -inf
    %v1912 = vmax.f32 %v1905, %v1911
    %v1913 = vsel %vm1902, %v1899, -inf
    %v1914 = vmax.f32 %v1906, %v1913
    %v1915 = vmax.f32 %v1908, %v1910
    %v1916 = vmax.f32 %v1912, %v1914
    %v1917 = vmax.f32 %v1915, %v1916
    %v1918 = vrot.slane %v1917, 4
    %v1919 = vmax.f32 %v1917, %v1918
    %v1920 = vrot.slane %v1919, 2
    %v1921 = vmax.f32 %v1919, %v1920
    %v1922 = vrot.slane %v1921, 1
    %v1923 = vmax.f32 %v1921, %v1922
    %v1924 = vsub.f32 %v1864, %v1923
    %v1925 = vsub.f32 %v1869, %v1923
    %v1926 = vsub.f32 %v1874, %v1923
    %v1927 = vsub.f32 %v1879, %v1923
    %v1928 = vsub.f32 %v1884, %v1923
    %v1929 = vsub.f32 %v1889, %v1923
    %v1930 = vsub.f32 %v1894, %v1923
    %v1931 = vsub.f32 %v1899, %v1923
    %v1932 = vmul.f32 %v1924, 1.442695
    %v1933 = vpow.pop %v1932
    %v1934 = vmul.f32 %v1925, 1.442695
    %v1935 = vpow.pop %v1934
    %v1936 = vmul.f32 %v1926, 1.442695
    %v1937 = vpow.pop %v1936
    %v1938 = vmul.f32 %v1927, 1.442695
    %v1939 = vpow.pop %v1938
    %v1940 = vmul.f32 %v1928, 1.442695
    %v1941 = vpow.pop %v1940
    %v1942 = vmul.f32 %v1929, 1.442695
    %v1943 = vpow.pop %v1942
    %v1944 = vmul.f32 %v1930, 1.442695
    %v1945 = vpow.pop %v1944
    %v1946 = vmul.f32 %v1931, 1.442695
    %v1947 = vpow.pop %v1946
    %v1948 = vsel %vm1902, %v1933, 0.0
    %v1949 = vsel %vm1902, %v1935, 0.0
    %v1950 = vadd.f32 %v1948, %v1949
    %v1951 = vsel %vm1902, %v1937, 0.0
    %v1952 = vadd.f32 %v1950, %v1951
    %v1953 = vsel %vm1902, %v1939, 0.0
    %v1954 = vadd.f32 %v1952, %v1953
    %v1955 = vsel %vm1902, %v1941, 0.0
    %v1956 = vadd.f32 %v1954, %v1955
    %v1957 = vsel %vm1902, %v1943, 0.0
    %v1958 = vadd.f32 %v1956, %v1957
    %v1959 = vsel %vm1902, %v1945, 0.0
    %v1960 = vadd.f32 %v1958, %v1959
    %v1961 = vsel %vm1902, %v1947, 0.0
    %v1962 = vadd.f32 %v1960, %v1961
    %v1963 = vrot.slane %v1962, 4
    %v1964 = vadd.f32 %v1962, %v1963
    %v1965 = vrot.slane %v1964, 2
    %v1966 = vadd.f32 %v1964, %v1965
    %v1967 = vrot.slane %v1966, 1
    %v1968 = vadd.f32 %v1966, %v1967
    %v1969 = vrcp.pop %v1968
    %v1970 = vmul.f32 %v1933, %v1969
    %v1971 = vmul.f32 %v1935, %v1969
    %v1972 = vmul.f32 %v1937, %v1969
    %v1973 = vmul.f32 %v1939, %v1969
    %v1974 = vmul.f32 %v1941, %v1969
    %v1975 = vmul.f32 %v1943, %v1969
    %v1976 = vmul.f32 %v1945, %v1969
    %v1977 = vmul.f32 %v1947, %v1969
    %1979 = vset.pattern.permute.xlu0 0
    %1980 = vperm.xlu0 %1979, %v1970
    %v1981 = vpop.permute.xlu0 %1980
    %1984 = vset.pattern.permute.xlu0 0
    %1985 = vperm.xlu0 %1984, %v1971
    %v1986 = vpop.permute.xlu0 %1985
    %1989 = vset.pattern.permute.xlu0 0
    %1990 = vperm.xlu0 %1989, %v1972
    %v1991 = vpop.permute.xlu0 %1990
    %1994 = vset.pattern.permute.xlu0 0
    %1995 = vperm.xlu0 %1994, %v1973
    %v1996 = vpop.permute.xlu0 %1995
    %1999 = vset.pattern.permute.xlu0 0
    %2000 = vperm.xlu0 %1999, %v1974
    %v2001 = vpop.permute.xlu0 %2000
    %2004 = vset.pattern.permute.xlu0 0
    %2005 = vperm.xlu0 %2004, %v1975
    %v2006 = vpop.permute.xlu0 %2005
    %2009 = vset.pattern.permute.xlu0 0
    %2010 = vperm.xlu0 %2009, %v1976
    %v2011 = vpop.permute.xlu0 %2010
    %2014 = vset.pattern.permute.xlu0 0
    %2015 = vperm.xlu0 %2014, %v1977
    %v2016 = vpop.permute.xlu0 %2015
    %v2018 = vmul.f32 %v1981, %v1430
    %v2019 = vmul.f32 %v1986, %v1432
    %v2020 = vmul.f32 %v1991, %v1434
    %v2021 = vmul.f32 %v1996, %v1436
    %v2022 = vmul.f32 %v2001, %v1438
    %v2023 = vmul.f32 %v2006, %v1440
    %v2024 = vmul.f32 %v2011, %v1442
    %v2025 = vmul.f32 %v2016, %v1444
    %v2026 = vsel %vm261, %v2018, 0.0
    %v2027 = vsel %vm261, %v2019, 0.0
    %v2028 = vadd.f32 %v2026, %v2027
    %v2029 = vsel %vm261, %v2020, 0.0
    %v2030 = vadd.f32 %v2028, %v2029
    %v2031 = vsel %vm261, %v2021, 0.0
    %v2032 = vadd.f32 %v2030, %v2031
    %v2033 = vsel %vm261, %v2022, 0.0
    %v2034 = vadd.f32 %v2032, %v2033
    %v2035 = vsel %vm261, %v2023, 0.0
    %v2036 = vadd.f32 %v2034, %v2035
    %v2037 = vsel %vm261, %v2024, 0.0
    %v2038 = vadd.f32 %v2036, %v2037
    %v2039 = vsel %vm261, %v2025, 0.0
    %v2040 = vadd.f32 %v2038, %v2039
    %v2041 = vrot.slane %v2040, 4
    %v2042 = vadd.f32 %v2040, %v2041
    %v2043 = vrot.slane %v2042, 2
    %v2044 = vadd.f32 %v2042, %v2043
    %v2045 = vrot.slane %v2044, 1
    %v2046 = vadd.f32 %v2044, %v2045
    %vm2047 = vcmask 253952
    %2048 = vst.msk [vmem:[#allocation2] sm:$0x1] %vm2047, %v2046
    %2049 = vset.pattern.permute.xlu0 1
    %2050 = vperm.xlu0 %2049, %v1970
    %v2051 = vpop.permute.xlu0 %2050
    %2053 = vset.pattern.permute.xlu0 1
    %2054 = vperm.xlu0 %2053, %v1971
    %v2055 = vpop.permute.xlu0 %2054
    %2057 = vset.pattern.permute.xlu0 1
    %2058 = vperm.xlu0 %2057, %v1972
    %v2059 = vpop.permute.xlu0 %2058
    %2061 = vset.pattern.permute.xlu0 1
    %2062 = vperm.xlu0 %2061, %v1973
    %v2063 = vpop.permute.xlu0 %2062
    %2065 = vset.pattern.permute.xlu0 1
    %2066 = vperm.xlu0 %2065, %v1974
    %v2067 = vpop.permute.xlu0 %2066
    %2069 = vset.pattern.permute.xlu0 1
    %2070 = vperm.xlu0 %2069, %v1975
    %v2071 = vpop.permute.xlu0 %2070
    %2073 = vset.pattern.permute.xlu0 1
    %2074 = vperm.xlu0 %2073, %v1976
    %v2075 = vpop.permute.xlu0 %2074
    %2077 = vset.pattern.permute.xlu0 1
    %2078 = vperm.xlu0 %2077, %v1977
    %v2079 = vpop.permute.xlu0 %2078
    %v2081 = vmul.f32 %v2051, %v1430
    %v2082 = vmul.f32 %v2055, %v1432
    %v2083 = vmul.f32 %v2059, %v1434
    %v2084 = vmul.f32 %v2063, %v1436
    %v2085 = vmul.f32 %v2067, %v1438
    %v2086 = vmul.f32 %v2071, %v1440
    %v2087 = vmul.f32 %v2075, %v1442
    %v2088 = vmul.f32 %v2079, %v1444
    %v2089 = vsel %vm261, %v2081, 0.0
    %v2090 = vsel %vm261, %v2082, 0.0
    %v2091 = vadd.f32 %v2089, %v2090
    %v2092 = vsel %vm261, %v2083, 0.0
    %v2093 = vadd.f32 %v2091, %v2092
    %v2094 = vsel %vm261, %v2084, 0.0
    %v2095 = vadd.f32 %v2093, %v2094
    %v2096 = vsel %vm261, %v2085, 0.0
    %v2097 = vadd.f32 %v2095, %v2096
    %v2098 = vsel %vm261, %v2086, 0.0
    %v2099 = vadd.f32 %v2097, %v2098
    %v2100 = vsel %vm261, %v2087, 0.0
    %v2101 = vadd.f32 %v2099, %v2100
    %v2102 = vsel %vm261, %v2088, 0.0
    %v2103 = vadd.f32 %v2101, %v2102
    %v2104 = vrot.slane %v2103, 4
    %v2105 = vadd.f32 %v2103, %v2104
    %v2106 = vrot.slane %v2105, 2
    %v2107 = vadd.f32 %v2105, %v2106
    %v2108 = vrot.slane %v2107, 1
    %v2109 = vadd.f32 %v2107, %v2108
    %2111 = vrot.lane.b32.xlu0 %v2109, 32
    %v2112 = vpop.permute.xlu0 %2111
    %vm2114 = vcmask 516352
    %2115 = vst.msk [vmem:[#allocation2] sm:$0x1] %vm2114, %v2112
    %v2116 = vlaneseq
    %v2117 = vshrl.u32 %v2116, 7
    %v2118 = vsub.s32 1, %v2117
    %v2119 = vrot.slane %v1739, %v2118
    %v2120 = vadd.f32 %v1620, %v2119
    %v2121 = vadd.f32 %v1625, %v2119
    %v2122 = vadd.f32 %v1630, %v2119
    %v2123 = vadd.f32 %v1635, %v2119
    %v2124 = vadd.f32 %v1640, %v2119
    %v2125 = vadd.f32 %v1645, %v2119
    %v2126 = vadd.f32 %v1650, %v2119
    %v2127 = vadd.f32 %v1655, %v2119
    %v2128 = vmax.f32 %v2120, 0.0
    %v2129 = vmax.f32 %v2121, 0.0
    %v2130 = vmax.f32 %v2122, 0.0
    %v2131 = vmax.f32 %v2123, 0.0
    %v2132 = vmax.f32 %v2124, 0.0
    %v2133 = vmax.f32 %v2125, 0.0
    %v2134 = vmax.f32 %v2126, 0.0
    %v2135 = vmax.f32 %v2127, 0.0
    %v2136 = vld [vmem:[%s10] sm:$0xff]
    %v2137 = vld [vmem:[%s10 + $0x8] sm:$0xff]
    %v2138 = vld [vmem:[%s10 + $0x10] sm:$0xff]
    %v2139 = vld [vmem:[%s10 + $0x18] sm:$0xff]
    %v2140 = vld [vmem:[%s11] sm:$0x1]
    %v2142 = vlaneseq
    %v2143 = vshrl.u32 %v2142, 7
    %v2144 = vsub.s32 0, %v2143
    %v2145 = vrot.slane %v2140, %v2144
    %v2148 = vsel %vm261, %v2128, 0
    %v2151 = vsel %vm261, %v2129, 0
    %v2154 = vsel %vm261, %v2130, 0
    %v2157 = vsel %vm261, %v2131, 0
    %v2160 = vsel %vm261, %v2132, 0
    %v2163 = vsel %vm261, %v2133, 0
    %v2166 = vsel %vm261, %v2134, 0
    %v2169 = vsel %vm261, %v2135, 0
    %2171 = vmatprep.subr.mxu0 0.0
    %2172 = vmatpush1.msra.mxu0 %v2136
    %2173 = vmatprep.subr.mxu0 0.0
    %2174 = vmatpush1.msra.mxu0 %v2137
    %2175 = vmatprep.subr.mxu0 0.0
    %2176 = vmatpush1.msra.mxu0 %v2138
    %2177 = vmatprep.subr.mxu0 0.0
    %2178 = vmatpush1.msra.mxu0 %v2139
    %2179 = vmatprep.subr.mxu0 0.0
    %2180 = vmatpush1.msra.mxu0 0.0
    %2181 = vmatprep.subr.mxu0 0.0
    %2182 = vmatpush1.msra.mxu0 0.0
    %2183 = vmatprep.subr.mxu0 0.0
    %2184 = vmatpush1.msra.mxu0 0.0
    %2185 = vmatprep.subr.mxu0 0.0
    %2186 = vmatpush1.msra.mxu0 0.0
    %2187 = vmatprep.subr.mxu0 0.0
    %2188 = vmatpush1.msra.mxu0 0.0
    %2189 = vmatprep.subr.mxu0 0.0
    %2190 = vmatpush1.msra.mxu0 0.0
    %2191 = vmatprep.subr.mxu0 0.0
    %2192 = vmatpush1.msra.mxu0 0.0
    %2193 = vmatprep.subr.mxu0 0.0
    %2194 = vmatpush1.msra.mxu0 0.0
    %2195 = vmatprep.subr.mxu0 0.0
    %2196 = vmatpush1.msra.mxu0 0.0
    %2197 = vmatprep.subr.mxu0 0.0
    %2198 = vmatpush1.msra.mxu0 0.0
    %2199 = vmatprep.subr.mxu0 0.0
    %2200 = vmatpush1.msra.mxu0 0.0
    %2201 = vmatprep.subr.mxu0 0.0
    %2202 = vmatpush1.msra.mxu0 0.0
    %2203 = vmatprep.subr.mxu0 0.0
    %2204 = vmatpush1.msra.mxu0 0.0
    %2205 = vmatprep.subr.mxu0 0.0
    %2206 = vmatpush1.msra.mxu0 0.0
    %2207 = vmatprep.subr.mxu0 0.0
    %2208 = vmatpush1.msra.mxu0 0.0
    %2209 = vmatprep.subr.mxu0 0.0
    %2210 = vmatpush1.msra.mxu0 0.0
    %2211 = vmatprep.subr.mxu0 0.0
    %2212 = vmatpush1.msra.mxu0 0.0
    %2213 = vmatprep.subr.mxu0 0.0
    %2214 = vmatpush1.msra.mxu0 0.0
    %2215 = vmatprep.subr.mxu0 0.0
    %2216 = vmatpush1.msra.mxu0 0.0
    %2217 = vmatprep.subr.mxu0 0.0
    %2218 = vmatpush1.msra.mxu0 0.0
    %2219 = vmatprep.subr.mxu0 0.0
    %2220 = vmatpush1.msra.mxu0 0.0
    %2221 = vmatprep.subr.mxu0 0.0
    %2222 = vmatpush1.msra.mxu0 0.0
    %2223 = vmatprep.subr.mxu0 0.0
    %2224 = vmatpush1.msra.mxu0 0.0
    %2225 = vmatprep.subr.mxu0 0.0
    %2226 = vmatpush1.msra.mxu0 0.0
    %2227 = vmatprep.subr.mxu0 0.0
    %2228 = vmatpush1.msra.mxu0 0.0
    %2229 = vmatprep.subr.mxu0 0.0
    %2230 = vmatpush1.msra.mxu0 0.0
    %2231 = vmatprep.subr.mxu0 0.0
    %2232 = vmatpush1.msra.mxu0 0.0
    %2233 = vmatprep.subr.mxu0 0.0
    %2234 = vmatpush1.msra.mxu0 0.0
    %2235 = vmatprep.mubr.f32.mxu0 0.0
    %2236 = vmatmul.mubr.f32.gmra.mrb[0].mxu0 %v2148
    %v2237 = vpop.f32.mrb[0].mxu0
    %v2238 = vadd.f32 %v2145, %v2237
    %v2239 = vpop.f32.mrb[0].mxu0
    %2240 = vmatprep.mubr.f32.mxu0 0.0
    %2241 = vmatmul.mubr.f32.gmra.mrb[0].mxu0 %v2151
    %v2242 = vpop.f32.mrb[0].mxu0
    %v2243 = vadd.f32 %v2145, %v2242
    %v2244 = vpop.f32.mrb[0].mxu0
    %2245 = vmatprep.mubr.f32.mxu0 0.0
    %2246 = vmatmul.mubr.f32.gmra.mrb[0].mxu0 %v2154
    %v2247 = vpop.f32.mrb[0].mxu0
    %v2248 = vadd.f32 %v2145, %v2247
    %v2249 = vpop.f32.mrb[0].mxu0
    %2250 = vmatprep.mubr.f32.mxu0 0.0
    %2251 = vmatmul.mubr.f32.gmra.mrb[0].mxu0 %v2157
    %v2252 = vpop.f32.mrb[0].mxu0
    %v2253 = vadd.f32 %v2145, %v2252
    %v2254 = vpop.f32.mrb[0].mxu0
    %2255 = vmatprep.mubr.f32.mxu0 0.0
    %2256 = vmatmul.mubr.f32.gmra.mrb[0].mxu0 %v2160
    %v2257 = vpop.f32.mrb[0].mxu0
    %v2258 = vadd.f32 %v2145, %v2257
    %v2259 = vpop.f32.mrb[0].mxu0
    %2260 = vmatprep.mubr.f32.mxu0 0.0
    %2261 = vmatmul.mubr.f32.gmra.mrb[0].mxu0 %v2163
    %v2262 = vpop.f32.mrb[0].mxu0
    %v2263 = vadd.f32 %v2145, %v2262
    %v2264 = vpop.f32.mrb[0].mxu0
    %2265 = vmatprep.mubr.f32.mxu0 0.0
    %2266 = vmatmul.mubr.f32.gmra.mrb[0].mxu0 %v2166
    %v2267 = vpop.f32.mrb[0].mxu0
    %v2268 = vadd.f32 %v2145, %v2267
    %v2269 = vpop.f32.mrb[0].mxu0
    %2270 = vmatprep.mubr.f32.mxu0 0.0
    %2271 = vmatmul.mubr.f32.gmra.mrb[0].mxu0 %v2169
    %v2272 = vpop.f32.mrb[0].mxu0
    %v2273 = vadd.f32 %v2145, %v2272
    %v2274 = vpop.f32.mrb[0].mxu0
    %2275 = vdwg.mxu0
    %v2276 = vsel %vm1902, %v2238, -inf
    %v2277 = vsel %vm1902, %v2243, -inf
    %v2278 = vsel %vm1902, %v2248, -inf
    %v2279 = vsel %vm1902, %v2253, -inf
    %v2280 = vsel %vm1902, %v2258, -inf
    %v2281 = vmax.f32 %v2276, %v2280
    %v2282 = vsel %vm1902, %v2263, -inf
    %v2283 = vmax.f32 %v2277, %v2282
    %v2284 = vsel %vm1902, %v2268, -inf
    %v2285 = vmax.f32 %v2278, %v2284
    %v2286 = vsel %vm1902, %v2273, -inf
    %v2287 = vmax.f32 %v2279, %v2286
    %v2288 = vmax.f32 %v2281, %v2283
    %v2289 = vmax.f32 %v2285, %v2287
    %v2290 = vmax.f32 %v2288, %v2289
    %v2291 = vrot.slane %v2290, 4
    %v2292 = vmax.f32 %v2290, %v2291
    %v2293 = vrot.slane %v2292, 2
    %v2294 = vmax.f32 %v2292, %v2293
    %v2295 = vrot.slane %v2294, 1
    %v2296 = vmax.f32 %v2294, %v2295
    %v2297 = vsub.f32 %v2238, %v2296
    %v2298 = vsub.f32 %v2243, %v2296
    %v2299 = vsub.f32 %v2248, %v2296
    %v2300 = vsub.f32 %v2253, %v2296
    %v2301 = vsub.f32 %v2258, %v2296
    %v2302 = vsub.f32 %v2263, %v2296
    %v2303 = vsub.f32 %v2268, %v2296
    %v2304 = vsub.f32 %v2273, %v2296
    %v2305 = vmul.f32 %v2297, 1.442695
    %v2306 = vpow.pop %v2305
    %v2307 = vmul.f32 %v2298, 1.442695
    %v2308 = vpow.pop %v2307
    %v2309 = vmul.f32 %v2299, 1.442695
    %v2310 = vpow.pop %v2309
    %v2311 = vmul.f32 %v2300, 1.442695
    %v2312 = vpow.pop %v2311
    %v2313 = vmul.f32 %v2301, 1.442695
    %v2314 = vpow.pop %v2313
    %v2315 = vmul.f32 %v2302, 1.442695
    %v2316 = vpow.pop %v2315
    %v2317 = vmul.f32 %v2303, 1.442695
    %v2318 = vpow.pop %v2317
    %v2319 = vmul.f32 %v2304, 1.442695
    %v2320 = vpow.pop %v2319
    %v2321 = vsel %vm1902, %v2306, 0.0
    %v2322 = vsel %vm1902, %v2308, 0.0
    %v2323 = vadd.f32 %v2321, %v2322
    %v2324 = vsel %vm1902, %v2310, 0.0
    %v2325 = vadd.f32 %v2323, %v2324
    %v2326 = vsel %vm1902, %v2312, 0.0
    %v2327 = vadd.f32 %v2325, %v2326
    %v2328 = vsel %vm1902, %v2314, 0.0
    %v2329 = vadd.f32 %v2327, %v2328
    %v2330 = vsel %vm1902, %v2316, 0.0
    %v2331 = vadd.f32 %v2329, %v2330
    %v2332 = vsel %vm1902, %v2318, 0.0
    %v2333 = vadd.f32 %v2331, %v2332
    %v2334 = vsel %vm1902, %v2320, 0.0
    %v2335 = vadd.f32 %v2333, %v2334
    %v2336 = vrot.slane %v2335, 4
    %v2337 = vadd.f32 %v2335, %v2336
    %v2338 = vrot.slane %v2337, 2
    %v2339 = vadd.f32 %v2337, %v2338
    %v2340 = vrot.slane %v2339, 1
    %v2341 = vadd.f32 %v2339, %v2340
    %v2342 = vrcp.pop %v2341
    %v2343 = vmul.f32 %v2306, %v2342
    %v2344 = vmul.f32 %v2308, %v2342
    %v2345 = vmul.f32 %v2310, %v2342
    %v2346 = vmul.f32 %v2312, %v2342
    %v2347 = vmul.f32 %v2314, %v2342
    %v2348 = vmul.f32 %v2316, %v2342
    %v2349 = vmul.f32 %v2318, %v2342
    %v2350 = vmul.f32 %v2320, %v2342
    %2352 = vset.pattern.permute.xlu0 0
    %2353 = vperm.xlu0 %2352, %v2343
    %v2354 = vpop.permute.xlu0 %2353
    %2357 = vset.pattern.permute.xlu0 0
    %2358 = vperm.xlu0 %2357, %v2344
    %v2359 = vpop.permute.xlu0 %2358
    %2362 = vset.pattern.permute.xlu0 0
    %2363 = vperm.xlu0 %2362, %v2345
    %v2364 = vpop.permute.xlu0 %2363
    %2367 = vset.pattern.permute.xlu0 0
    %2368 = vperm.xlu0 %2367, %v2346
    %v2369 = vpop.permute.xlu0 %2368
    %2372 = vset.pattern.permute.xlu0 0
    %2373 = vperm.xlu0 %2372, %v2347
    %v2374 = vpop.permute.xlu0 %2373
    %2377 = vset.pattern.permute.xlu0 0
    %2378 = vperm.xlu0 %2377, %v2348
    %v2379 = vpop.permute.xlu0 %2378
    %2382 = vset.pattern.permute.xlu0 0
    %2383 = vperm.xlu0 %2382, %v2349
    %v2384 = vpop.permute.xlu0 %2383
    %2387 = vset.pattern.permute.xlu0 0
    %2388 = vperm.xlu0 %2387, %v2350
    %v2389 = vpop.permute.xlu0 %2388
    %v2391 = vmul.f32 %v2354, %v1446
    %v2392 = vmul.f32 %v2359, %v1448
    %v2393 = vmul.f32 %v2364, %v1450
    %v2394 = vmul.f32 %v2369, %v1452
    %v2395 = vmul.f32 %v2374, %v1454
    %v2396 = vmul.f32 %v2379, %v1456
    %v2397 = vmul.f32 %v2384, %v1458
    %v2398 = vmul.f32 %v2389, %v1460
    %v2399 = vsel %vm261, %v2391, 0.0
    %v2400 = vsel %vm261, %v2392, 0.0
    %v2401 = vadd.f32 %v2399, %v2400
    %v2402 = vsel %vm261, %v2393, 0.0
    %v2403 = vadd.f32 %v2401, %v2402
    %v2404 = vsel %vm261, %v2394, 0.0
    %v2405 = vadd.f32 %v2403, %v2404
    %v2406 = vsel %vm261, %v2395, 0.0
    %v2407 = vadd.f32 %v2405, %v2406
    %v2408 = vsel %vm261, %v2396, 0.0
    %v2409 = vadd.f32 %v2407, %v2408
    %v2410 = vsel %vm261, %v2397, 0.0
    %v2411 = vadd.f32 %v2409, %v2410
    %v2412 = vsel %vm261, %v2398, 0.0
    %v2413 = vadd.f32 %v2411, %v2412
    %v2414 = vrot.slane %v2413, 4
    %v2415 = vadd.f32 %v2413, %v2414
    %v2416 = vrot.slane %v2415, 2
    %v2417 = vadd.f32 %v2415, %v2416
    %v2418 = vrot.slane %v2417, 1
    %v2419 = vadd.f32 %v2417, %v2418
    %2420 = vst.msk [vmem:[#allocation2 + $0x1] sm:$0x1] %vm2047, %v2419
    %2421 = vset.pattern.permute.xlu0 1
    %2422 = vperm.xlu0 %2421, %v2343
    %v2423 = vpop.permute.xlu0 %2422
    %2425 = vset.pattern.permute.xlu0 1
    %2426 = vperm.xlu0 %2425, %v2344
    %v2427 = vpop.permute.xlu0 %2426
    %2429 = vset.pattern.permute.xlu0 1
    %2430 = vperm.xlu0 %2429, %v2345
    %v2431 = vpop.permute.xlu0 %2430
    %2433 = vset.pattern.permute.xlu0 1
    %2434 = vperm.xlu0 %2433, %v2346
    %v2435 = vpop.permute.xlu0 %2434
    %2437 = vset.pattern.permute.xlu0 1
    %2438 = vperm.xlu0 %2437, %v2347
    %v2439 = vpop.permute.xlu0 %2438
    %2441 = vset.pattern.permute.xlu0 1
    %2442 = vperm.xlu0 %2441, %v2348
    %v2443 = vpop.permute.xlu0 %2442
    %2445 = vset.pattern.permute.xlu0 1
    %2446 = vperm.xlu0 %2445, %v2349
    %v2447 = vpop.permute.xlu0 %2446
    %2449 = vset.pattern.permute.xlu0 1
    %2450 = vperm.xlu0 %2449, %v2350
    %v2451 = vpop.permute.xlu0 %2450
    %v2453 = vmul.f32 %v2423, %v1446
    %v2454 = vmul.f32 %v2427, %v1448
    %v2455 = vmul.f32 %v2431, %v1450
    %v2456 = vmul.f32 %v2435, %v1452
    %v2457 = vmul.f32 %v2439, %v1454
    %v2458 = vmul.f32 %v2443, %v1456
    %v2459 = vmul.f32 %v2447, %v1458
    %v2460 = vmul.f32 %v2451, %v1460
    %v2461 = vsel %vm261, %v2453, 0.0
    %v2462 = vsel %vm261, %v2454, 0.0
    %v2463 = vadd.f32 %v2461, %v2462
    %v2464 = vsel %vm261, %v2455, 0.0
    %v2465 = vadd.f32 %v2463, %v2464
    %v2466 = vsel %vm261, %v2456, 0.0
    %v2467 = vadd.f32 %v2465, %v2466
    %v2468 = vsel %vm261, %v2457, 0.0
    %v2469 = vadd.f32 %v2467, %v2468
    %v2470 = vsel %vm261, %v2458, 0.0
    %v2471 = vadd.f32 %v2469, %v2470
    %v2472 = vsel %vm261, %v2459, 0.0
    %v2473 = vadd.f32 %v2471, %v2472
    %v2474 = vsel %vm261, %v2460, 0.0
    %v2475 = vadd.f32 %v2473, %v2474
    %v2476 = vrot.slane %v2475, 4
    %v2477 = vadd.f32 %v2475, %v2476
    %v2478 = vrot.slane %v2477, 2
    %v2479 = vadd.f32 %v2477, %v2478
    %v2480 = vrot.slane %v2479, 1
    %v2481 = vadd.f32 %v2479, %v2480
    %2483 = vrot.lane.b32.xlu0 %v2481, 32
    %v2484 = vpop.permute.xlu0 %2483
    %2486 = vst.msk [vmem:[#allocation2 + $0x1] sm:$0x1] %vm2114, %v2484
    %2487 = vrot.lane.b32.xlu0 %v1220, 64
    %v2488 = vpop.permute.xlu0 %2487
    %vm2490 = vcmask 779776
    %2491 = vst.msk [vmem:[#allocation2] sm:$0x3] %vm2490, %v2488
    %v2492 = vld [vmem:[#allocation2] sm:$0x3]
    %v2493 = vld [vmem:[%s12] sm:$0xff]
    %v2494 = vld [vmem:[%s12 + $0x8] sm:$0xff]
    %v2495 = vld [vmem:[%s12 + $0x10] sm:$0xff]
    %v2496 = vld [vmem:[%s12 + $0x18] sm:$0xff]
    %v2497 = vld [vmem:[%s12 + $0x20] sm:$0xff]
    %v2498 = vld [vmem:[%s12 + $0x28] sm:$0xff]
    %v2499 = vld [vmem:[%s12 + $0x30] sm:$0xff]
    %v2500 = vld [vmem:[%s12 + $0x38] sm:$0xff]
    %v2501 = vld [vmem:[%s12 + $0x40] sm:$0xff]
    %v2502 = vld [vmem:[%s12 + $0x48] sm:$0xff]
    %v2503 = vld [vmem:[%s12 + $0x50] sm:$0xff]
    %v2504 = vld [vmem:[%s12 + $0x58] sm:$0xff]
    %v2505 = vld [vmem:[%s13] sm:$0x1]
    %v2507 = vlaneseq
    %v2508 = vshrl.u32 %v2507, 7
    %v2509 = vsub.s32 0, %v2508
    %v2510 = vrot.slane %v2505, %v2509
    %vm2512 = vcmask 785408
    %v2514 = vsel %vm2512, %v2492, 0
    %2516 = vmatprep.subr.mxu0 0.0
    %2517 = vmatpush1.msra.mxu0 %v2493
    %2518 = vmatprep.subr.mxu0 0.0
    %2519 = vmatpush1.msra.mxu0 %v2494
    %2520 = vmatprep.subr.mxu0 0.0
    %2521 = vmatpush1.msra.mxu0 %v2495
    %2522 = vmatprep.subr.mxu0 0.0
    %2523 = vmatpush1.msra.mxu0 %v2496
    %2524 = vmatprep.subr.mxu0 0.0
    %2525 = vmatpush1.msra.mxu0 %v2497
    %2526 = vmatprep.subr.mxu0 0.0
    %2527 = vmatpush1.msra.mxu0 %v2498
    %2528 = vmatprep.subr.mxu0 0.0
    %2529 = vmatpush1.msra.mxu0 %v2499
    %2530 = vmatprep.subr.mxu0 0.0
    %2531 = vmatpush1.msra.mxu0 %v2500
    %2532 = vmatprep.subr.mxu0 0.0
    %2533 = vmatpush1.msra.mxu0 %v2501
    %2534 = vmatprep.subr.mxu0 0.0
    %2535 = vmatpush1.msra.mxu0 %v2502
    %2536 = vmatprep.subr.mxu0 0.0
    %2537 = vmatpush1.msra.mxu0 %v2503
    %2538 = vmatprep.subr.mxu0 0.0
    %2539 = vmatpush1.msra.mxu0 %v2504
    %2540 = vmatprep.subr.mxu0 0.0
    %2541 = vmatpush1.msra.mxu0 0.0
    %2542 = vmatprep.subr.mxu0 0.0
    %2543 = vmatpush1.msra.mxu0 0.0
    %2544 = vmatprep.subr.mxu0 0.0
    %2545 = vmatpush1.msra.mxu0 0.0
    %2546 = vmatprep.subr.mxu0 0.0
    %2547 = vmatpush1.msra.mxu0 0.0
    %2548 = vmatprep.subr.mxu0 0.0
    %2549 = vmatpush1.msra.mxu0 0.0
    %2550 = vmatprep.subr.mxu0 0.0
    %2551 = vmatpush1.msra.mxu0 0.0
    %2552 = vmatprep.subr.mxu0 0.0
    %2553 = vmatpush1.msra.mxu0 0.0
    %2554 = vmatprep.subr.mxu0 0.0
    %2555 = vmatpush1.msra.mxu0 0.0
    %2556 = vmatprep.subr.mxu0 0.0
    %2557 = vmatpush1.msra.mxu0 0.0
    %2558 = vmatprep.subr.mxu0 0.0
    %2559 = vmatpush1.msra.mxu0 0.0
    %2560 = vmatprep.subr.mxu0 0.0
    %2561 = vmatpush1.msra.mxu0 0.0
    %2562 = vmatprep.subr.mxu0 0.0
    %2563 = vmatpush1.msra.mxu0 0.0
    %2564 = vmatprep.subr.mxu0 0.0
    %2565 = vmatpush1.msra.mxu0 0.0
    %2566 = vmatprep.subr.mxu0 0.0
    %2567 = vmatpush1.msra.mxu0 0.0
    %2568 = vmatprep.subr.mxu0 0.0
    %2569 = vmatpush1.msra.mxu0 0.0
    %2570 = vmatprep.subr.mxu0 0.0
    %2571 = vmatpush1.msra.mxu0 0.0
    %2572 = vmatprep.subr.mxu0 0.0
    %2573 = vmatpush1.msra.mxu0 0.0
    %2574 = vmatprep.subr.mxu0 0.0
    %2575 = vmatpush1.msra.mxu0 0.0
    %2576 = vmatprep.subr.mxu0 0.0
    %2577 = vmatpush1.msra.mxu0 0.0
    %2578 = vmatprep.subr.mxu0 0.0
    %2579 = vmatpush1.msra.mxu0 0.0
    %2580 = vmatprep.mubr.f32.mxu0 0.0
    %2581 = vmatmul.mubr.f32.gmra.mrb[0].mxu0 %v2514
    %v2582 = vpop.f32.mrb[0].mxu0
    %v2583 = vadd.f32 %v2510, %v2582
    %v2584 = vpop.f32.mrb[0].mxu0
    %2585 = vdwg.mxu0
    %v2586 = vmax.f32 %v2583, 0.0
    %v2587 = vld [vmem:[%s14] sm:$0xff]
    %v2588 = vld [vmem:[%s14 + $0x8] sm:$0xff]
    %v2589 = vld [vmem:[%s14 + $0x10] sm:$0xff]
    %v2590 = vld [vmem:[%s14 + $0x18] sm:$0xff]
    %v2591 = vld [vmem:[%s15] sm:$0x1]
    %v2593 = vlaneseq
    %v2594 = vshrl.u32 %v2593, 7
    %v2595 = vsub.s32 0, %v2594
    %v2596 = vrot.slane %v2591, %v2595
    %v2599 = vsel %vm261, %v2586, 0
    %2601 = vmatprep.subr.mxu0 0.0
    %2602 = vmatpush1.msra.mxu0 %v2587
    %2603 = vmatprep.subr.mxu0 0.0
    %2604 = vmatpush1.msra.mxu0 %v2588
    %2605 = vmatprep.subr.mxu0 0.0
    %2606 = vmatpush1.msra.mxu0 %v2589
    %2607 = vmatprep.subr.mxu0 0.0
    %2608 = vmatpush1.msra.mxu0 %v2590
    %2609 = vmatprep.subr.mxu0 0.0
    %2610 = vmatpush1.msra.mxu0 0.0
    %2611 = vmatprep.subr.mxu0 0.0
    %2612 = vmatpush1.msra.mxu0 0.0
    %2613 = vmatprep.subr.mxu0 0.0
    %2614 = vmatpush1.msra.mxu0 0.0
    %2615 = vmatprep.subr.mxu0 0.0
    %2616 = vmatpush1.msra.mxu0 0.0
    %2617 = vmatprep.subr.mxu0 0.0
    %2618 = vmatpush1.msra.mxu0 0.0
    %2619 = vmatprep.subr.mxu0 0.0
    %2620 = vmatpush1.msra.mxu0 0.0
    %2621 = vmatprep.subr.mxu0 0.0
    %2622 = vmatpush1.msra.mxu0 0.0
    %2623 = vmatprep.subr.mxu0 0.0
    %2624 = vmatpush1.msra.mxu0 0.0
    %2625 = vmatprep.subr.mxu0 0.0
    %2626 = vmatpush1.msra.mxu0 0.0
    %2627 = vmatprep.subr.mxu0 0.0
    %2628 = vmatpush1.msra.mxu0 0.0
    %2629 = vmatprep.subr.mxu0 0.0
    %2630 = vmatpush1.msra.mxu0 0.0
    %2631 = vmatprep.subr.mxu0 0.0
    %2632 = vmatpush1.msra.mxu0 0.0
    %2633 = vmatprep.subr.mxu0 0.0
    %2634 = vmatpush1.msra.mxu0 0.0
    %2635 = vmatprep.subr.mxu0 0.0
    %2636 = vmatpush1.msra.mxu0 0.0
    %2637 = vmatprep.subr.mxu0 0.0
    %2638 = vmatpush1.msra.mxu0 0.0
    %2639 = vmatprep.subr.mxu0 0.0
    %2640 = vmatpush1.msra.mxu0 0.0
    %2641 = vmatprep.subr.mxu0 0.0
    %2642 = vmatpush1.msra.mxu0 0.0
    %2643 = vmatprep.subr.mxu0 0.0
    %2644 = vmatpush1.msra.mxu0 0.0
    %2645 = vmatprep.subr.mxu0 0.0
    %2646 = vmatpush1.msra.mxu0 0.0
    %2647 = vmatprep.subr.mxu0 0.0
    %2648 = vmatpush1.msra.mxu0 0.0
    %2649 = vmatprep.subr.mxu0 0.0
    %2650 = vmatpush1.msra.mxu0 0.0
    %2651 = vmatprep.subr.mxu0 0.0
    %2652 = vmatpush1.msra.mxu0 0.0
    %2653 = vmatprep.subr.mxu0 0.0
    %2654 = vmatpush1.msra.mxu0 0.0
    %2655 = vmatprep.subr.mxu0 0.0
    %2656 = vmatpush1.msra.mxu0 0.0
    %2657 = vmatprep.subr.mxu0 0.0
    %2658 = vmatpush1.msra.mxu0 0.0
    %2659 = vmatprep.subr.mxu0 0.0
    %2660 = vmatpush1.msra.mxu0 0.0
    %2661 = vmatprep.subr.mxu0 0.0
    %2662 = vmatpush1.msra.mxu0 0.0
    %2663 = vmatprep.subr.mxu0 0.0
    %2664 = vmatpush1.msra.mxu0 0.0
    %2665 = vmatprep.mubr.f32.mxu0 0.0
    %2666 = vmatmul.mubr.f32.gmra.mrb[0].mxu0 %v2599
    %v2667 = vpop.f32.mrb[0].mxu0
    %v2668 = vadd.f32 %v2596, %v2667
    %v2669 = vpop.f32.mrb[0].mxu0
    %2670 = vdwg.mxu0
    %vm2671 = vcmask 123904
    %v2672 = vsel %vm2671, %v2668, -inf
    %2673 = vmax.xlane.f32.xlu0 %v2672
    %v2674 = vpop.xlane.xlu0 %2673
    %v2675 = vsub.f32 %v2668, %v2674
    %v2676 = vmul.f32 %v2675, 1.442695
    %v2677 = vpow.pop %v2676
    %v2678 = vsel %vm2671, %v2677, 0.0
    %2679 = vadd.xlane.f32.xlu0 %v2678
    %v2680 = vpop.xlane.xlu0 %2679
    %v2681 = vrcp.pop %v2680
    %v2682 = vmul.f32 %v2677, %v2681
    %2683 = vst.msk [vmem:[#allocation3] sm:$0x3] %vm2671, %v2682
    // Predicated region
    $region66: #{net_forward.1} parent=1 // pred_check
      _
    $region67: #{net_forward.1} parent=1 // pred_check_branch
      %2685 = sbr.rel (0) target = $region69
    $region68: #{net_forward.1} parent=1 // pred_region
      %s2687 = ssub.s32 32, 32
      %2688 = vsyncadd [#allocation4], %s2687
      %s2690 = sshll.u32 [#allocation3], 4
      %s2691 = int_to_ptr.vmem [resolvable:$true] %s2690
      %2693 = dma.vmem_to_hbm [thread:$0]  %s2691, 32, %s16, [#allocation4]
    $region69: #{net_forward.1} parent=1 // pred_fallthru
      _
    // Predicated region
    $region70: #{net_forward.1} parent=1 // pred_check
      _
    $region71: #{net_forward.1} parent=1 // pred_check_branch
      %2695 = sbr.rel (0) target = $region73
    $region72: #{net_forward.1} parent=1 // pred_region
      %2696 = dma.done [#allocation4], 32
    $region73: #{net_forward.1} parent=1 // pred_fallthru
      _
    %2697 = vsyncpa [#allocation4], 1

</llo_original>
